<compile_context>
chip_gen: v5e
topology: v5e:2x2
jax: 0.10.0
libtpu: 0.0.40
codegen_flags: <defaults>
</compile_context>

<pallas_src>
import functools

import jax
import jax.numpy as jnp
from jax import lax
from jax.experimental import pallas as pl
from jax.experimental.pallas import tpu as pltpu

LANE = 128
SUBLANE = 8


def _round_up(x, m):
    return ((x + m - 1) // m) * m


# ----------------------------------------------------------------------------
# Kernel 1: fused multi-layer LSTM over the whole sequence.
#   x_ref    : (T*Bp, Dp)    f32   flattened, padded input sequence (time-major)
#   h0_ref   : (L, Bp, Hp)   f32   initial hidden states
#   c0_ref   : (L, Bp, Hp)   f32   initial cell states
#   len_ref  : (Bp, 1)       i32   valid lengths per (padded) batch row
#   tmax_ref : (1,)          i32   max(lengths) in SMEM (loop bound)
#   wih_ref  : (L, Dp, 4Hp)  f32   input->gates weights (gate-blocked, padded)
#   whh_ref  : (L, Hp, 4Hp)  f32   hidden->gates weights
#   b_ref    : (L, 1, 4Hp)   f32   b_ih + b_hh (gate-blocked, padded)
# outputs:
#   hs_ref   : (T*Bp, Hp)    last-layer hidden sequence, padded steps -> 1.0
#   hT_ref   : (L, Bp, Hp)   final hidden states
#   cT_ref   : (L, Bp, Hp)   final cell states
# scratch:
#   seq_scr   : (T*Bp, Dp)   current layer input sequence (stays in VMEM)
#   gates_scr : (T*Bp, 4Hp)  hoisted input-gate pre-activations
#   h_scr, c_scr : (Bp, Hp)  recurrent state carries
# ----------------------------------------------------------------------------
def fused_lstm_kernel(x_ref, h0_ref, c0_ref, len_ref, tmax_ref,
                      wih_ref, whh_ref, b_ref,
                      hs_ref, hT_ref, cT_ref,
                      seq_scr, gates_scr, h_scr, c_scr):
    L, Bp, Hp = h0_ref.shape
    Dp = x_ref.shape[1]
    T = x_ref.shape[0] // Bp

    lengths = len_ref[...]            # (Bp, 1) int32, hoisted out of all loops
    t_max = tmax_ref[0]               # scalar int32 from SMEM

    seq_scr[...] = x_ref[...]
    # padPack(padding_value=1): pre-fill whole output once, lane-dense store.
    hs_ref[...] = jnp.ones(hs_ref.shape, hs_ref.dtype)

    for l in range(L):                # static, small layer count
        w_hh = whh_ref[l]             # (Hp, 4Hp) hoisted out of the time loop
        # Hoisted input->gates matmul for the whole sequence, bias folded in.
        gates_scr[...] = (
            jnp.dot(seq_scr[...], wih_ref[l],
                    preferred_element_type=jnp.float32)
            + b_ref[l])
        h_scr[...] = h0_ref[l]
        c_scr[...] = c0_ref[l]
        is_last = (l == L - 1)

        def step(t, carry, _w_hh=w_hh, _is_last=is_last):
            @pl.when(t < t_max)       # skip all-padded trailing timesteps
            def _():
                row = t * Bp
                h = h_scr[...]
                c = c_scr[...]
                gates = gates_scr[pl.ds(row, Bp), :] + jnp.dot(
                    h, _w_hh, preferred_element_type=jnp.float32)
                # PyTorch LSTM gate order i, f, g, o; each slice is a whole
                # 128-lane block thanks to Hp padding (no lane shuffles).
                i_g = jax.nn.sigmoid(gates[:, 0 * Hp:1 * Hp])
                f_g = jax.nn.sigmoid(gates[:, 1 * Hp:2 * Hp])
                g_g = jnp.tanh(gates[:, 2 * Hp:3 * Hp])
                o_g = jax.nn.sigmoid(gates[:, 3 * Hp:4 * Hp])
                c_new = f_g * c + i_g * g_g
                h_new = o_g * jnp.tanh(c_new)

                mask = t < lengths    # (Bp, 1), broadcasts over Hp
                h_scr[...] = jnp.where(mask, h_new, h)
                c_scr[...] = jnp.where(mask, c_new, c)
                if _is_last:
                    # final layer: emit padding_value = 1.0 at padded steps
                    hs_ref[pl.ds(row, Bp), :] = jnp.where(
                        mask, h_new, jnp.ones_like(h_new))
                else:
                    if Dp > Hp:
                        h_store = jnp.concatenate(
                            [h_new, jnp.zeros((Bp, Dp - Hp), h_new.dtype)],
                            axis=1)
                    else:
                        h_store = h_new
                    seq_scr[pl.ds(row, Bp), :] = h_store
            return carry

        lax.fori_loop(0, T, step, 0, unroll=(T <= 16))
        hT_ref[l] = h_scr[...]
        cT_ref[l] = c_scr[...]


def fused_lstm(x_flat, h0, c0, len_col, t_max, wih, whh, bias):
    L, Bp, Hp = h0.shape
    TBp, Dp = x_flat.shape
    vmem = pl.BlockSpec(memory_space=pltpu.MemorySpace.VMEM)
    smem = pl.BlockSpec(memory_space=pltpu.MemorySpace.SMEM)
    return pl.pallas_call(
        fused_lstm_kernel,
        out_shape=(
            jax.ShapeDtypeStruct((TBp, Hp), jnp.float32),   # hs (flat)
            jax.ShapeDtypeStruct((L, Bp, Hp), jnp.float32),  # hT
            jax.ShapeDtypeStruct((L, Bp, Hp), jnp.float32),  # cT
        ),
        in_specs=[vmem, vmem, vmem, vmem, smem, vmem, vmem, vmem],
        out_specs=(vmem, vmem, vmem),
        scratch_shapes=[
            pltpu.VMEM((TBp, Dp), jnp.float32),       # seq_scr
            pltpu.VMEM((TBp, 4 * Hp), jnp.float32),   # gates_scr
            pltpu.VMEM((Bp, Hp), jnp.float32),        # h_scr
            pltpu.VMEM((Bp, Hp), jnp.float32),        # c_scr
        ],
        compiler_params=pltpu.CompilerParams(
            vmem_limit_bytes=32 * 1024 * 1024),
    )(x_flat, h0, c0, len_col, t_max, wih, whh, bias)


# ----------------------------------------------------------------------------
# Kernel 2: tiled dense projection to vocabulary logits
#   (Mp, K) @ (K, Vp) + b  with an (M-tiles x V-tiles) grid; K kept whole.
# ----------------------------------------------------------------------------
def dense_kernel(x_ref, w_ref, b_ref, o_ref):
    o_ref[...] = (jnp.dot(x_ref[...], w_ref[...],
                          preferred_element_type=jnp.float32)
                  + b_ref[...])


def dense_tiled(x2d, w, b_row, tm, tn):
    Mp, K = x2d.shape
    Vp = w.shape[1]
    return pl.pallas_call(
        dense_kernel,
        out_shape=jax.ShapeDtypeStruct((Mp, Vp), jnp.float32),
        grid=(Mp // tm, Vp // tn),
        in_specs=[
            pl.BlockSpec((tm, K), lambda i, j: (i, 0)),
            pl.BlockSpec((K, tn), lambda i, j: (0, j)),
            pl.BlockSpec((1, tn), lambda i, j: (0, j)),
        ],
        out_specs=pl.BlockSpec((tm, tn), lambda i, j: (i, j)),
        compiler_params=pltpu.CompilerParams(
            dimension_semantics=("parallel", "parallel"),
            vmem_limit_bytes=32 * 1024 * 1024),
    )(x2d, w, b_row)


# ----------------------------------------------------------------------------
# Parameter construction (synthetic, logical shapes) + padding/stacking.
# ----------------------------------------------------------------------------
def make_params(key, n_vocab, emb_size, rnn_size, n_layers):
    keys = jax.random.split(key, 3 + 4 * n_layers)
    emb = jax.random.normal(keys[0], (n_vocab, emb_size), jnp.float32) * 0.1
    emb = emb.at[0].set(0.0)  # padding_idx = 0

    lstm = []
    for l in range(n_layers):
        in_dim = emb_size if l == 0 else rnn_size
        k0, k1, k2, k3 = keys[3 + 4 * l: 3 + 4 * (l + 1)]
        w_ih = jax.random.normal(k0, (in_dim, 4 * rnn_size), jnp.float32) * 0.1
        w_hh = jax.random.normal(k1, (rnn_size, 4 * rnn_size), jnp.float32) * 0.1
        b_ih = jax.random.normal(k2, (1, 4 * rnn_size), jnp.float32) * 0.05
        b_hh = jax.random.normal(k3, (1, 4 * rnn_size), jnp.float32) * 0.05
        lstm.append((w_ih, w_hh, b_ih + b_hh))

    w_d = jax.random.normal(keys[1], (rnn_size, n_vocab), jnp.float32) * 0.1
    b_d = jax.random.normal(keys[2], (1, n_vocab), jnp.float32) * 0.05
    return {"embedding": emb, "lstm": lstm, "dense": (w_d, b_d)}


def prepare_params(params):
    """Pad/stack parameters into lane-dense, gate-blocked TPU layouts."""
    emb = params["embedding"]
    lstm = params["lstm"]
    w_d, b_d = params["dense"]
    E = emb.shape[1]
    H = lstm[0][1].shape[0]
    V = w_d.shape[1]
    L = len(lstm)

    Hp = _round_up(max(H, LANE), LANE)      # lane-dense hidden
    Ep = _round_up(E, LANE)
    Dp = max(Ep, Hp)                        # common (padded) layer-input width

    def pad_gate_cols(w, rows_to):
        # (rows, 4H) -> (rows_to, 4Hp) keeping [i|f|g|o] blocks at Hp offsets.
        rows = w.shape[0]
        w = w.reshape(rows, 4, H)
        w = jnp.pad(w, ((0, rows_to - rows), (0, 0), (0, Hp - H)))
        return w.reshape(rows_to, 4 * Hp)

    wih_l, whh_l, b_l = [], [], []
    for (w_ih, w_hh, b) in lstm:
        wih_l.append(pad_gate_cols(w_ih, Dp))
        whh_l.append(pad_gate_cols(w_hh, Hp))
        b_l.append(pad_gate_cols(b, 1))
    wih = jnp.stack(wih_l)                  # (L, Dp, 4Hp)
    whh = jnp.stack(whh_l)                  # (L, Hp, 4Hp)
    bias = jnp.stack(b_l)                   # (L, 1, 4Hp)

    # Dense tiling: V padded to lane multiple; TN <= 512 lane-dense tiles.
    if V <= 512:
        Vp = _round_up(V, LANE)
        TN = Vp
    else:
        TN = 512
        Vp = _round_up(V, TN)
    w_dp = jnp.pad(w_d, ((0, Hp - H), (0, Vp - V)))   # zero rows: padded h lanes
    b_dp = jnp.pad(b_d, ((0, 0), (0, Vp - V)))

    dims = dict(E=E, H=H, V=V, L=L, Hp=Hp, Dp=Dp, Vp=Vp, TN=TN)
    return {"embedding": emb, "wih": wih, "whh": whh, "bias": bias,
            "w_dense": w_dp, "b_dense": b_dp, "dims": dims}


def zero_state(n_layers, batch, rnn_size):
    z = jnp.zeros((n_layers, batch, rnn_size), jnp.float32)
    return (z, z)


# ----------------------------------------------------------------------------
# Generator forward:  forward(x, length, prevState)
#   x         : (B, T) int32 token ids (batch-first, like padSeq output)
#   length    : (B,)   int32 valid lengths (sorted descending)
#   prevState : (h, c) each (nLayers, B, rnnSize)
# returns (logits (B, T, nVocab), (h, c))
# ----------------------------------------------------------------------------
def generator_forward(pparams, x_tokens, lengths, prev_state):
    d = pparams["dims"]
    H, Hp, Dp, V, Vp, TN = d["H"], d["Hp"], d["Dp"], d["V"], d["Vp"], d["TN"]

    emb = pparams["embedding"][x_tokens]            # (B, T, E) -- glue gather
    B, T, E = emb.shape
    Bp = _round_up(max(B, SUBLANE), SUBLANE)

    x_seq = jnp.transpose(emb, (1, 0, 2))           # (T, B, E)
    x_seq = jnp.pad(x_seq, ((0, 0), (0, Bp - B), (0, Dp - E)))
    x_flat = x_seq.reshape(T * Bp, Dp)

    lengths = lengths.astype(jnp.int32)
    len_col = jnp.pad(lengths, (0, Bp - B)).reshape(Bp, 1)
    t_max = jnp.minimum(jnp.max(lengths), T).astype(jnp.int32).reshape(1)

    h0, c0 = prev_state                             # (L, B, H)
    pad3 = ((0, 0), (0, Bp - B), (0, Hp - H))
    h0p = jnp.pad(h0.astype(jnp.float32), pad3)
    c0p = jnp.pad(c0.astype(jnp.float32), pad3)

    hs_flat, hTp, cTp = fused_lstm(
        x_flat, h0p, c0p, len_col, t_max,
        pparams["wih"], pparams["whh"], pparams["bias"])

    # Tiled vocabulary projection on the (T*Bp, Hp) hidden sequence.
    # TODO(synk): padded rows (batch pad + t >= length) still go through the
    # projection; skipping them needs a dynamic row compaction.
    M = T * Bp
    TM = M if M <= 256 else 256
    Mp = _round_up(M, TM)
    hs_in = jnp.pad(hs_flat, ((0, Mp - M), (0, 0))) if Mp > M else hs_flat
    logits_p = dense_tiled(hs_in, pparams["w_dense"], pparams["b_dense"], TM, TN)

    logits = logits_p[:M].reshape(T, Bp, Vp)[:, :B, :V]
    logits = jnp.transpose(logits, (1, 0, 2))       # (B, T, V)
    h_n = hTp[:, :B, :H]
    c_n = cTp[:, :B, :H]
    return logits, (h_n, c_n)


if __name__ == "__main__":
    # Small, module-consistent shapes.
    n_vocab, emb_size, rnn_size, n_layers = 32, 32, 32, 2
    batch, seq = 2, 8

    key = jax.random.PRNGKey(0)
    pkey, tkey = jax.random.split(key)
    params = make_params(pkey, n_vocab, emb_size, rnn_size, n_layers)
    pparams = prepare_params(params)                # pad/stack once, outside jit

    x = jax.random.randint(tkey, (batch, seq), 2, n_vocab, jnp.int32)  # (B, T)
    lengths = jnp.array([seq, seq - 2], jnp.int32)                     # sorted desc
    prev_state = zero_state(n_layers, batch, rnn_size)                 # zeroState(2, B)

    fwd = jax.jit(functools.partial(generator_forward, pparams))
    logits, (h_n, c_n) = fwd(x, lengths, prev_state)
    jax.block_until_ready((logits, h_n, c_n))

    assert logits.shape == (batch, seq, n_vocab)
    assert h_n.shape == (n_layers, batch, rnn_size)
    assert c_n.shape == (n_layers, batch, rnn_size)
    assert bool(jnp.all(jnp.isfinite(logits)))
    # TODO(synk): topk / nucleus sampling loop of generateDocument is host-side
    # control flow over vocab dicts and is left outside the kernel.
    print("KERNEL_OK")
</pallas_src>

<mosaic_0001>
module attributes {stable_mosaic.version = 11 : i64} {
  func.func @dense_kernel(%arg0: i32, %arg1: i32, %arg2: memref<64x128xf32, #tpu.memory_space<vmem>>, %arg3: memref<128x128xf32, #tpu.memory_space<vmem>>, %arg4: memref<1x128xf32, #tpu.memory_space<vmem>>, %arg5: memref<64x128xf32, #tpu.memory_space<vmem>>) attributes {dimension_semantics = [#tpu.dimension_semantics<parallel>, #tpu.dimension_semantics<parallel>], iteration_bounds = array<i64: 1, 1>, scalar_prefetch = 0 : i64, scratch_operands = 0 : i64, tpu.core_type = #tpu.core_type<tc>, window_params = [{transform_indices = @transform_0, window_bounds = array<i64: 64, 128>}, {transform_indices = @transform_1, window_bounds = array<i64: 128, 128>}, {transform_indices = @transform_2, window_bounds = array<i64: 1, 128>}, {transform_indices = @transform_3, window_bounds = array<i64: 64, 128>}]} {
    %c0 = arith.constant 0 : index
    %c0_0 = arith.constant 0 : index
    %0 = vector.load %arg2[%c0, %c0_0] : memref<64x128xf32, #tpu.memory_space<vmem>>, vector<64x128xf32>
    %c0_1 = arith.constant 0 : index
    %c0_2 = arith.constant 0 : index
    %1 = vector.load %arg3[%c0_1, %c0_2] : memref<128x128xf32, #tpu.memory_space<vmem>>, vector<128x128xf32>
    %cst = arith.constant dense<0.000000e+00> : vector<64x128xf32>
    %2 = tpu.matmul %0, %1, %cst {dimension_numbers = #tpu.dot_dimension_numbers<[1], [0], [0], [1], [0, 0, 1, 1], [], []>} : vector<64x128xf32>, vector<128x128xf32>, vector<64x128xf32> -> vector<64x128xf32>
    %c0_3 = arith.constant 0 : index
    %c0_4 = arith.constant 0 : index
    %3 = vector.load %arg4[%c0_3, %c0_4] : memref<1x128xf32, #tpu.memory_space<vmem>>, vector<1x128xf32>
    %4 = vector.broadcast %3 : vector<1x128xf32> to vector<64x128xf32>
    %5 = arith.addf %2, %4 : vector<64x128xf32>
    %c0_5 = arith.constant 0 : index
    %c0_6 = arith.constant 0 : index
    %6 = vector.load %arg5[%c0_5, %c0_6] : memref<64x128xf32, #tpu.memory_space<vmem>>, vector<64x128xf32>
    tpu.vector_store %arg5[%c0_5, %c0_6], %5 {strides = array<i32>} : memref<64x128xf32, #tpu.memory_space<vmem>>, vector<64x128xf32>,
    return
  }
  func.func @transform_0(%arg0: i32, %arg1: i32) -> (i32, i32) {
    %c0_i32 = arith.constant 0 : i32
    %c0_i32_0 = arith.constant 0 : i32
    return %arg0, %c0_i32 : i32, i32
  }
  func.func @transform_1(%arg0: i32, %arg1: i32) -> (i32, i32) {
    %c0_i32 = arith.constant 0 : i32
    %c0_i32_0 = arith.constant 0 : i32
    return %c0_i32, %arg1 : i32, i32
  }
  func.func @transform_2(%arg0: i32, %arg1: i32) -> (i32, i32) {
    %c0_i32 = arith.constant 0 : i32
    %c0_i32_0 = arith.constant 0 : i32
    return %c0_i32, %arg1 : i32, i32
  }
  func.func @transform_3(%arg0: i32, %arg1: i32) -> (i32, i32) {
    %c0_i32 = arith.constant 0 : i32
    return %arg0, %arg1 : i32, i32
  }
}

module attributes {stable_mosaic.version = 11 : i64} {
  func.func @fused_lstm_kernel(%arg0: memref<64x128xf32, #tpu.memory_space<vmem>>, %arg1: memref<2x8x128xf32, #tpu.memory_space<vmem>>, %arg2: memref<2x8x128xf32, #tpu.memory_space<vmem>>, %arg3: memref<8x1xi32, #tpu.memory_space<vmem>>, %arg4: memref<1xi32, #tpu.memory_space<smem>>, %arg5: memref<2x128x512xf32, #tpu.memory_space<vmem>>, %arg6: memref<2x128x512xf32, #tpu.memory_space<vmem>>, %arg7: memref<2x1x512xf32, #tpu.memory_space<vmem>>, %arg8: memref<64x128xf32, #tpu.memory_space<vmem>>, %arg9: memref<2x8x128xf32, #tpu.memory_space<vmem>>, %arg10: memref<2x8x128xf32, #tpu.memory_space<vmem>>, %arg11: memref<64x128xf32, #tpu.memory_space<vmem>>, %arg12: memref<64x512xf32, #tpu.memory_space<vmem>>, %arg13: memref<8x128xf32, #tpu.memory_space<vmem>>, %arg14: memref<8x128xf32, #tpu.memory_space<vmem>>) attributes {dimension_semantics = [], scalar_prefetch = 0 : i64, scratch_operands = 4 : i64, tpu.core_type = #tpu.core_type<tc>} {
    %c0 = arith.constant 0 : index
    %c0_0 = arith.constant 0 : index
    %0 = vector.load %arg3[%c0, %c0_0] : memref<8x1xi32, #tpu.memory_space<vmem>>, vector<8x1xi32>
    %c0_1 = arith.constant 0 : index
    %1 = memref.load %arg4[%c0_1] : memref<1xi32, #tpu.memory_space<smem>>
    %c0_2 = arith.constant 0 : index
    %c0_3 = arith.constant 0 : index
    %2 = vector.load %arg0[%c0_2, %c0_3] : memref<64x128xf32, #tpu.memory_space<vmem>>, vector<64x128xf32>
    %c0_4 = arith.constant 0 : index
    %c0_5 = arith.constant 0 : index
    %3 = vector.load %arg11[%c0_4, %c0_5] : memref<64x128xf32, #tpu.memory_space<vmem>>, vector<64x128xf32>
    tpu.vector_store %arg11[%c0_4, %c0_5], %2 {strides = array<i32>} : memref<64x128xf32, #tpu.memory_space<vmem>>, vector<64x128xf32>,
    %cst = arith.constant 1.000000e+00 : f32
    %4 = vector.broadcast %cst : f32 to vector<64x128xf32>
    %c0_6 = arith.constant 0 : index
    %c0_7 = arith.constant 0 : index
    %5 = vector.load %arg8[%c0_6, %c0_7] : memref<64x128xf32, #tpu.memory_space<vmem>>, vector<64x128xf32>
    tpu.vector_store %arg8[%c0_6, %c0_7], %4 {strides = array<i32>} : memref<64x128xf32, #tpu.memory_space<vmem>>, vector<64x128xf32>,
    %c0_8 = arith.constant 0 : index
    %c0_9 = arith.constant 0 : index
    %c0_10 = arith.constant 0 : index
    %6 = vector.load %arg6[%c0_8, %c0_9, %c0_10] : memref<2x128x512xf32, #tpu.memory_space<vmem>>, vector<1x128x512xf32>
    %7 = vector.shape_cast %6 : vector<1x128x512xf32> to vector<128x512xf32>
    %c0_11 = arith.constant 0 : index
    %c0_12 = arith.constant 0 : index
    %8 = vector.load %arg11[%c0_11, %c0_12] : memref<64x128xf32, #tpu.memory_space<vmem>>, vector<64x128xf32>
    %c0_13 = arith.constant 0 : index
    %c0_14 = arith.constant 0 : index
    %c0_15 = arith.constant 0 : index
    %9 = vector.load %arg5[%c0_13, %c0_14, %c0_15] : memref<2x128x512xf32, #tpu.memory_space<vmem>>, vector<1x128x512xf32>
    %10 = vector.shape_cast %9 : vector<1x128x512xf32> to vector<128x512xf32>
    %cst_16 = arith.constant dense<0.000000e+00> : vector<64x512xf32>
    %11 = tpu.matmul %8, %10, %cst_16 {dimension_numbers = #tpu.dot_dimension_numbers<[1], [0], [0], [1], [0, 0, 1, 1], [], []>} : vector<64x128xf32>, vector<128x512xf32>, vector<64x512xf32> -> vector<64x512xf32>
    %c0_17 = arith.constant 0 : index
    %c0_18 = arith.constant 0 : index
    %c0_19 = arith.constant 0 : index
    %12 = vector.load %arg7[%c0_17, %c0_18, %c0_19] : memref<2x1x512xf32, #tpu.memory_space<vmem>>, vector<1x1x512xf32>
    %13 = vector.shape_cast %12 : vector<1x1x512xf32> to vector<1x512xf32>
    %14 = vector.broadcast %13 : vector<1x512xf32> to vector<64x512xf32>
    %15 = arith.addf %11, %14 : vector<64x512xf32>
    %c0_20 = arith.constant 0 : index
    %c0_21 = arith.constant 0 : index
    %16 = vector.load %arg12[%c0_20, %c0_21] : memref<64x512xf32, #tpu.memory_space<vmem>>, vector<64x512xf32>
    tpu.vector_store %arg12[%c0_20, %c0_21], %15 {strides = array<i32>} : memref<64x512xf32, #tpu.memory_space<vmem>>, vector<64x512xf32>,
    %c0_22 = arith.constant 0 : index
    %c0_23 = arith.constant 0 : index
    %c0_24 = arith.constant 0 : index
    %17 = vector.load %arg1[%c0_22, %c0_23, %c0_24] : memref<2x8x128xf32, #tpu.memory_space<vmem>>, vector<1x8x128xf32>
    %18 = vector.shape_cast %17 : vector<1x8x128xf32> to vector<8x128xf32>
    %c0_25 = arith.constant 0 : index
    %c0_26 = arith.constant 0 : index
    %19 = vector.load %arg13[%c0_25, %c0_26] : memref<8x128xf32, #tpu.memory_space<vmem>>, vector<8x128xf32>
    tpu.vector_store %arg13[%c0_25, %c0_26], %18 {strides = array<i32>} : memref<8x128xf32, #tpu.memory_space<vmem>>, vector<8x128xf32>,
    %c0_27 = arith.constant 0 : index
    %c0_28 = arith.constant 0 : index
    %c0_29 = arith.constant 0 : index
    %20 = vector.load %arg2[%c0_27, %c0_28, %c0_29] : memref<2x8x128xf32, #tpu.memory_space<vmem>>, vector<1x8x128xf32>
    %21 = vector.shape_cast %20 : vector<1x8x128xf32> to vector<8x128xf32>
    %c0_30 = arith.constant 0 : index
    %c0_31 = arith.constant 0 : index
    %22 = vector.load %arg14[%c0_30, %c0_31] : memref<8x128xf32, #tpu.memory_space<vmem>>, vector<8x128xf32>
    tpu.vector_store %arg14[%c0_30, %c0_31], %21 {strides = array<i32>} : memref<8x128xf32, #tpu.memory_space<vmem>>, vector<8x128xf32>,
    %c0_i32 = arith.constant 0 : i32
    %23 = arith.cmpi slt, %c0_i32, %1 : i32
    %24 = arith.extui %23 : i1 to i32
    %c0_i32_32 = arith.constant 0 : i32
    %25 = arith.cmpi ne, %24, %c0_i32_32 : i32
    scf.if %25 {
      %c8_i32_100 = arith.constant 8 : i32
      %104 = arith.muli %c0_i32, %c8_i32_100 : i32
      %c0_101 = arith.constant 0 : index
      %c0_102 = arith.constant 0 : index
      %105 = vector.load %arg13[%c0_101, %c0_102] : memref<8x128xf32, #tpu.memory_space<vmem>>, vector<8x128xf32>
      %c0_103 = arith.constant 0 : index
      %c0_104 = arith.constant 0 : index
      %106 = vector.load %arg14[%c0_103, %c0_104] : memref<8x128xf32, #tpu.memory_space<vmem>>, vector<8x128xf32>
      %107 = arith.index_cast %104 : i32 to index
      %c0_105 = arith.constant 0 : index
      %108 = vector.load %arg12[%107, %c0_105] : memref<64x512xf32, #tpu.memory_space<vmem>>, vector<8x512xf32>
      %cst_106 = arith.constant dense<0.000000e+00> : vector<8x512xf32>
      %109 = tpu.matmul %105, %7, %cst_106 {dimension_numbers = #tpu.dot_dimension_numbers<[1], [0], [0], [1], [0, 0, 1, 1], [], []>} : vector<8x128xf32>, vector<128x512xf32>, vector<8x512xf32> -> vector<8x512xf32>
      %110 = arith.addf %108, %109 : vector<8x512xf32>
      %111 = vector.extract_strided_slice %110 {offsets = [0, 0], sizes = [8, 128], strides = [1, 1]} : vector<8x512xf32> to vector<8x128xf32>
      %112 = arith.negf %111 : vector<8x128xf32>
      %113 = math.exp %112 : vector<8x128xf32>
      %cst_107 = arith.constant 1.000000e+00 : f32
      %114 = vector.broadcast %cst_107 : f32 to vector<8x128xf32>
      %115 = arith.addf %114, %113 : vector<8x128xf32>
      %116 = arith.divf %114, %115 : vector<8x128xf32>
      %117 = vector.extract_strided_slice %110 {offsets = [0, 128], sizes = [8, 128], strides = [1, 1]} : vector<8x512xf32> to vector<8x128xf32>
      %118 = arith.negf %117 : vector<8x128xf32>
      %119 = math.exp %118 : vector<8x128xf32>
      %cst_108 = arith.constant 1.000000e+00 : f32
      %120 = vector.broadcast %cst_108 : f32 to vector<8x128xf32>
      %121 = arith.addf %120, %119 : vector<8x128xf32>
      %122 = arith.divf %120, %121 : vector<8x128xf32>
      %123 = vector.extract_strided_slice %110 {offsets = [0, 256], sizes = [8, 128], strides = [1, 1]} : vector<8x512xf32> to vector<8x128xf32>
      %124 = math.tanh %123 : vector<8x128xf32>
      %125 = vector.extract_strided_slice %110 {offsets = [0, 384], sizes = [8, 128], strides = [1, 1]} : vector<8x512xf32> to vector<8x128xf32>
      %126 = arith.negf %125 : vector<8x128xf32>
      %127 = math.exp %126 : vector<8x128xf32>
      %cst_109 = arith.constant 1.000000e+00 : f32
      %128 = vector.broadcast %cst_109 : f32 to vector<8x128xf32>
      %129 = arith.addf %128, %127 : vector<8x128xf32>
      %130 = arith.divf %128, %129 : vector<8x128xf32>
      %131 = arith.mulf %122, %106 : vector<8x128xf32>
      %132 = arith.mulf %116, %124 : vector<8x128xf32>
      %133 = arith.addf %131, %132 : vector<8x128xf32>
      %134 = math.tanh %133 : vector<8x128xf32>
      %135 = arith.mulf %130, %134 : vector<8x128xf32>
      %136 = vector.broadcast %c0_i32 : i32 to vector<8x1xi32>
      %137 = arith.cmpi slt, %136, %0 : vector<8x1xi32>
      %138 = vector.shape_cast %137 : vector<8x1xi1> to vector<8x1xi1>
      %139 = vector.broadcast %138 : vector<8x1xi1> to vector<8x128xi1>
      %140 = arith.select %139, %135, %105 : vector<8x128xi1>, vector<8x128xf32>
      %c0_110 = arith.constant 0 : index
      %c0_111 = arith.constant 0 : index
      %141 = vector.load %arg13[%c0_110, %c0_111] : memref<8x128xf32, #tpu.memory_space<vmem>>, vector<8x128xf32>
      tpu.vector_store %arg13[%c0_110, %c0_111], %140 {strides = array<i32>} : memref<8x128xf32, #tpu.memory_space<vmem>>, vector<8x128xf32>,
      %142 = vector.shape_cast %137 : vector<8x1xi1> to vector<8x1xi1>
      %143 = vector.broadcast %142 : vector<8x1xi1> to vector<8x128xi1>
      %144 = arith.select %143, %133, %106 : vector<8x128xi1>, vector<8x128xf32>
      %c0_112 = arith.constant 0 : index
      %c0_113 = arith.constant 0 : index
      %145 = vector.load %arg14[%c0_112, %c0_113] : memref<8x128xf32, #tpu.memory_space<vmem>>, vector<8x128xf32>
      tpu.vector_store %arg14[%c0_112, %c0_113], %144 {strides = array<i32>} : memref<8x128xf32, #tpu.memory_space<vmem>>, vector<8x128xf32>,
      %146 = arith.index_cast %104 : i32 to index
      %c0_114 = arith.constant 0 : index
      %147 = vector.load %arg11[%146, %c0_114] : memref<64x128xf32, #tpu.memory_space<vmem>>, vector<8x128xf32>
      tpu.vector_store %arg11[%146, %c0_114], %135 {strides = array<i32>} : memref<64x128xf32, #tpu.memory_space<vmem>>, vector<8x128xf32>,
    } else {
    }
    %c1_i32 = arith.constant 1 : i32
    %26 = arith.cmpi slt, %c1_i32, %1 : i32
    %27 = arith.extui %26 : i1 to i32
    %c0_i32_33 = arith.constant 0 : i32
    %28 = arith.cmpi ne, %27, %c0_i32_33 : i32
    scf.if %28 {
      %c8_i32_100 = arith.constant 8 : i32
      %104 = arith.muli %c1_i32, %c8_i32_100 : i32
      %c0_101 = arith.constant 0 : index
      %c0_102 = arith.constant 0 : index
      %105 = vector.load %arg13[%c0_101, %c0_102] : memref<8x128xf32, #tpu.memory_space<vmem>>, vector<8x128xf32>
      %c0_103 = arith.constant 0 : index
      %c0_104 = arith.constant 0 : index
      %106 = vector.load %arg14[%c0_103, %c0_104] : memref<8x128xf32, #tpu.memory_space<vmem>>, vector<8x128xf32>
      %107 = arith.index_cast %104 : i32 to index
      %c0_105 = arith.constant 0 : index
      %108 = vector.load %arg12[%107, %c0_105] : memref<64x512xf32, #tpu.memory_space<vmem>>, vector<8x512xf32>
      %cst_106 = arith.constant dense<0.000000e+00> : vector<8x512xf32>
      %109 = tpu.matmul %105, %7, %cst_106 {dimension_numbers = #tpu.dot_dimension_numbers<[1], [0], [0], [1], [0, 0, 1, 1], [], []>} : vector<8x128xf32>, vector<128x512xf32>, vector<8x512xf32> -> vector<8x512xf32>
      %110 = arith.addf %108, %109 : vector<8x512xf32>
      %111 = vector.extract_strided_slice %110 {offsets = [0, 0], sizes = [8, 128], strides = [1, 1]} : vector<8x512xf32> to vector<8x128xf32>
      %112 = arith.negf %111 : vector<8x128xf32>
      %113 = math.exp %112 : vector<8x128xf32>
      %cst_107 = arith.constant 1.000000e+00 : f32
      %114 = vector.broadcast %cst_107 : f32 to vector<8x128xf32>
      %115 = arith.addf %114, %113 : vector<8x128xf32>
      %116 = arith.divf %114, %115 : vector<8x128xf32>
      %117 = vector.extract_strided_slice %110 {offsets = [0, 128], sizes = [8, 128], strides = [1, 1]} : vector<8x512xf32> to vector<8x128xf32>
      %118 = arith.negf %117 : vector<8x128xf32>
      %119 = math.exp %118 : vector<8x128xf32>
      %cst_108 = arith.constant 1.000000e+00 : f32
      %120 = vector.broadcast %cst_108 : f32 to vector<8x128xf32>
      %121 = arith.addf %120, %119 : vector<8x128xf32>
      %122 = arith.divf %120, %121 : vector<8x128xf32>
      %123 = vector.extract_strided_slice %110 {offsets = [0, 256], sizes = [8, 128], strides = [1, 1]} : vector<8x512xf32> to vector<8x128xf32>
      %124 = math.tanh %123 : vector<8x128xf32>
      %125 = vector.extract_strided_slice %110 {offsets = [0, 384], sizes = [8, 128], strides = [1, 1]} : vector<8x512xf32> to vector<8x128xf32>
      %126 = arith.negf %125 : vector<8x128xf32>
      %127 = math.exp %126 : vector<8x128xf32>
      %cst_109 = arith.constant 1.000000e+00 : f32
      %128 = vector.broadcast %cst_109 : f32 to vector<8x128xf32>
      %129 = arith.addf %128, %127 : vector<8x128xf32>
      %130 = arith.divf %128, %129 : vector<8x128xf32>
      %131 = arith.mulf %122, %106 : vector<8x128xf32>
      %132 = arith.mulf %116, %124 : vector<8x128xf32>
      %133 = arith.addf %131, %132 : vector<8x128xf32>
      %134 = math.tanh %133 : vector<8x128xf32>
      %135 = arith.mulf %130, %134 : vector<8x128xf32>
      %136 = vector.broadcast %c1_i32 : i32 to vector<8x1xi32>
      %137 = arith.cmpi slt, %136, %0 : vector<8x1xi32>
      %138 = vector.shape_cast %137 : vector<8x1xi1> to vector<8x1xi1>
      %139 = vector.broadcast %138 : vector<8x1xi1> to vector<8x128xi1>
      %140 = arith.select %139, %135, %105 : vector<8x128xi1>, vector<8x128xf32>
      %c0_110 = arith.constant 0 : index
      %c0_111 = arith.constant 0 : index
      %141 = vector.load %arg13[%c0_110, %c0_111] : memref<8x128xf32, #tpu.memory_space<vmem>>, vector<8x128xf32>
      tpu.vector_store %arg13[%c0_110, %c0_111], %140 {strides = array<i32>} : memref<8x128xf32, #tpu.memory_space<vmem>>, vector<8x128xf32>,
      %142 = vector.shape_cast %137 : vector<8x1xi1> to vector<8x1xi1>
      %143 = vector.broadcast %142 : vector<8x1xi1> to vector<8x128xi1>
      %144 = arith.select %143, %133, %106 : vector<8x128xi1>, vector<8x128xf32>
      %c0_112 = arith.constant 0 : index
      %c0_113 = arith.constant 0 : index
      %145 = vector.load %arg14[%c0_112, %c0_113] : memref<8x128xf32, #tpu.memory_space<vmem>>, vector<8x128xf32>
      tpu.vector_store %arg14[%c0_112, %c0_113], %144 {strides = array<i32>} : memref<8x128xf32, #tpu.memory_space<vmem>>, vector<8x128xf32>,
      %146 = arith.index_cast %104 : i32 to index
      %c0_114 = arith.constant 0 : index
      %147 = vector.load %arg11[%146, %c0_114] : memref<64x128xf32, #tpu.memory_space<vmem>>, vector<8x128xf32>
      tpu.vector_store %arg11[%146, %c0_114], %135 {strides = array<i32>} : memref<64x128xf32, #tpu.memory_space<vmem>>, vector<8x128xf32>,
    } else {
    }
    %c2_i32 = arith.constant 2 : i32
    %29 = arith.cmpi slt, %c2_i32, %1 : i32
    %30 = arith.extui %29 : i1 to i32
    %c0_i32_34 = arith.constant 0 : i32
    %31 = arith.cmpi ne, %30, %c0_i32_34 : i32
    scf.if %31 {
      %c8_i32_100 = arith.constant 8 : i32
      %104 = arith.muli %c2_i32, %c8_i32_100 : i32
      %c0_101 = arith.constant 0 : index
      %c0_102 = arith.constant 0 : index
      %105 = vector.load %arg13[%c0_101, %c0_102] : memref<8x128xf32, #tpu.memory_space<vmem>>, vector<8x128xf32>
      %c0_103 = arith.constant 0 : index
      %c0_104 = arith.constant 0 : index
      %106 = vector.load %arg14[%c0_103, %c0_104] : memref<8x128xf32, #tpu.memory_space<vmem>>, vector<8x128xf32>
      %107 = arith.index_cast %104 : i32 to index
      %c0_105 = arith.constant 0 : index
      %108 = vector.load %arg12[%107, %c0_105] : memref<64x512xf32, #tpu.memory_space<vmem>>, vector<8x512xf32>
      %cst_106 = arith.constant dense<0.000000e+00> : vector<8x512xf32>
      %109 = tpu.matmul %105, %7, %cst_106 {dimension_numbers = #tpu.dot_dimension_numbers<[1], [0], [0], [1], [0, 0, 1, 1], [], []>} : vector<8x128xf32>, vector<128x512xf32>, vector<8x512xf32> -> vector<8x512xf32>
      %110 = arith.addf %108, %109 : vector<8x512xf32>
      %111 = vector.extract_strided_slice %110 {offsets = [0, 0], sizes = [8, 128], strides = [1, 1]} : vector<8x512xf32> to vector<8x128xf32>
      %112 = arith.negf %111 : vector<8x128xf32>
      %113 = math.exp %112 : vector<8x128xf32>
      %cst_107 = arith.constant 1.000000e+00 : f32
      %114 = vector.broadcast %cst_107 : f32 to vector<8x128xf32>
      %115 = arith.addf %114, %113 : vector<8x128xf32>
      %116 = arith.divf %114, %115 : vector<8x128xf32>
      %117 = vector.extract_strided_slice %110 {offsets = [0, 128], sizes = [8, 128], strides = [1, 1]} : vector<8x512xf32> to vector<8x128xf32>
      %118 = arith.negf %117 : vector<8x128xf32>
      %119 = math.exp %118 : vector<8x128xf32>
      %cst_108 = arith.constant 1.000000e+00 : f32
      %120 = vector.broadcast %cst_108 : f32 to vector<8x128xf32>
      %121 = arith.addf %120, %119 : vector<8x128xf32>
      %122 = arith.divf %120, %121 : vector<8x128xf32>
      %123 = vector.extract_strided_slice %110 {offsets = [0, 256], sizes = [8, 128], strides = [1, 1]} : vector<8x512xf32> to vector<8x128xf32>
      %124 = math.tanh %123 : vector<8x128xf32>
      %125 = vector.extract_strided_slice %110 {offsets = [0, 384], sizes = [8, 128], strides = [1, 1]} : vector<8x512xf32> to vector<8x128xf32>
      %126 = arith.negf %125 : vector<8x128xf32>
      %127 = math.exp %126 : vector<8x128xf32>
      %cst_109 = arith.constant 1.000000e+00 : f32
      %128 = vector.broadcast %cst_109 : f32 to vector<8x128xf32>
      %129 = arith.addf %128, %127 : vector<8x128xf32>
      %130 = arith.divf %128, %129 : vector<8x128xf32>
      %131 = arith.mulf %122, %106 : vector<8x128xf32>
      %132 = arith.mulf %116, %124 : vector<8x128xf32>
      %133 = arith.addf %131, %132 : vector<8x128xf32>
      %134 = math.tanh %133 : vector<8x128xf32>
      %135 = arith.mulf %130, %134 : vector<8x128xf32>
      %136 = vector.broadcast %c2_i32 : i32 to vector<8x1xi32>
      %137 = arith.cmpi slt, %136, %0 : vector<8x1xi32>
      %138 = vector.shape_cast %137 : vector<8x1xi1> to vector<8x1xi1>
      %139 = vector.broadcast %138 : vector<8x1xi1> to vector<8x128xi1>
      %140 = arith.select %139, %135, %105 : vector<8x128xi1>, vector<8x128xf32>
      %c0_110 = arith.constant 0 : index
      %c0_111 = arith.constant 0 : index
      %141 = vector.load %arg13[%c0_110, %c0_111] : memref<8x128xf32, #tpu.memory_space<vmem>>, vector<8x128xf32>
      tpu.vector_store %arg13[%c0_110, %c0_111], %140 {strides = array<i32>} : memref<8x128xf32, #tpu.memory_space<vmem>>, vector<8x128xf32>,
      %142 = vector.shape_cast %137 : vector<8x1xi1> to vector<8x1xi1>
      %143 = vector.broadcast %142 : vector<8x1xi1> to vector<8x128xi1>
      %144 = arith.select %143, %133, %106 : vector<8x128xi1>, vector<8x128xf32>
      %c0_112 = arith.constant 0 : index
      %c0_113 = arith.constant 0 : index
      %145 = vector.load %arg14[%c0_112, %c0_113] : memref<8x128xf32, #tpu.memory_space<vmem>>, vector<8x128xf32>
      tpu.vector_store %arg14[%c0_112, %c0_113], %144 {strides = array<i32>} : memref<8x128xf32, #tpu.memory_space<vmem>>, vector<8x128xf32>,
      %146 = arith.index_cast %104 : i32 to index
      %c0_114 = arith.constant 0 : index
      %147 = vector.load %arg11[%146, %c0_114] : memref<64x128xf32, #tpu.memory_space<vmem>>, vector<8x128xf32>
      tpu.vector_store %arg11[%146, %c0_114], %135 {strides = array<i32>} : memref<64x128xf32, #tpu.memory_space<vmem>>, vector<8x128xf32>,
    } else {
    }
    %c3_i32 = arith.constant 3 : i32
    %32 = arith.cmpi slt, %c3_i32, %1 : i32
    %33 = arith.extui %32 : i1 to i32
    %c0_i32_35 = arith.constant 0 : i32
    %34 = arith.cmpi ne, %33, %c0_i32_35 : i32
    scf.if %34 {
      %c8_i32_100 = arith.constant 8 : i32
      %104 = arith.muli %c3_i32, %c8_i32_100 : i32
      %c0_101 = arith.constant 0 : index
      %c0_102 = arith.constant 0 : index
      %105 = vector.load %arg13[%c0_101, %c0_102] : memref<8x128xf32, #tpu.memory_space<vmem>>, vector<8x128xf32>
      %c0_103 = arith.constant 0 : index
      %c0_104 = arith.constant 0 : index
      %106 = vector.load %arg14[%c0_103, %c0_104] : memref<8x128xf32, #tpu.memory_space<vmem>>, vector<8x128xf32>
      %107 = arith.index_cast %104 : i32 to index
      %c0_105 = arith.constant 0 : index
      %108 = vector.load %arg12[%107, %c0_105] : memref<64x512xf32, #tpu.memory_space<vmem>>, vector<8x512xf32>
      %cst_106 = arith.constant dense<0.000000e+00> : vector<8x512xf32>
      %109 = tpu.matmul %105, %7, %cst_106 {dimension_numbers = #tpu.dot_dimension_numbers<[1], [0], [0], [1], [0, 0, 1, 1], [], []>} : vector<8x128xf32>, vector<128x512xf32>, vector<8x512xf32> -> vector<8x512xf32>
      %110 = arith.addf %108, %109 : vector<8x512xf32>
      %111 = vector.extract_strided_slice %110 {offsets = [0, 0], sizes = [8, 128], strides = [1, 1]} : vector<8x512xf32> to vector<8x128xf32>
      %112 = arith.negf %111 : vector<8x128xf32>
      %113 = math.exp %112 : vector<8x128xf32>
      %cst_107 = arith.constant 1.000000e+00 : f32
      %114 = vector.broadcast %cst_107 : f32 to vector<8x128xf32>
      %115 = arith.addf %114, %113 : vector<8x128xf32>
      %116 = arith.divf %114, %115 : vector<8x128xf32>
      %117 = vector.extract_strided_slice %110 {offsets = [0, 128], sizes = [8, 128], strides = [1, 1]} : vector<8x512xf32> to vector<8x128xf32>
      %118 = arith.negf %117 : vector<8x128xf32>
      %119 = math.exp %118 : vector<8x128xf32>
      %cst_108 = arith.constant 1.000000e+00 : f32
      %120 = vector.broadcast %cst_108 : f32 to vector<8x128xf32>
      %121 = arith.addf %120, %119 : vector<8x128xf32>
      %122 = arith.divf %120, %121 : vector<8x128xf32>
      %123 = vector.extract_strided_slice %110 {offsets = [0, 256], sizes = [8, 128], strides = [1, 1]} : vector<8x512xf32> to vector<8x128xf32>
      %124 = math.tanh %123 : vector<8x128xf32>
      %125 = vector.extract_strided_slice %110 {offsets = [0, 384], sizes = [8, 128], strides = [1, 1]} : vector<8x512xf32> to vector<8x128xf32>
      %126 = arith.negf %125 : vector<8x128xf32>
      %127 = math.exp %126 : vector<8x128xf32>
      %cst_109 = arith.constant 1.000000e+00 : f32
      %128 = vector.broadcast %cst_109 : f32 to vector<8x128xf32>
      %129 = arith.addf %128, %127 : vector<8x128xf32>
      %130 = arith.divf %128, %129 : vector<8x128xf32>
      %131 = arith.mulf %122, %106 : vector<8x128xf32>
      %132 = arith.mulf %116, %124 : vector<8x128xf32>
      %133 = arith.addf %131, %132 : vector<8x128xf32>
      %134 = math.tanh %133 : vector<8x128xf32>
      %135 = arith.mulf %130, %134 : vector<8x128xf32>
      %136 = vector.broadcast %c3_i32 : i32 to vector<8x1xi32>
      %137 = arith.cmpi slt, %136, %0 : vector<8x1xi32>
      %138 = vector.shape_cast %137 : vector<8x1xi1> to vector<8x1xi1>
      %139 = vector.broadcast %138 : vector<8x1xi1> to vector<8x128xi1>
      %140 = arith.select %139, %135, %105 : vector<8x128xi1>, vector<8x128xf32>
      %c0_110 = arith.constant 0 : index
      %c0_111 = arith.constant 0 : index
      %141 = vector.load %arg13[%c0_110, %c0_111] : memref<8x128xf32, #tpu.memory_space<vmem>>, vector<8x128xf32>
      tpu.vector_store %arg13[%c0_110, %c0_111], %140 {strides = array<i32>} : memref<8x128xf32, #tpu.memory_space<vmem>>, vector<8x128xf32>,
      %142 = vector.shape_cast %137 : vector<8x1xi1> to vector<8x1xi1>
      %143 = vector.broadcast %142 : vector<8x1xi1> to vector<8x128xi1>
      %144 = arith.select %143, %133, %106 : vector<8x128xi1>, vector<8x128xf32>
      %c0_112 = arith.constant 0 : index
      %c0_113 = arith.constant 0 : index
      %145 = vector.load %arg14[%c0_112, %c0_113] : memref<8x128xf32, #tpu.memory_space<vmem>>, vector<8x128xf32>
      tpu.vector_store %arg14[%c0_112, %c0_113], %144 {strides = array<i32>} : memref<8x128xf32, #tpu.memory_space<vmem>>, vector<8x128xf32>,
      %146 = arith.index_cast %104 : i32 to index
      %c0_114 = arith.constant 0 : index
      %147 = vector.load %arg11[%146, %c0_114] : memref<64x128xf32, #tpu.memory_space<vmem>>, vector<8x128xf32>
      tpu.vector_store %arg11[%146, %c0_114], %135 {strides = array<i32>} : memref<64x128xf32, #tpu.memory_space<vmem>>, vector<8x128xf32>,
    } else {
    }
    %c4_i32 = arith.constant 4 : i32
    %35 = arith.cmpi slt, %c4_i32, %1 : i32
    %36 = arith.extui %35 : i1 to i32
    %c0_i32_36 = arith.constant 0 : i32
    %37 = arith.cmpi ne, %36, %c0_i32_36 : i32
    scf.if %37 {
      %c8_i32_100 = arith.constant 8 : i32
      %104 = arith.muli %c4_i32, %c8_i32_100 : i32
      %c0_101 = arith.constant 0 : index
      %c0_102 = arith.constant 0 : index
      %105 = vector.load %arg13[%c0_101, %c0_102] : memref<8x128xf32, #tpu.memory_space<vmem>>, vector<8x128xf32>
      %c0_103 = arith.constant 0 : index
      %c0_104 = arith.constant 0 : index
      %106 = vector.load %arg14[%c0_103, %c0_104] : memref<8x128xf32, #tpu.memory_space<vmem>>, vector<8x128xf32>
      %107 = arith.index_cast %104 : i32 to index
      %c0_105 = arith.constant 0 : index
      %108 = vector.load %arg12[%107, %c0_105] : memref<64x512xf32, #tpu.memory_space<vmem>>, vector<8x512xf32>
      %cst_106 = arith.constant dense<0.000000e+00> : vector<8x512xf32>
      %109 = tpu.matmul %105, %7, %cst_106 {dimension_numbers = #tpu.dot_dimension_numbers<[1], [0], [0], [1], [0, 0, 1, 1], [], []>} : vector<8x128xf32>, vector<128x512xf32>, vector<8x512xf32> -> vector<8x512xf32>
      %110 = arith.addf %108, %109 : vector<8x512xf32>
      %111 = vector.extract_strided_slice %110 {offsets = [0, 0], sizes = [8, 128], strides = [1, 1]} : vector<8x512xf32> to vector<8x128xf32>
      %112 = arith.negf %111 : vector<8x128xf32>
      %113 = math.exp %112 : vector<8x128xf32>
      %cst_107 = arith.constant 1.000000e+00 : f32
      %114 = vector.broadcast %cst_107 : f32 to vector<8x128xf32>
      %115 = arith.addf %114, %113 : vector<8x128xf32>
      %116 = arith.divf %114, %115 : vector<8x128xf32>
      %117 = vector.extract_strided_slice %110 {offsets = [0, 128], sizes = [8, 128], strides = [1, 1]} : vector<8x512xf32> to vector<8x128xf32>
      %118 = arith.negf %117 : vector<8x128xf32>
      %119 = math.exp %118 : vector<8x128xf32>
      %cst_108 = arith.constant 1.000000e+00 : f32
      %120 = vector.broadcast %cst_108 : f32 to vector<8x128xf32>
      %121 = arith.addf %120, %119 : vector<8x128xf32>
      %122 = arith.divf %120, %121 : vector<8x128xf32>
      %123 = vector.extract_strided_slice %110 {offsets = [0, 256], sizes = [8, 128], strides = [1, 1]} : vector<8x512xf32> to vector<8x128xf32>
      %124 = math.tanh %123 : vector<8x128xf32>
      %125 = vector.extract_strided_slice %110 {offsets = [0, 384], sizes = [8, 128], strides = [1, 1]} : vector<8x512xf32> to vector<8x128xf32>
      %126 = arith.negf %125 : vector<8x128xf32>
      %127 = math.exp %126 : vector<8x128xf32>
      %cst_109 = arith.constant 1.000000e+00 : f32
      %128 = vector.broadcast %cst_109 : f32 to vector<8x128xf32>
      %129 = arith.addf %128, %127 : vector<8x128xf32>
      %130 = arith.divf %128, %129 : vector<8x128xf32>
      %131 = arith.mulf %122, %106 : vector<8x128xf32>
      %132 = arith.mulf %116, %124 : vector<8x128xf32>
      %133 = arith.addf %131, %132 : vector<8x128xf32>
      %134 = math.tanh %133 : vector<8x128xf32>
      %135 = arith.mulf %130, %134 : vector<8x128xf32>
      %136 = vector.broadcast %c4_i32 : i32 to vector<8x1xi32>
      %137 = arith.cmpi slt, %136, %0 : vector<8x1xi32>
      %138 = vector.shape_cast %137 : vector<8x1xi1> to vector<8x1xi1>
      %139 = vector.broadcast %138 : vector<8x1xi1> to vector<8x128xi1>
      %140 = arith.select %139, %135, %105 : vector<8x128xi1>, vector<8x128xf32>
      %c0_110 = arith.constant 0 : index
      %c0_111 = arith.constant 0 : index
      %141 = vector.load %arg13[%c0_110, %c0_111] : memref<8x128xf32, #tpu.memory_space<vmem>>, vector<8x128xf32>
      tpu.vector_store %arg13[%c0_110, %c0_111], %140 {strides = array<i32>} : memref<8x128xf32, #tpu.memory_space<vmem>>, vector<8x128xf32>,
      %142 = vector.shape_cast %137 : vector<8x1xi1> to vector<8x1xi1>
      %143 = vector.broadcast %142 : vector<8x1xi1> to vector<8x128xi1>
      %144 = arith.select %143, %133, %106 : vector<8x128xi1>, vector<8x128xf32>
      %c0_112 = arith.constant 0 : index
      %c0_113 = arith.constant 0 : index
      %145 = vector.load %arg14[%c0_112, %c0_113] : memref<8x128xf32, #tpu.memory_space<vmem>>, vector<8x128xf32>
      tpu.vector_store %arg14[%c0_112, %c0_113], %144 {strides = array<i32>} : memref<8x128xf32, #tpu.memory_space<vmem>>, vector<8x128xf32>,
      %146 = arith.index_cast %104 : i32 to index
      %c0_114 = arith.constant 0 : index
      %147 = vector.load %arg11[%146, %c0_114] : memref<64x128xf32, #tpu.memory_space<vmem>>, vector<8x128xf32>
      tpu.vector_store %arg11[%146, %c0_114], %135 {strides = array<i32>} : memref<64x128xf32, #tpu.memory_space<vmem>>, vector<8x128xf32>,
    } else {
    }
    %c5_i32 = arith.constant 5 : i32
    %38 = arith.cmpi slt, %c5_i32, %1 : i32
    %39 = arith.extui %38 : i1 to i32
    %c0_i32_37 = arith.constant 0 : i32
    %40 = arith.cmpi ne, %39, %c0_i32_37 : i32
    scf.if %40 {
      %c8_i32_100 = arith.constant 8 : i32
      %104 = arith.muli %c5_i32, %c8_i32_100 : i32
      %c0_101 = arith.constant 0 : index
      %c0_102 = arith.constant 0 : index
      %105 = vector.load %arg13[%c0_101, %c0_102] : memref<8x128xf32, #tpu.memory_space<vmem>>, vector<8x128xf32>
      %c0_103 = arith.constant 0 : index
      %c0_104 = arith.constant 0 : index
      %106 = vector.load %arg14[%c0_103, %c0_104] : memref<8x128xf32, #tpu.memory_space<vmem>>, vector<8x128xf32>
      %107 = arith.index_cast %104 : i32 to index
      %c0_105 = arith.constant 0 : index
      %108 = vector.load %arg12[%107, %c0_105] : memref<64x512xf32, #tpu.memory_space<vmem>>, vector<8x512xf32>
      %cst_106 = arith.constant dense<0.000000e+00> : vector<8x512xf32>
      %109 = tpu.matmul %105, %7, %cst_106 {dimension_numbers = #tpu.dot_dimension_numbers<[1], [0], [0], [1], [0, 0, 1, 1], [], []>} : vector<8x128xf32>, vector<128x512xf32>, vector<8x512xf32> -> vector<8x512xf32>
      %110 = arith.addf %108, %109 : vector<8x512xf32>
      %111 = vector.extract_strided_slice %110 {offsets = [0, 0], sizes = [8, 128], strides = [1, 1]} : vector<8x512xf32> to vector<8x128xf32>
      %112 = arith.negf %111 : vector<8x128xf32>
      %113 = math.exp %112 : vector<8x128xf32>
      %cst_107 = arith.constant 1.000000e+00 : f32
      %114 = vector.broadcast %cst_107 : f32 to vector<8x128xf32>
      %115 = arith.addf %114, %113 : vector<8x128xf32>
      %116 = arith.divf %114, %115 : vector<8x128xf32>
      %117 = vector.extract_strided_slice %110 {offsets = [0, 128], sizes = [8, 128], strides = [1, 1]} : vector<8x512xf32> to vector<8x128xf32>
      %118 = arith.negf %117 : vector<8x128xf32>
      %119 = math.exp %118 : vector<8x128xf32>
      %cst_108 = arith.constant 1.000000e+00 : f32
      %120 = vector.broadcast %cst_108 : f32 to vector<8x128xf32>
      %121 = arith.addf %120, %119 : vector<8x128xf32>
      %122 = arith.divf %120, %121 : vector<8x128xf32>
      %123 = vector.extract_strided_slice %110 {offsets = [0, 256], sizes = [8, 128], strides = [1, 1]} : vector<8x512xf32> to vector<8x128xf32>
      %124 = math.tanh %123 : vector<8x128xf32>
      %125 = vector.extract_strided_slice %110 {offsets = [0, 384], sizes = [8, 128], strides = [1, 1]} : vector<8x512xf32> to vector<8x128xf32>
      %126 = arith.negf %125 : vector<8x128xf32>
      %127 = math.exp %126 : vector<8x128xf32>
      %cst_109 = arith.constant 1.000000e+00 : f32
      %128 = vector.broadcast %cst_109 : f32 to vector<8x128xf32>
      %129 = arith.addf %128, %127 : vector<8x128xf32>
      %130 = arith.divf %128, %129 : vector<8x128xf32>
      %131 = arith.mulf %122, %106 : vector<8x128xf32>
      %132 = arith.mulf %116, %124 : vector<8x128xf32>
      %133 = arith.addf %131, %132 : vector<8x128xf32>
      %134 = math.tanh %133 : vector<8x128xf32>
      %135 = arith.mulf %130, %134 : vector<8x128xf32>
      %136 = vector.broadcast %c5_i32 : i32 to vector<8x1xi32>
      %137 = arith.cmpi slt, %136, %0 : vector<8x1xi32>
      %138 = vector.shape_cast %137 : vector<8x1xi1> to vector<8x1xi1>
      %139 = vector.broadcast %138 : vector<8x1xi1> to vector<8x128xi1>
      %140 = arith.select %139, %135, %105 : vector<8x128xi1>, vector<8x128xf32>
      %c0_110 = arith.constant 0 : index
      %c0_111 = arith.constant 0 : index
      %141 = vector.load %arg13[%c0_110, %c0_111] : memref<8x128xf32, #tpu.memory_space<vmem>>, vector<8x128xf32>
      tpu.vector_store %arg13[%c0_110, %c0_111], %140 {strides = array<i32>} : memref<8x128xf32, #tpu.memory_space<vmem>>, vector<8x128xf32>,
      %142 = vector.shape_cast %137 : vector<8x1xi1> to vector<8x1xi1>
      %143 = vector.broadcast %142 : vector<8x1xi1> to vector<8x128xi1>
      %144 = arith.select %143, %133, %106 : vector<8x128xi1>, vector<8x128xf32>
      %c0_112 = arith.constant 0 : index
      %c0_113 = arith.constant 0 : index
      %145 = vector.load %arg14[%c0_112, %c0_113] : memref<8x128xf32, #tpu.memory_space<vmem>>, vector<8x128xf32>
      tpu.vector_store %arg14[%c0_112, %c0_113], %144 {strides = array<i32>} : memref<8x128xf32, #tpu.memory_space<vmem>>, vector<8x128xf32>,
      %146 = arith.index_cast %104 : i32 to index
      %c0_114 = arith.constant 0 : index
      %147 = vector.load %arg11[%146, %c0_114] : memref<64x128xf32, #tpu.memory_space<vmem>>, vector<8x128xf32>
      tpu.vector_store %arg11[%146, %c0_114], %135 {strides = array<i32>} : memref<64x128xf32, #tpu.memory_space<vmem>>, vector<8x128xf32>,
    } else {
    }
    %c6_i32 = arith.constant 6 : i32
    %41 = arith.cmpi slt, %c6_i32, %1 : i32
    %42 = arith.extui %41 : i1 to i32
    %c0_i32_38 = arith.constant 0 : i32
    %43 = arith.cmpi ne, %42, %c0_i32_38 : i32
    scf.if %43 {
      %c8_i32_100 = arith.constant 8 : i32
      %104 = arith.muli %c6_i32, %c8_i32_100 : i32
      %c0_101 = arith.constant 0 : index
      %c0_102 = arith.constant 0 : index
      %105 = vector.load %arg13[%c0_101, %c0_102] : memref<8x128xf32, #tpu.memory_space<vmem>>, vector<8x128xf32>
      %c0_103 = arith.constant 0 : index
      %c0_104 = arith.constant 0 : index
      %106 = vector.load %arg14[%c0_103, %c0_104] : memref<8x128xf32, #tpu.memory_space<vmem>>, vector<8x128xf32>
      %107 = arith.index_cast %104 : i32 to index
      %c0_105 = arith.constant 0 : index
      %108 = vector.load %arg12[%107, %c0_105] : memref<64x512xf32, #tpu.memory_space<vmem>>, vector<8x512xf32>
      %cst_106 = arith.constant dense<0.000000e+00> : vector<8x512xf32>
      %109 = tpu.matmul %105, %7, %cst_106 {dimension_numbers = #tpu.dot_dimension_numbers<[1], [0], [0], [1], [0, 0, 1, 1], [], []>} : vector<8x128xf32>, vector<128x512xf32>, vector<8x512xf32> -> vector<8x512xf32>
      %110 = arith.addf %108, %109 : vector<8x512xf32>
      %111 = vector.extract_strided_slice %110 {offsets = [0, 0], sizes = [8, 128], strides = [1, 1]} : vector<8x512xf32> to vector<8x128xf32>
      %112 = arith.negf %111 : vector<8x128xf32>
      %113 = math.exp %112 : vector<8x128xf32>
      %cst_107 = arith.constant 1.000000e+00 : f32
      %114 = vector.broadcast %cst_107 : f32 to vector<8x128xf32>
      %115 = arith.addf %114, %113 : vector<8x128xf32>
      %116 = arith.divf %114, %115 : vector<8x128xf32>
      %117 = vector.extract_strided_slice %110 {offsets = [0, 128], sizes = [8, 128], strides = [1, 1]} : vector<8x512xf32> to vector<8x128xf32>
      %118 = arith.negf %117 : vector<8x128xf32>
      %119 = math.exp %118 : vector<8x128xf32>
      %cst_108 = arith.constant 1.000000e+00 : f32
      %120 = vector.broadcast %cst_108 : f32 to vector<8x128xf32>
      %121 = arith.addf %120, %119 : vector<8x128xf32>
      %122 = arith.divf %120, %121 : vector<8x128xf32>
      %123 = vector.extract_strided_slice %110 {offsets = [0, 256], sizes = [8, 128], strides = [1, 1]} : vector<8x512xf32> to vector<8x128xf32>
      %124 = math.tanh %123 : vector<8x128xf32>
      %125 = vector.extract_strided_slice %110 {offsets = [0, 384], sizes = [8, 128], strides = [1, 1]} : vector<8x512xf32> to vector<8x128xf32>
      %126 = arith.negf %125 : vector<8x128xf32>
      %127 = math.exp %126 : vector<8x128xf32>
      %cst_109 = arith.constant 1.000000e+00 : f32
      %128 = vector.broadcast %cst_109 : f32 to vector<8x128xf32>
      %129 = arith.addf %128, %127 : vector<8x128xf32>
      %130 = arith.divf %128, %129 : vector<8x128xf32>
      %131 = arith.mulf %122, %106 : vector<8x128xf32>
      %132 = arith.mulf %116, %124 : vector<8x128xf32>
      %133 = arith.addf %131, %132 : vector<8x128xf32>
      %134 = math.tanh %133 : vector<8x128xf32>
      %135 = arith.mulf %130, %134 : vector<8x128xf32>
      %136 = vector.broadcast %c6_i32 : i32 to vector<8x1xi32>
      %137 = arith.cmpi slt, %136, %0 : vector<8x1xi32>
      %138 = vector.shape_cast %137 : vector<8x1xi1> to vector<8x1xi1>
      %139 = vector.broadcast %138 : vector<8x1xi1> to vector<8x128xi1>
      %140 = arith.select %139, %135, %105 : vector<8x128xi1>, vector<8x128xf32>
      %c0_110 = arith.constant 0 : index
      %c0_111 = arith.constant 0 : index
      %141 = vector.load %arg13[%c0_110, %c0_111] : memref<8x128xf32, #tpu.memory_space<vmem>>, vector<8x128xf32>
      tpu.vector_store %arg13[%c0_110, %c0_111], %140 {strides = array<i32>} : memref<8x128xf32, #tpu.memory_space<vmem>>, vector<8x128xf32>,
      %142 = vector.shape_cast %137 : vector<8x1xi1> to vector<8x1xi1>
      %143 = vector.broadcast %142 : vector<8x1xi1> to vector<8x128xi1>
      %144 = arith.select %143, %133, %106 : vector<8x128xi1>, vector<8x128xf32>
      %c0_112 = arith.constant 0 : index
      %c0_113 = arith.constant 0 : index
      %145 = vector.load %arg14[%c0_112, %c0_113] : memref<8x128xf32, #tpu.memory_space<vmem>>, vector<8x128xf32>
      tpu.vector_store %arg14[%c0_112, %c0_113], %144 {strides = array<i32>} : memref<8x128xf32, #tpu.memory_space<vmem>>, vector<8x128xf32>,
      %146 = arith.index_cast %104 : i32 to index
      %c0_114 = arith.constant 0 : index
      %147 = vector.load %arg11[%146, %c0_114] : memref<64x128xf32, #tpu.memory_space<vmem>>, vector<8x128xf32>
      tpu.vector_store %arg11[%146, %c0_114], %135 {strides = array<i32>} : memref<64x128xf32, #tpu.memory_space<vmem>>, vector<8x128xf32>,
    } else {
    }
    %c7_i32 = arith.constant 7 : i32
    %44 = arith.cmpi slt, %c7_i32, %1 : i32
    %45 = arith.extui %44 : i1 to i32
    %c0_i32_39 = arith.constant 0 : i32
    %46 = arith.cmpi ne, %45, %c0_i32_39 : i32
    scf.if %46 {
      %c8_i32_100 = arith.constant 8 : i32
      %104 = arith.muli %c7_i32, %c8_i32_100 : i32
      %c0_101 = arith.constant 0 : index
      %c0_102 = arith.constant 0 : index
      %105 = vector.load %arg13[%c0_101, %c0_102] : memref<8x128xf32, #tpu.memory_space<vmem>>, vector<8x128xf32>
      %c0_103 = arith.constant 0 : index
      %c0_104 = arith.constant 0 : index
      %106 = vector.load %arg14[%c0_103, %c0_104] : memref<8x128xf32, #tpu.memory_space<vmem>>, vector<8x128xf32>
      %107 = arith.index_cast %104 : i32 to index
      %c0_105 = arith.constant 0 : index
      %108 = vector.load %arg12[%107, %c0_105] : memref<64x512xf32, #tpu.memory_space<vmem>>, vector<8x512xf32>
      %cst_106 = arith.constant dense<0.000000e+00> : vector<8x512xf32>
      %109 = tpu.matmul %105, %7, %cst_106 {dimension_numbers = #tpu.dot_dimension_numbers<[1], [0], [0], [1], [0, 0, 1, 1], [], []>} : vector<8x128xf32>, vector<128x512xf32>, vector<8x512xf32> -> vector<8x512xf32>
      %110 = arith.addf %108, %109 : vector<8x512xf32>
      %111 = vector.extract_strided_slice %110 {offsets = [0, 0], sizes = [8, 128], strides = [1, 1]} : vector<8x512xf32> to vector<8x128xf32>
      %112 = arith.negf %111 : vector<8x128xf32>
      %113 = math.exp %112 : vector<8x128xf32>
      %cst_107 = arith.constant 1.000000e+00 : f32
      %114 = vector.broadcast %cst_107 : f32 to vector<8x128xf32>
      %115 = arith.addf %114, %113 : vector<8x128xf32>
      %116 = arith.divf %114, %115 : vector<8x128xf32>
      %117 = vector.extract_strided_slice %110 {offsets = [0, 128], sizes = [8, 128], strides = [1, 1]} : vector<8x512xf32> to vector<8x128xf32>
      %118 = arith.negf %117 : vector<8x128xf32>
      %119 = math.exp %118 : vector<8x128xf32>
      %cst_108 = arith.constant 1.000000e+00 : f32
      %120 = vector.broadcast %cst_108 : f32 to vector<8x128xf32>
      %121 = arith.addf %120, %119 : vector<8x128xf32>
      %122 = arith.divf %120, %121 : vector<8x128xf32>
      %123 = vector.extract_strided_slice %110 {offsets = [0, 256], sizes = [8, 128], strides = [1, 1]} : vector<8x512xf32> to vector<8x128xf32>
      %124 = math.tanh %123 : vector<8x128xf32>
      %125 = vector.extract_strided_slice %110 {offsets = [0, 384], sizes = [8, 128], strides = [1, 1]} : vector<8x512xf32> to vector<8x128xf32>
      %126 = arith.negf %125 : vector<8x128xf32>
      %127 = math.exp %126 : vector<8x128xf32>
      %cst_109 = arith.constant 1.000000e+00 : f32
      %128 = vector.broadcast %cst_109 : f32 to vector<8x128xf32>
      %129 = arith.addf %128, %127 : vector<8x128xf32>
      %130 = arith.divf %128, %129 : vector<8x128xf32>
      %131 = arith.mulf %122, %106 : vector<8x128xf32>
      %132 = arith.mulf %116, %124 : vector<8x128xf32>
      %133 = arith.addf %131, %132 : vector<8x128xf32>
      %134 = math.tanh %133 : vector<8x128xf32>
      %135 = arith.mulf %130, %134 : vector<8x128xf32>
      %136 = vector.broadcast %c7_i32 : i32 to vector<8x1xi32>
      %137 = arith.cmpi slt, %136, %0 : vector<8x1xi32>
      %138 = vector.shape_cast %137 : vector<8x1xi1> to vector<8x1xi1>
      %139 = vector.broadcast %138 : vector<8x1xi1> to vector<8x128xi1>
      %140 = arith.select %139, %135, %105 : vector<8x128xi1>, vector<8x128xf32>
      %c0_110 = arith.constant 0 : index
      %c0_111 = arith.constant 0 : index
      %141 = vector.load %arg13[%c0_110, %c0_111] : memref<8x128xf32, #tpu.memory_space<vmem>>, vector<8x128xf32>
      tpu.vector_store %arg13[%c0_110, %c0_111], %140 {strides = array<i32>} : memref<8x128xf32, #tpu.memory_space<vmem>>, vector<8x128xf32>,
      %142 = vector.shape_cast %137 : vector<8x1xi1> to vector<8x1xi1>
      %143 = vector.broadcast %142 : vector<8x1xi1> to vector<8x128xi1>
      %144 = arith.select %143, %133, %106 : vector<8x128xi1>, vector<8x128xf32>
      %c0_112 = arith.constant 0 : index
      %c0_113 = arith.constant 0 : index
      %145 = vector.load %arg14[%c0_112, %c0_113] : memref<8x128xf32, #tpu.memory_space<vmem>>, vector<8x128xf32>
      tpu.vector_store %arg14[%c0_112, %c0_113], %144 {strides = array<i32>} : memref<8x128xf32, #tpu.memory_space<vmem>>, vector<8x128xf32>,
      %146 = arith.index_cast %104 : i32 to index
      %c0_114 = arith.constant 0 : index
      %147 = vector.load %arg11[%146, %c0_114] : memref<64x128xf32, #tpu.memory_space<vmem>>, vector<8x128xf32>
      tpu.vector_store %arg11[%146, %c0_114], %135 {strides = array<i32>} : memref<64x128xf32, #tpu.memory_space<vmem>>, vector<8x128xf32>,
    } else {
    }
    %c8_i32 = arith.constant 8 : i32
    %c0_40 = arith.constant 0 : index
    %c0_41 = arith.constant 0 : index
    %47 = vector.load %arg13[%c0_40, %c0_41] : memref<8x128xf32, #tpu.memory_space<vmem>>, vector<8x128xf32>
    %c0_42 = arith.constant 0 : index
    %c0_43 = arith.constant 0 : index
    %c0_44 = arith.constant 0 : index
    %48 = vector.load %arg9[%c0_42, %c0_43, %c0_44] : memref<2x8x128xf32, #tpu.memory_space<vmem>>, vector<1x8x128xf32>
    %49 = vector.shape_cast %48 : vector<1x8x128xf32> to vector<8x128xf32>
    %50 = vector.shape_cast %47 : vector<8x128xf32> to vector<1x8x128xf32>
    tpu.vector_store %arg9[%c0_42, %c0_43, %c0_44], %50 {strides = array<i32>} : memref<2x8x128xf32, #tpu.memory_space<vmem>>, vector<1x8x128xf32>,
    %c0_45 = arith.constant 0 : index
    %c0_46 = arith.constant 0 : index
    %51 = vector.load %arg14[%c0_45, %c0_46] : memref<8x128xf32, #tpu.memory_space<vmem>>, vector<8x128xf32>
    %c0_47 = arith.constant 0 : index
    %c0_48 = arith.constant 0 : index
    %c0_49 = arith.constant 0 : index
    %52 = vector.load %arg10[%c0_47, %c0_48, %c0_49] : memref<2x8x128xf32, #tpu.memory_space<vmem>>, vector<1x8x128xf32>
    %53 = vector.shape_cast %52 : vector<1x8x128xf32> to vector<8x128xf32>
    %54 = vector.shape_cast %51 : vector<8x128xf32> to vector<1x8x128xf32>
    tpu.vector_store %arg10[%c0_47, %c0_48, %c0_49], %54 {strides = array<i32>} : memref<2x8x128xf32, #tpu.memory_space<vmem>>, vector<1x8x128xf32>,
    %c1 = arith.constant 1 : index
    %c0_50 = arith.constant 0 : index
    %c0_51 = arith.constant 0 : index
    %55 = vector.load %arg6[%c1, %c0_50, %c0_51] : memref<2x128x512xf32, #tpu.memory_space<vmem>>, vector<1x128x512xf32>
    %56 = vector.shape_cast %55 : vector<1x128x512xf32> to vector<128x512xf32>
    %c0_52 = arith.constant 0 : index
    %c0_53 = arith.constant 0 : index
    %57 = vector.load %arg11[%c0_52, %c0_53] : memref<64x128xf32, #tpu.memory_space<vmem>>, vector<64x128xf32>
    %c1_54 = arith.constant 1 : index
    %c0_55 = arith.constant 0 : index
    %c0_56 = arith.constant 0 : index
    %58 = vector.load %arg5[%c1_54, %c0_55, %c0_56] : memref<2x128x512xf32, #tpu.memory_space<vmem>>, vector<1x128x512xf32>
    %59 = vector.shape_cast %58 : vector<1x128x512xf32> to vector<128x512xf32>
    %cst_57 = arith.constant dense<0.000000e+00> : vector<64x512xf32>
    %60 = tpu.matmul %57, %59, %cst_57 {dimension_numbers = #tpu.dot_dimension_numbers<[1], [0], [0], [1], [0, 0, 1, 1], [], []>} : vector<64x128xf32>, vector<128x512xf32>, vector<64x512xf32> -> vector<64x512xf32>
    %c1_58 = arith.constant 1 : index
    %c0_59 = arith.constant 0 : index
    %c0_60 = arith.constant 0 : index
    %61 = vector.load %arg7[%c1_58, %c0_59, %c0_60] : memref<2x1x512xf32, #tpu.memory_space<vmem>>, vector<1x1x512xf32>
    %62 = vector.shape_cast %61 : vector<1x1x512xf32> to vector<1x512xf32>
    %63 = vector.broadcast %62 : vector<1x512xf32> to vector<64x512xf32>
    %64 = arith.addf %60, %63 : vector<64x512xf32>
    %c0_61 = arith.constant 0 : index
    %c0_62 = arith.constant 0 : index
    %65 = vector.load %arg12[%c0_61, %c0_62] : memref<64x512xf32, #tpu.memory_space<vmem>>, vector<64x512xf32>
    tpu.vector_store %arg12[%c0_61, %c0_62], %64 {strides = array<i32>} : memref<64x512xf32, #tpu.memory_space<vmem>>, vector<64x512xf32>,
    %c1_63 = arith.constant 1 : index
    %c0_64 = arith.constant 0 : index
    %c0_65 = arith.constant 0 : index
    %66 = vector.load %arg1[%c1_63, %c0_64, %c0_65] : memref<2x8x128xf32, #tpu.memory_space<vmem>>, vector<1x8x128xf32>
    %67 = vector.shape_cast %66 : vector<1x8x128xf32> to vector<8x128xf32>
    %c0_66 = arith.constant 0 : index
    %c0_67 = arith.constant 0 : index
    %68 = vector.load %arg13[%c0_66, %c0_67] : memref<8x128xf32, #tpu.memory_space<vmem>>, vector<8x128xf32>
    tpu.vector_store %arg13[%c0_66, %c0_67], %67 {strides = array<i32>} : memref<8x128xf32, #tpu.memory_space<vmem>>, vector<8x128xf32>,
    %c1_68 = arith.constant 1 : index
    %c0_69 = arith.constant 0 : index
    %c0_70 = arith.constant 0 : index
    %69 = vector.load %arg2[%c1_68, %c0_69, %c0_70] : memref<2x8x128xf32, #tpu.memory_space<vmem>>, vector<1x8x128xf32>
    %70 = vector.shape_cast %69 : vector<1x8x128xf32> to vector<8x128xf32>
    %c0_71 = arith.constant 0 : index
    %c0_72 = arith.constant 0 : index
    %71 = vector.load %arg14[%c0_71, %c0_72] : memref<8x128xf32, #tpu.memory_space<vmem>>, vector<8x128xf32>
    tpu.vector_store %arg14[%c0_71, %c0_72], %70 {strides = array<i32>} : memref<8x128xf32, #tpu.memory_space<vmem>>, vector<8x128xf32>,
    %c0_i32_73 = arith.constant 0 : i32
    %72 = arith.cmpi slt, %c0_i32_73, %1 : i32
    %73 = arith.extui %72 : i1 to i32
    %c0_i32_74 = arith.constant 0 : i32
    %74 = arith.cmpi ne, %73, %c0_i32_74 : i32
    scf.if %74 {
      %c8_i32_100 = arith.constant 8 : i32
      %104 = arith.muli %c0_i32_73, %c8_i32_100 : i32
      %c0_101 = arith.constant 0 : index
      %c0_102 = arith.constant 0 : index
      %105 = vector.load %arg13[%c0_101, %c0_102] : memref<8x128xf32, #tpu.memory_space<vmem>>, vector<8x128xf32>
      %c0_103 = arith.constant 0 : index
      %c0_104 = arith.constant 0 : index
      %106 = vector.load %arg14[%c0_103, %c0_104] : memref<8x128xf32, #tpu.memory_space<vmem>>, vector<8x128xf32>
      %107 = arith.index_cast %104 : i32 to index
      %c0_105 = arith.constant 0 : index
      %108 = vector.load %arg12[%107, %c0_105] : memref<64x512xf32, #tpu.memory_space<vmem>>, vector<8x512xf32>
      %cst_106 = arith.constant dense<0.000000e+00> : vector<8x512xf32>
      %109 = tpu.matmul %105, %56, %cst_106 {dimension_numbers = #tpu.dot_dimension_numbers<[1], [0], [0], [1], [0, 0, 1, 1], [], []>} : vector<8x128xf32>, vector<128x512xf32>, vector<8x512xf32> -> vector<8x512xf32>
      %110 = arith.addf %108, %109 : vector<8x512xf32>
      %111 = vector.extract_strided_slice %110 {offsets = [0, 0], sizes = [8, 128], strides = [1, 1]} : vector<8x512xf32> to vector<8x128xf32>
      %112 = arith.negf %111 : vector<8x128xf32>
      %113 = math.exp %112 : vector<8x128xf32>
      %cst_107 = arith.constant 1.000000e+00 : f32
      %114 = vector.broadcast %cst_107 : f32 to vector<8x128xf32>
      %115 = arith.addf %114, %113 : vector<8x128xf32>
      %116 = arith.divf %114, %115 : vector<8x128xf32>
      %117 = vector.extract_strided_slice %110 {offsets = [0, 128], sizes = [8, 128], strides = [1, 1]} : vector<8x512xf32> to vector<8x128xf32>
      %118 = arith.negf %117 : vector<8x128xf32>
      %119 = math.exp %118 : vector<8x128xf32>
      %cst_108 = arith.constant 1.000000e+00 : f32
      %120 = vector.broadcast %cst_108 : f32 to vector<8x128xf32>
      %121 = arith.addf %120, %119 : vector<8x128xf32>
      %122 = arith.divf %120, %121 : vector<8x128xf32>
      %123 = vector.extract_strided_slice %110 {offsets = [0, 256], sizes = [8, 128], strides = [1, 1]} : vector<8x512xf32> to vector<8x128xf32>
      %124 = math.tanh %123 : vector<8x128xf32>
      %125 = vector.extract_strided_slice %110 {offsets = [0, 384], sizes = [8, 128], strides = [1, 1]} : vector<8x512xf32> to vector<8x128xf32>
      %126 = arith.negf %125 : vector<8x128xf32>
      %127 = math.exp %126 : vector<8x128xf32>
      %cst_109 = arith.constant 1.000000e+00 : f32
      %128 = vector.broadcast %cst_109 : f32 to vector<8x128xf32>
      %129 = arith.addf %128, %127 : vector<8x128xf32>
      %130 = arith.divf %128, %129 : vector<8x128xf32>
      %131 = arith.mulf %122, %106 : vector<8x128xf32>
      %132 = arith.mulf %116, %124 : vector<8x128xf32>
      %133 = arith.addf %131, %132 : vector<8x128xf32>
      %134 = math.tanh %133 : vector<8x128xf32>
      %135 = arith.mulf %130, %134 : vector<8x128xf32>
      %136 = vector.broadcast %c0_i32_73 : i32 to vector<8x1xi32>
      %137 = arith.cmpi slt, %136, %0 : vector<8x1xi32>
      %138 = vector.shape_cast %137 : vector<8x1xi1> to vector<8x1xi1>
      %139 = vector.broadcast %138 : vector<8x1xi1> to vector<8x128xi1>
      %140 = arith.select %139, %135, %105 : vector<8x128xi1>, vector<8x128xf32>
      %c0_110 = arith.constant 0 : index
      %c0_111 = arith.constant 0 : index
      %141 = vector.load %arg13[%c0_110, %c0_111] : memref<8x128xf32, #tpu.memory_space<vmem>>, vector<8x128xf32>
      tpu.vector_store %arg13[%c0_110, %c0_111], %140 {strides = array<i32>} : memref<8x128xf32, #tpu.memory_space<vmem>>, vector<8x128xf32>,
      %142 = vector.shape_cast %137 : vector<8x1xi1> to vector<8x1xi1>
      %143 = vector.broadcast %142 : vector<8x1xi1> to vector<8x128xi1>
      %144 = arith.select %143, %133, %106 : vector<8x128xi1>, vector<8x128xf32>
      %c0_112 = arith.constant 0 : index
      %c0_113 = arith.constant 0 : index
      %145 = vector.load %arg14[%c0_112, %c0_113] : memref<8x128xf32, #tpu.memory_space<vmem>>, vector<8x128xf32>
      tpu.vector_store %arg14[%c0_112, %c0_113], %144 {strides = array<i32>} : memref<8x128xf32, #tpu.memory_space<vmem>>, vector<8x128xf32>,
      %cst_114 = arith.constant 1.000000e+00 : f32
      %146 = vector.broadcast %cst_114 : f32 to vector<8x128xf32>
      %147 = vector.shape_cast %137 : vector<8x1xi1> to vector<8x1xi1>
      %148 = vector.broadcast %147 : vector<8x1xi1> to vector<8x128xi1>
      %149 = arith.select %148, %135, %146 : vector<8x128xi1>, vector<8x128xf32>
      %150 = arith.index_cast %104 : i32 to index
      %c0_115 = arith.constant 0 : index
      %151 = vector.load %arg8[%150, %c0_115] : memref<64x128xf32, #tpu.memory_space<vmem>>, vector<8x128xf32>
      tpu.vector_store %arg8[%150, %c0_115], %149 {strides = array<i32>} : memref<64x128xf32, #tpu.memory_space<vmem>>, vector<8x128xf32>,
    } else {
    }
    %c1_i32_75 = arith.constant 1 : i32
    %75 = arith.cmpi slt, %c1_i32_75, %1 : i32
    %76 = arith.extui %75 : i1 to i32
    %c0_i32_76 = arith.constant 0 : i32
    %77 = arith.cmpi ne, %76, %c0_i32_76 : i32
    scf.if %77 {
      %c8_i32_100 = arith.constant 8 : i32
      %104 = arith.muli %c1_i32_75, %c8_i32_100 : i32
      %c0_101 = arith.constant 0 : index
      %c0_102 = arith.constant 0 : index
      %105 = vector.load %arg13[%c0_101, %c0_102] : memref<8x128xf32, #tpu.memory_space<vmem>>, vector<8x128xf32>
      %c0_103 = arith.constant 0 : index
      %c0_104 = arith.constant 0 : index
      %106 = vector.load %arg14[%c0_103, %c0_104] : memref<8x128xf32, #tpu.memory_space<vmem>>, vector<8x128xf32>
      %107 = arith.index_cast %104 : i32 to index
      %c0_105 = arith.constant 0 : index
      %108 = vector.load %arg12[%107, %c0_105] : memref<64x512xf32, #tpu.memory_space<vmem>>, vector<8x512xf32>
      %cst_106 = arith.constant dense<0.000000e+00> : vector<8x512xf32>
      %109 = tpu.matmul %105, %56, %cst_106 {dimension_numbers = #tpu.dot_dimension_numbers<[1], [0], [0], [1], [0, 0, 1, 1], [], []>} : vector<8x128xf32>, vector<128x512xf32>, vector<8x512xf32> -> vector<8x512xf32>
      %110 = arith.addf %108, %109 : vector<8x512xf32>
      %111 = vector.extract_strided_slice %110 {offsets = [0, 0], sizes = [8, 128], strides = [1, 1]} : vector<8x512xf32> to vector<8x128xf32>
      %112 = arith.negf %111 : vector<8x128xf32>
      %113 = math.exp %112 : vector<8x128xf32>
      %cst_107 = arith.constant 1.000000e+00 : f32
      %114 = vector.broadcast %cst_107 : f32 to vector<8x128xf32>
      %115 = arith.addf %114, %113 : vector<8x128xf32>
      %116 = arith.divf %114, %115 : vector<8x128xf32>
      %117 = vector.extract_strided_slice %110 {offsets = [0, 128], sizes = [8, 128], strides = [1, 1]} : vector<8x512xf32> to vector<8x128xf32>
      %118 = arith.negf %117 : vector<8x128xf32>
      %119 = math.exp %118 : vector<8x128xf32>
      %cst_108 = arith.constant 1.000000e+00 : f32
      %120 = vector.broadcast %cst_108 : f32 to vector<8x128xf32>
      %121 = arith.addf %120, %119 : vector<8x128xf32>
      %122 = arith.divf %120, %121 : vector<8x128xf32>
      %123 = vector.extract_strided_slice %110 {offsets = [0, 256], sizes = [8, 128], strides = [1, 1]} : vector<8x512xf32> to vector<8x128xf32>
      %124 = math.tanh %123 : vector<8x128xf32>
      %125 = vector.extract_strided_slice %110 {offsets = [0, 384], sizes = [8, 128], strides = [1, 1]} : vector<8x512xf32> to vector<8x128xf32>
      %126 = arith.negf %125 : vector<8x128xf32>
      %127 = math.exp %126 : vector<8x128xf32>
      %cst_109 = arith.constant 1.000000e+00 : f32
      %128 = vector.broadcast %cst_109 : f32 to vector<8x128xf32>
      %129 = arith.addf %128, %127 : vector<8x128xf32>
      %130 = arith.divf %128, %129 : vector<8x128xf32>
      %131 = arith.mulf %122, %106 : vector<8x128xf32>
      %132 = arith.mulf %116, %124 : vector<8x128xf32>
      %133 = arith.addf %131, %132 : vector<8x128xf32>
      %134 = math.tanh %133 : vector<8x128xf32>
      %135 = arith.mulf %130, %134 : vector<8x128xf32>
      %136 = vector.broadcast %c1_i32_75 : i32 to vector<8x1xi32>
      %137 = arith.cmpi slt, %136, %0 : vector<8x1xi32>
      %138 = vector.shape_cast %137 : vector<8x1xi1> to vector<8x1xi1>
      %139 = vector.broadcast %138 : vector<8x1xi1> to vector<8x128xi1>
      %140 = arith.select %139, %135, %105 : vector<8x128xi1>, vector<8x128xf32>
      %c0_110 = arith.constant 0 : index
      %c0_111 = arith.constant 0 : index
      %141 = vector.load %arg13[%c0_110, %c0_111] : memref<8x128xf32, #tpu.memory_space<vmem>>, vector<8x128xf32>
      tpu.vector_store %arg13[%c0_110, %c0_111], %140 {strides = array<i32>} : memref<8x128xf32, #tpu.memory_space<vmem>>, vector<8x128xf32>,
      %142 = vector.shape_cast %137 : vector<8x1xi1> to vector<8x1xi1>
      %143 = vector.broadcast %142 : vector<8x1xi1> to vector<8x128xi1>
      %144 = arith.select %143, %133, %106 : vector<8x128xi1>, vector<8x128xf32>
      %c0_112 = arith.constant 0 : index
      %c0_113 = arith.constant 0 : index
      %145 = vector.load %arg14[%c0_112, %c0_113] : memref<8x128xf32, #tpu.memory_space<vmem>>, vector<8x128xf32>
      tpu.vector_store %arg14[%c0_112, %c0_113], %144 {strides = array<i32>} : memref<8x128xf32, #tpu.memory_space<vmem>>, vector<8x128xf32>,
      %cst_114 = arith.constant 1.000000e+00 : f32
      %146 = vector.broadcast %cst_114 : f32 to vector<8x128xf32>
      %147 = vector.shape_cast %137 : vector<8x1xi1> to vector<8x1xi1>
      %148 = vector.broadcast %147 : vector<8x1xi1> to vector<8x128xi1>
      %149 = arith.select %148, %135, %146 : vector<8x128xi1>, vector<8x128xf32>
      %150 = arith.index_cast %104 : i32 to index
      %c0_115 = arith.constant 0 : index
      %151 = vector.load %arg8[%150, %c0_115] : memref<64x128xf32, #tpu.memory_space<vmem>>, vector<8x128xf32>
      tpu.vector_store %arg8[%150, %c0_115], %149 {strides = array<i32>} : memref<64x128xf32, #tpu.memory_space<vmem>>, vector<8x128xf32>,
    } else {
    }
    %c2_i32_77 = arith.constant 2 : i32
    %78 = arith.cmpi slt, %c2_i32_77, %1 : i32
    %79 = arith.extui %78 : i1 to i32
    %c0_i32_78 = arith.constant 0 : i32
    %80 = arith.cmpi ne, %79, %c0_i32_78 : i32
    scf.if %80 {
      %c8_i32_100 = arith.constant 8 : i32
      %104 = arith.muli %c2_i32_77, %c8_i32_100 : i32
      %c0_101 = arith.constant 0 : index
      %c0_102 = arith.constant 0 : index
      %105 = vector.load %arg13[%c0_101, %c0_102] : memref<8x128xf32, #tpu.memory_space<vmem>>, vector<8x128xf32>
      %c0_103 = arith.constant 0 : index
      %c0_104 = arith.constant 0 : index
      %106 = vector.load %arg14[%c0_103, %c0_104] : memref<8x128xf32, #tpu.memory_space<vmem>>, vector<8x128xf32>
      %107 = arith.index_cast %104 : i32 to index
      %c0_105 = arith.constant 0 : index
      %108 = vector.load %arg12[%107, %c0_105] : memref<64x512xf32, #tpu.memory_space<vmem>>, vector<8x512xf32>
      %cst_106 = arith.constant dense<0.000000e+00> : vector<8x512xf32>
      %109 = tpu.matmul %105, %56, %cst_106 {dimension_numbers = #tpu.dot_dimension_numbers<[1], [0], [0], [1], [0, 0, 1, 1], [], []>} : vector<8x128xf32>, vector<128x512xf32>, vector<8x512xf32> -> vector<8x512xf32>
      %110 = arith.addf %108, %109 : vector<8x512xf32>
      %111 = vector.extract_strided_slice %110 {offsets = [0, 0], sizes = [8, 128], strides = [1, 1]} : vector<8x512xf32> to vector<8x128xf32>
      %112 = arith.negf %111 : vector<8x128xf32>
      %113 = math.exp %112 : vector<8x128xf32>
      %cst_107 = arith.constant 1.000000e+00 : f32
      %114 = vector.broadcast %cst_107 : f32 to vector<8x128xf32>
      %115 = arith.addf %114, %113 : vector<8x128xf32>
      %116 = arith.divf %114, %115 : vector<8x128xf32>
      %117 = vector.extract_strided_slice %110 {offsets = [0, 128], sizes = [8, 128], strides = [1, 1]} : vector<8x512xf32> to vector<8x128xf32>
      %118 = arith.negf %117 : vector<8x128xf32>
      %119 = math.exp %118 : vector<8x128xf32>
      %cst_108 = arith.constant 1.000000e+00 : f32
      %120 = vector.broadcast %cst_108 : f32 to vector<8x128xf32>
      %121 = arith.addf %120, %119 : vector<8x128xf32>
      %122 = arith.divf %120, %121 : vector<8x128xf32>
      %123 = vector.extract_strided_slice %110 {offsets = [0, 256], sizes = [8, 128], strides = [1, 1]} : vector<8x512xf32> to vector<8x128xf32>
      %124 = math.tanh %123 : vector<8x128xf32>
      %125 = vector.extract_strided_slice %110 {offsets = [0, 384], sizes = [8, 128], strides = [1, 1]} : vector<8x512xf32> to vector<8x128xf32>
      %126 = arith.negf %125 : vector<8x128xf32>
      %127 = math.exp %126 : vector<8x128xf32>
      %cst_109 = arith.constant 1.000000e+00 : f32
      %128 = vector.broadcast %cst_109 : f32 to vector<8x128xf32>
      %129 = arith.addf %128, %127 : vector<8x128xf32>
      %130 = arith.divf %128, %129 : vector<8x128xf32>
      %131 = arith.mulf %122, %106 : vector<8x128xf32>
      %132 = arith.mulf %116, %124 : vector<8x128xf32>
      %133 = arith.addf %131, %132 : vector<8x128xf32>
      %134 = math.tanh %133 : vector<8x128xf32>
      %135 = arith.mulf %130, %134 : vector<8x128xf32>
      %136 = vector.broadcast %c2_i32_77 : i32 to vector<8x1xi32>
      %137 = arith.cmpi slt, %136, %0 : vector<8x1xi32>
      %138 = vector.shape_cast %137 : vector<8x1xi1> to vector<8x1xi1>
      %139 = vector.broadcast %138 : vector<8x1xi1> to vector<8x128xi1>
      %140 = arith.select %139, %135, %105 : vector<8x128xi1>, vector<8x128xf32>
      %c0_110 = arith.constant 0 : index
      %c0_111 = arith.constant 0 : index
      %141 = vector.load %arg13[%c0_110, %c0_111] : memref<8x128xf32, #tpu.memory_space<vmem>>, vector<8x128xf32>
      tpu.vector_store %arg13[%c0_110, %c0_111], %140 {strides = array<i32>} : memref<8x128xf32, #tpu.memory_space<vmem>>, vector<8x128xf32>,
      %142 = vector.shape_cast %137 : vector<8x1xi1> to vector<8x1xi1>
      %143 = vector.broadcast %142 : vector<8x1xi1> to vector<8x128xi1>
      %144 = arith.select %143, %133, %106 : vector<8x128xi1>, vector<8x128xf32>
      %c0_112 = arith.constant 0 : index
      %c0_113 = arith.constant 0 : index
      %145 = vector.load %arg14[%c0_112, %c0_113] : memref<8x128xf32, #tpu.memory_space<vmem>>, vector<8x128xf32>
      tpu.vector_store %arg14[%c0_112, %c0_113], %144 {strides = array<i32>} : memref<8x128xf32, #tpu.memory_space<vmem>>, vector<8x128xf32>,
      %cst_114 = arith.constant 1.000000e+00 : f32
      %146 = vector.broadcast %cst_114 : f32 to vector<8x128xf32>
      %147 = vector.shape_cast %137 : vector<8x1xi1> to vector<8x1xi1>
      %148 = vector.broadcast %147 : vector<8x1xi1> to vector<8x128xi1>
      %149 = arith.select %148, %135, %146 : vector<8x128xi1>, vector<8x128xf32>
      %150 = arith.index_cast %104 : i32 to index
      %c0_115 = arith.constant 0 : index
      %151 = vector.load %arg8[%150, %c0_115] : memref<64x128xf32, #tpu.memory_space<vmem>>, vector<8x128xf32>
      tpu.vector_store %arg8[%150, %c0_115], %149 {strides = array<i32>} : memref<64x128xf32, #tpu.memory_space<vmem>>, vector<8x128xf32>,
    } else {
    }
    %c3_i32_79 = arith.constant 3 : i32
    %81 = arith.cmpi slt, %c3_i32_79, %1 : i32
    %82 = arith.extui %81 : i1 to i32
    %c0_i32_80 = arith.constant 0 : i32
    %83 = arith.cmpi ne, %82, %c0_i32_80 : i32
    scf.if %83 {
      %c8_i32_100 = arith.constant 8 : i32
      %104 = arith.muli %c3_i32_79, %c8_i32_100 : i32
      %c0_101 = arith.constant 0 : index
      %c0_102 = arith.constant 0 : index
      %105 = vector.load %arg13[%c0_101, %c0_102] : memref<8x128xf32, #tpu.memory_space<vmem>>, vector<8x128xf32>
      %c0_103 = arith.constant 0 : index
      %c0_104 = arith.constant 0 : index
      %106 = vector.load %arg14[%c0_103, %c0_104] : memref<8x128xf32, #tpu.memory_space<vmem>>, vector<8x128xf32>
      %107 = arith.index_cast %104 : i32 to index
      %c0_105 = arith.constant 0 : index
      %108 = vector.load %arg12[%107, %c0_105] : memref<64x512xf32, #tpu.memory_space<vmem>>, vector<8x512xf32>
      %cst_106 = arith.constant dense<0.000000e+00> : vector<8x512xf32>
      %109 = tpu.matmul %105, %56, %cst_106 {dimension_numbers = #tpu.dot_dimension_numbers<[1], [0], [0], [1], [0, 0, 1, 1], [], []>} : vector<8x128xf32>, vector<128x512xf32>, vector<8x512xf32> -> vector<8x512xf32>
      %110 = arith.addf %108, %109 : vector<8x512xf32>
      %111 = vector.extract_strided_slice %110 {offsets = [0, 0], sizes = [8, 128], strides = [1, 1]} : vector<8x512xf32> to vector<8x128xf32>
      %112 = arith.negf %111 : vector<8x128xf32>
      %113 = math.exp %112 : vector<8x128xf32>
      %cst_107 = arith.constant 1.000000e+00 : f32
      %114 = vector.broadcast %cst_107 : f32 to vector<8x128xf32>
      %115 = arith.addf %114, %113 : vector<8x128xf32>
      %116 = arith.divf %114, %115 : vector<8x128xf32>
      %117 = vector.extract_strided_slice %110 {offsets = [0, 128], sizes = [8, 128], strides = [1, 1]} : vector<8x512xf32> to vector<8x128xf32>
      %118 = arith.negf %117 : vector<8x128xf32>
      %119 = math.exp %118 : vector<8x128xf32>
      %cst_108 = arith.constant 1.000000e+00 : f32
      %120 = vector.broadcast %cst_108 : f32 to vector<8x128xf32>
      %121 = arith.addf %120, %119 : vector<8x128xf32>
      %122 = arith.divf %120, %121 : vector<8x128xf32>
      %123 = vector.extract_strided_slice %110 {offsets = [0, 256], sizes = [8, 128], strides = [1, 1]} : vector<8x512xf32> to vector<8x128xf32>
      %124 = math.tanh %123 : vector<8x128xf32>
      %125 = vector.extract_strided_slice %110 {offsets = [0, 384], sizes = [8, 128], strides = [1, 1]} : vector<8x512xf32> to vector<8x128xf32>
      %126 = arith.negf %125 : vector<8x128xf32>
      %127 = math.exp %126 : vector<8x128xf32>
      %cst_109 = arith.constant 1.000000e+00 : f32
      %128 = vector.broadcast %cst_109 : f32 to vector<8x128xf32>
      %129 = arith.addf %128, %127 : vector<8x128xf32>
      %130 = arith.divf %128, %129 : vector<8x128xf32>
      %131 = arith.mulf %122, %106 : vector<8x128xf32>
      %132 = arith.mulf %116, %124 : vector<8x128xf32>
      %133 = arith.addf %131, %132 : vector<8x128xf32>
      %134 = math.tanh %133 : vector<8x128xf32>
      %135 = arith.mulf %130, %134 : vector<8x128xf32>
      %136 = vector.broadcast %c3_i32_79 : i32 to vector<8x1xi32>
      %137 = arith.cmpi slt, %136, %0 : vector<8x1xi32>
      %138 = vector.shape_cast %137 : vector<8x1xi1> to vector<8x1xi1>
      %139 = vector.broadcast %138 : vector<8x1xi1> to vector<8x128xi1>
      %140 = arith.select %139, %135, %105 : vector<8x128xi1>, vector<8x128xf32>
      %c0_110 = arith.constant 0 : index
      %c0_111 = arith.constant 0 : index
      %141 = vector.load %arg13[%c0_110, %c0_111] : memref<8x128xf32, #tpu.memory_space<vmem>>, vector<8x128xf32>
      tpu.vector_store %arg13[%c0_110, %c0_111], %140 {strides = array<i32>} : memref<8x128xf32, #tpu.memory_space<vmem>>, vector<8x128xf32>,
      %142 = vector.shape_cast %137 : vector<8x1xi1> to vector<8x1xi1>
      %143 = vector.broadcast %142 : vector<8x1xi1> to vector<8x128xi1>
      %144 = arith.select %143, %133, %106 : vector<8x128xi1>, vector<8x128xf32>
      %c0_112 = arith.constant 0 : index
      %c0_113 = arith.constant 0 : index
      %145 = vector.load %arg14[%c0_112, %c0_113] : memref<8x128xf32, #tpu.memory_space<vmem>>, vector<8x128xf32>
      tpu.vector_store %arg14[%c0_112, %c0_113], %144 {strides = array<i32>} : memref<8x128xf32, #tpu.memory_space<vmem>>, vector<8x128xf32>,
      %cst_114 = arith.constant 1.000000e+00 : f32
      %146 = vector.broadcast %cst_114 : f32 to vector<8x128xf32>
      %147 = vector.shape_cast %137 : vector<8x1xi1> to vector<8x1xi1>
      %148 = vector.broadcast %147 : vector<8x1xi1> to vector<8x128xi1>
      %149 = arith.select %148, %135, %146 : vector<8x128xi1>, vector<8x128xf32>
      %150 = arith.index_cast %104 : i32 to index
      %c0_115 = arith.constant 0 : index
      %151 = vector.load %arg8[%150, %c0_115] : memref<64x128xf32, #tpu.memory_space<vmem>>, vector<8x128xf32>
      tpu.vector_store %arg8[%150, %c0_115], %149 {strides = array<i32>} : memref<64x128xf32, #tpu.memory_space<vmem>>, vector<8x128xf32>,
    } else {
    }
    %c4_i32_81 = arith.constant 4 : i32
    %84 = arith.cmpi slt, %c4_i32_81, %1 : i32
    %85 = arith.extui %84 : i1 to i32
    %c0_i32_82 = arith.constant 0 : i32
    %86 = arith.cmpi ne, %85, %c0_i32_82 : i32
    scf.if %86 {
      %c8_i32_100 = arith.constant 8 : i32
      %104 = arith.muli %c4_i32_81, %c8_i32_100 : i32
      %c0_101 = arith.constant 0 : index
      %c0_102 = arith.constant 0 : index
      %105 = vector.load %arg13[%c0_101, %c0_102] : memref<8x128xf32, #tpu.memory_space<vmem>>, vector<8x128xf32>
      %c0_103 = arith.constant 0 : index
      %c0_104 = arith.constant 0 : index
      %106 = vector.load %arg14[%c0_103, %c0_104] : memref<8x128xf32, #tpu.memory_space<vmem>>, vector<8x128xf32>
      %107 = arith.index_cast %104 : i32 to index
      %c0_105 = arith.constant 0 : index
      %108 = vector.load %arg12[%107, %c0_105] : memref<64x512xf32, #tpu.memory_space<vmem>>, vector<8x512xf32>
      %cst_106 = arith.constant dense<0.000000e+00> : vector<8x512xf32>
      %109 = tpu.matmul %105, %56, %cst_106 {dimension_numbers = #tpu.dot_dimension_numbers<[1], [0], [0], [1], [0, 0, 1, 1], [], []>} : vector<8x128xf32>, vector<128x512xf32>, vector<8x512xf32> -> vector<8x512xf32>
      %110 = arith.addf %108, %109 : vector<8x512xf32>
      %111 = vector.extract_strided_slice %110 {offsets = [0, 0], sizes = [8, 128], strides = [1, 1]} : vector<8x512xf32> to vector<8x128xf32>
      %112 = arith.negf %111 : vector<8x128xf32>
      %113 = math.exp %112 : vector<8x128xf32>
      %cst_107 = arith.constant 1.000000e+00 : f32
      %114 = vector.broadcast %cst_107 : f32 to vector<8x128xf32>
      %115 = arith.addf %114, %113 : vector<8x128xf32>
      %116 = arith.divf %114, %115 : vector<8x128xf32>
      %117 = vector.extract_strided_slice %110 {offsets = [0, 128], sizes = [8, 128], strides = [1, 1]} : vector<8x512xf32> to vector<8x128xf32>
      %118 = arith.negf %117 : vector<8x128xf32>
      %119 = math.exp %118 : vector<8x128xf32>
      %cst_108 = arith.constant 1.000000e+00 : f32
      %120 = vector.broadcast %cst_108 : f32 to vector<8x128xf32>
      %121 = arith.addf %120, %119 : vector<8x128xf32>
      %122 = arith.divf %120, %121 : vector<8x128xf32>
      %123 = vector.extract_strided_slice %110 {offsets = [0, 256], sizes = [8, 128], strides = [1, 1]} : vector<8x512xf32> to vector<8x128xf32>
      %124 = math.tanh %123 : vector<8x128xf32>
      %125 = vector.extract_strided_slice %110 {offsets = [0, 384], sizes = [8, 128], strides = [1, 1]} : vector<8x512xf32> to vector<8x128xf32>
      %126 = arith.negf %125 : vector<8x128xf32>
      %127 = math.exp %126 : vector<8x128xf32>
      %cst_109 = arith.constant 1.000000e+00 : f32
      %128 = vector.broadcast %cst_109 : f32 to vector<8x128xf32>
      %129 = arith.addf %128, %127 : vector<8x128xf32>
      %130 = arith.divf %128, %129 : vector<8x128xf32>
      %131 = arith.mulf %122, %106 : vector<8x128xf32>
      %132 = arith.mulf %116, %124 : vector<8x128xf32>
      %133 = arith.addf %131, %132 : vector<8x128xf32>
      %134 = math.tanh %133 : vector<8x128xf32>
      %135 = arith.mulf %130, %134 : vector<8x128xf32>
      %136 = vector.broadcast %c4_i32_81 : i32 to vector<8x1xi32>
      %137 = arith.cmpi slt, %136, %0 : vector<8x1xi32>
      %138 = vector.shape_cast %137 : vector<8x1xi1> to vector<8x1xi1>
      %139 = vector.broadcast %138 : vector<8x1xi1> to vector<8x128xi1>
      %140 = arith.select %139, %135, %105 : vector<8x128xi1>, vector<8x128xf32>
      %c0_110 = arith.constant 0 : index
      %c0_111 = arith.constant 0 : index
      %141 = vector.load %arg13[%c0_110, %c0_111] : memref<8x128xf32, #tpu.memory_space<vmem>>, vector<8x128xf32>
      tpu.vector_store %arg13[%c0_110, %c0_111], %140 {strides = array<i32>} : memref<8x128xf32, #tpu.memory_space<vmem>>, vector<8x128xf32>,
      %142 = vector.shape_cast %137 : vector<8x1xi1> to vector<8x1xi1>
      %143 = vector.broadcast %142 : vector<8x1xi1> to vector<8x128xi1>
      %144 = arith.select %143, %133, %106 : vector<8x128xi1>, vector<8x128xf32>
      %c0_112 = arith.constant 0 : index
      %c0_113 = arith.constant 0 : index
      %145 = vector.load %arg14[%c0_112, %c0_113] : memref<8x128xf32, #tpu.memory_space<vmem>>, vector<8x128xf32>
      tpu.vector_store %arg14[%c0_112, %c0_113], %144 {strides = array<i32>} : memref<8x128xf32, #tpu.memory_space<vmem>>, vector<8x128xf32>,
      %cst_114 = arith.constant 1.000000e+00 : f32
      %146 = vector.broadcast %cst_114 : f32 to vector<8x128xf32>
      %147 = vector.shape_cast %137 : vector<8x1xi1> to vector<8x1xi1>
      %148 = vector.broadcast %147 : vector<8x1xi1> to vector<8x128xi1>
      %149 = arith.select %148, %135, %146 : vector<8x128xi1>, vector<8x128xf32>
      %150 = arith.index_cast %104 : i32 to index
      %c0_115 = arith.constant 0 : index
      %151 = vector.load %arg8[%150, %c0_115] : memref<64x128xf32, #tpu.memory_space<vmem>>, vector<8x128xf32>
      tpu.vector_store %arg8[%150, %c0_115], %149 {strides = array<i32>} : memref<64x128xf32, #tpu.memory_space<vmem>>, vector<8x128xf32>,
    } else {
    }
    %c5_i32_83 = arith.constant 5 : i32
    %87 = arith.cmpi slt, %c5_i32_83, %1 : i32
    %88 = arith.extui %87 : i1 to i32
    %c0_i32_84 = arith.constant 0 : i32
    %89 = arith.cmpi ne, %88, %c0_i32_84 : i32
    scf.if %89 {
      %c8_i32_100 = arith.constant 8 : i32
      %104 = arith.muli %c5_i32_83, %c8_i32_100 : i32
      %c0_101 = arith.constant 0 : index
      %c0_102 = arith.constant 0 : index
      %105 = vector.load %arg13[%c0_101, %c0_102] : memref<8x128xf32, #tpu.memory_space<vmem>>, vector<8x128xf32>
      %c0_103 = arith.constant 0 : index
      %c0_104 = arith.constant 0 : index
      %106 = vector.load %arg14[%c0_103, %c0_104] : memref<8x128xf32, #tpu.memory_space<vmem>>, vector<8x128xf32>
      %107 = arith.index_cast %104 : i32 to index
      %c0_105 = arith.constant 0 : index
      %108 = vector.load %arg12[%107, %c0_105] : memref<64x512xf32, #tpu.memory_space<vmem>>, vector<8x512xf32>
      %cst_106 = arith.constant dense<0.000000e+00> : vector<8x512xf32>
      %109 = tpu.matmul %105, %56, %cst_106 {dimension_numbers = #tpu.dot_dimension_numbers<[1], [0], [0], [1], [0, 0, 1, 1], [], []>} : vector<8x128xf32>, vector<128x512xf32>, vector<8x512xf32> -> vector<8x512xf32>
      %110 = arith.addf %108, %109 : vector<8x512xf32>
      %111 = vector.extract_strided_slice %110 {offsets = [0, 0], sizes = [8, 128], strides = [1, 1]} : vector<8x512xf32> to vector<8x128xf32>
      %112 = arith.negf %111 : vector<8x128xf32>
      %113 = math.exp %112 : vector<8x128xf32>
      %cst_107 = arith.constant 1.000000e+00 : f32
      %114 = vector.broadcast %cst_107 : f32 to vector<8x128xf32>
      %115 = arith.addf %114, %113 : vector<8x128xf32>
      %116 = arith.divf %114, %115 : vector<8x128xf32>
      %117 = vector.extract_strided_slice %110 {offsets = [0, 128], sizes = [8, 128], strides = [1, 1]} : vector<8x512xf32> to vector<8x128xf32>
      %118 = arith.negf %117 : vector<8x128xf32>
      %119 = math.exp %118 : vector<8x128xf32>
      %cst_108 = arith.constant 1.000000e+00 : f32
      %120 = vector.broadcast %cst_108 : f32 to vector<8x128xf32>
      %121 = arith.addf %120, %119 : vector<8x128xf32>
      %122 = arith.divf %120, %121 : vector<8x128xf32>
      %123 = vector.extract_strided_slice %110 {offsets = [0, 256], sizes = [8, 128], strides = [1, 1]} : vector<8x512xf32> to vector<8x128xf32>
      %124 = math.tanh %123 : vector<8x128xf32>
      %125 = vector.extract_strided_slice %110 {offsets = [0, 384], sizes = [8, 128], strides = [1, 1]} : vector<8x512xf32> to vector<8x128xf32>
      %126 = arith.negf %125 : vector<8x128xf32>
      %127 = math.exp %126 : vector<8x128xf32>
      %cst_109 = arith.constant 1.000000e+00 : f32
      %128 = vector.broadcast %cst_109 : f32 to vector<8x128xf32>
      %129 = arith.addf %128, %127 : vector<8x128xf32>
      %130 = arith.divf %128, %129 : vector<8x128xf32>
      %131 = arith.mulf %122, %106 : vector<8x128xf32>
      %132 = arith.mulf %116, %124 : vector<8x128xf32>
      %133 = arith.addf %131, %132 : vector<8x128xf32>
      %134 = math.tanh %133 : vector<8x128xf32>
      %135 = arith.mulf %130, %134 : vector<8x128xf32>
      %136 = vector.broadcast %c5_i32_83 : i32 to vector<8x1xi32>
      %137 = arith.cmpi slt, %136, %0 : vector<8x1xi32>
      %138 = vector.shape_cast %137 : vector<8x1xi1> to vector<8x1xi1>
      %139 = vector.broadcast %138 : vector<8x1xi1> to vector<8x128xi1>
      %140 = arith.select %139, %135, %105 : vector<8x128xi1>, vector<8x128xf32>
      %c0_110 = arith.constant 0 : index
      %c0_111 = arith.constant 0 : index
      %141 = vector.load %arg13[%c0_110, %c0_111] : memref<8x128xf32, #tpu.memory_space<vmem>>, vector<8x128xf32>
      tpu.vector_store %arg13[%c0_110, %c0_111], %140 {strides = array<i32>} : memref<8x128xf32, #tpu.memory_space<vmem>>, vector<8x128xf32>,
      %142 = vector.shape_cast %137 : vector<8x1xi1> to vector<8x1xi1>
      %143 = vector.broadcast %142 : vector<8x1xi1> to vector<8x128xi1>
      %144 = arith.select %143, %133, %106 : vector<8x128xi1>, vector<8x128xf32>
      %c0_112 = arith.constant 0 : index
      %c0_113 = arith.constant 0 : index
      %145 = vector.load %arg14[%c0_112, %c0_113] : memref<8x128xf32, #tpu.memory_space<vmem>>, vector<8x128xf32>
      tpu.vector_store %arg14[%c0_112, %c0_113], %144 {strides = array<i32>} : memref<8x128xf32, #tpu.memory_space<vmem>>, vector<8x128xf32>,
      %cst_114 = arith.constant 1.000000e+00 : f32
      %146 = vector.broadcast %cst_114 : f32 to vector<8x128xf32>
      %147 = vector.shape_cast %137 : vector<8x1xi1> to vector<8x1xi1>
      %148 = vector.broadcast %147 : vector<8x1xi1> to vector<8x128xi1>
      %149 = arith.select %148, %135, %146 : vector<8x128xi1>, vector<8x128xf32>
      %150 = arith.index_cast %104 : i32 to index
      %c0_115 = arith.constant 0 : index
      %151 = vector.load %arg8[%150, %c0_115] : memref<64x128xf32, #tpu.memory_space<vmem>>, vector<8x128xf32>
      tpu.vector_store %arg8[%150, %c0_115], %149 {strides = array<i32>} : memref<64x128xf32, #tpu.memory_space<vmem>>, vector<8x128xf32>,
    } else {
    }
    %c6_i32_85 = arith.constant 6 : i32
    %90 = arith.cmpi slt, %c6_i32_85, %1 : i32
    %91 = arith.extui %90 : i1 to i32
    %c0_i32_86 = arith.constant 0 : i32
    %92 = arith.cmpi ne, %91, %c0_i32_86 : i32
    scf.if %92 {
      %c8_i32_100 = arith.constant 8 : i32
      %104 = arith.muli %c6_i32_85, %c8_i32_100 : i32
      %c0_101 = arith.constant 0 : index
      %c0_102 = arith.constant 0 : index
      %105 = vector.load %arg13[%c0_101, %c0_102] : memref<8x128xf32, #tpu.memory_space<vmem>>, vector<8x128xf32>
      %c0_103 = arith.constant 0 : index
      %c0_104 = arith.constant 0 : index
      %106 = vector.load %arg14[%c0_103, %c0_104] : memref<8x128xf32, #tpu.memory_space<vmem>>, vector<8x128xf32>
      %107 = arith.index_cast %104 : i32 to index
      %c0_105 = arith.constant 0 : index
      %108 = vector.load %arg12[%107, %c0_105] : memref<64x512xf32, #tpu.memory_space<vmem>>, vector<8x512xf32>
      %cst_106 = arith.constant dense<0.000000e+00> : vector<8x512xf32>
      %109 = tpu.matmul %105, %56, %cst_106 {dimension_numbers = #tpu.dot_dimension_numbers<[1], [0], [0], [1], [0, 0, 1, 1], [], []>} : vector<8x128xf32>, vector<128x512xf32>, vector<8x512xf32> -> vector<8x512xf32>
      %110 = arith.addf %108, %109 : vector<8x512xf32>
      %111 = vector.extract_strided_slice %110 {offsets = [0, 0], sizes = [8, 128], strides = [1, 1]} : vector<8x512xf32> to vector<8x128xf32>
      %112 = arith.negf %111 : vector<8x128xf32>
      %113 = math.exp %112 : vector<8x128xf32>
      %cst_107 = arith.constant 1.000000e+00 : f32
      %114 = vector.broadcast %cst_107 : f32 to vector<8x128xf32>
      %115 = arith.addf %114, %113 : vector<8x128xf32>
      %116 = arith.divf %114, %115 : vector<8x128xf32>
      %117 = vector.extract_strided_slice %110 {offsets = [0, 128], sizes = [8, 128], strides = [1, 1]} : vector<8x512xf32> to vector<8x128xf32>
      %118 = arith.negf %117 : vector<8x128xf32>
      %119 = math.exp %118 : vector<8x128xf32>
      %cst_108 = arith.constant 1.000000e+00 : f32
      %120 = vector.broadcast %cst_108 : f32 to vector<8x128xf32>
      %121 = arith.addf %120, %119 : vector<8x128xf32>
      %122 = arith.divf %120, %121 : vector<8x128xf32>
      %123 = vector.extract_strided_slice %110 {offsets = [0, 256], sizes = [8, 128], strides = [1, 1]} : vector<8x512xf32> to vector<8x128xf32>
      %124 = math.tanh %123 : vector<8x128xf32>
      %125 = vector.extract_strided_slice %110 {offsets = [0, 384], sizes = [8, 128], strides = [1, 1]} : vector<8x512xf32> to vector<8x128xf32>
      %126 = arith.negf %125 : vector<8x128xf32>
      %127 = math.exp %126 : vector<8x128xf32>
      %cst_109 = arith.constant 1.000000e+00 : f32
      %128 = vector.broadcast %cst_109 : f32 to vector<8x128xf32>
      %129 = arith.addf %128, %127 : vector<8x128xf32>
      %130 = arith.divf %128, %129 : vector<8x128xf32>
      %131 = arith.mulf %122, %106 : vector<8x128xf32>
      %132 = arith.mulf %116, %124 : vector<8x128xf32>
      %133 = arith.addf %131, %132 : vector<8x128xf32>
      %134 = math.tanh %133 : vector<8x128xf32>
      %135 = arith.mulf %130, %134 : vector<8x128xf32>
      %136 = vector.broadcast %c6_i32_85 : i32 to vector<8x1xi32>
      %137 = arith.cmpi slt, %136, %0 : vector<8x1xi32>
      %138 = vector.shape_cast %137 : vector<8x1xi1> to vector<8x1xi1>
      %139 = vector.broadcast %138 : vector<8x1xi1> to vector<8x128xi1>
      %140 = arith.select %139, %135, %105 : vector<8x128xi1>, vector<8x128xf32>
      %c0_110 = arith.constant 0 : index
      %c0_111 = arith.constant 0 : index
      %141 = vector.load %arg13[%c0_110, %c0_111] : memref<8x128xf32, #tpu.memory_space<vmem>>, vector<8x128xf32>
      tpu.vector_store %arg13[%c0_110, %c0_111], %140 {strides = array<i32>} : memref<8x128xf32, #tpu.memory_space<vmem>>, vector<8x128xf32>,
      %142 = vector.shape_cast %137 : vector<8x1xi1> to vector<8x1xi1>
      %143 = vector.broadcast %142 : vector<8x1xi1> to vector<8x128xi1>
      %144 = arith.select %143, %133, %106 : vector<8x128xi1>, vector<8x128xf32>
      %c0_112 = arith.constant 0 : index
      %c0_113 = arith.constant 0 : index
      %145 = vector.load %arg14[%c0_112, %c0_113] : memref<8x128xf32, #tpu.memory_space<vmem>>, vector<8x128xf32>
      tpu.vector_store %arg14[%c0_112, %c0_113], %144 {strides = array<i32>} : memref<8x128xf32, #tpu.memory_space<vmem>>, vector<8x128xf32>,
      %cst_114 = arith.constant 1.000000e+00 : f32
      %146 = vector.broadcast %cst_114 : f32 to vector<8x128xf32>
      %147 = vector.shape_cast %137 : vector<8x1xi1> to vector<8x1xi1>
      %148 = vector.broadcast %147 : vector<8x1xi1> to vector<8x128xi1>
      %149 = arith.select %148, %135, %146 : vector<8x128xi1>, vector<8x128xf32>
      %150 = arith.index_cast %104 : i32 to index
      %c0_115 = arith.constant 0 : index
      %151 = vector.load %arg8[%150, %c0_115] : memref<64x128xf32, #tpu.memory_space<vmem>>, vector<8x128xf32>
      tpu.vector_store %arg8[%150, %c0_115], %149 {strides = array<i32>} : memref<64x128xf32, #tpu.memory_space<vmem>>, vector<8x128xf32>,
    } else {
    }
    %c7_i32_87 = arith.constant 7 : i32
    %93 = arith.cmpi slt, %c7_i32_87, %1 : i32
    %94 = arith.extui %93 : i1 to i32
    %c0_i32_88 = arith.constant 0 : i32
    %95 = arith.cmpi ne, %94, %c0_i32_88 : i32
    scf.if %95 {
      %c8_i32_100 = arith.constant 8 : i32
      %104 = arith.muli %c7_i32_87, %c8_i32_100 : i32
      %c0_101 = arith.constant 0 : index
      %c0_102 = arith.constant 0 : index
      %105 = vector.load %arg13[%c0_101, %c0_102] : memref<8x128xf32, #tpu.memory_space<vmem>>, vector<8x128xf32>
      %c0_103 = arith.constant 0 : index
      %c0_104 = arith.constant 0 : index
      %106 = vector.load %arg14[%c0_103, %c0_104] : memref<8x128xf32, #tpu.memory_space<vmem>>, vector<8x128xf32>
      %107 = arith.index_cast %104 : i32 to index
      %c0_105 = arith.constant 0 : index
      %108 = vector.load %arg12[%107, %c0_105] : memref<64x512xf32, #tpu.memory_space<vmem>>, vector<8x512xf32>
      %cst_106 = arith.constant dense<0.000000e+00> : vector<8x512xf32>
      %109 = tpu.matmul %105, %56, %cst_106 {dimension_numbers = #tpu.dot_dimension_numbers<[1], [0], [0], [1], [0, 0, 1, 1], [], []>} : vector<8x128xf32>, vector<128x512xf32>, vector<8x512xf32> -> vector<8x512xf32>
      %110 = arith.addf %108, %109 : vector<8x512xf32>
      %111 = vector.extract_strided_slice %110 {offsets = [0, 0], sizes = [8, 128], strides = [1, 1]} : vector<8x512xf32> to vector<8x128xf32>
      %112 = arith.negf %111 : vector<8x128xf32>
      %113 = math.exp %112 : vector<8x128xf32>
      %cst_107 = arith.constant 1.000000e+00 : f32
      %114 = vector.broadcast %cst_107 : f32 to vector<8x128xf32>
      %115 = arith.addf %114, %113 : vector<8x128xf32>
      %116 = arith.divf %114, %115 : vector<8x128xf32>
      %117 = vector.extract_strided_slice %110 {offsets = [0, 128], sizes = [8, 128], strides = [1, 1]} : vector<8x512xf32> to vector<8x128xf32>
      %118 = arith.negf %117 : vector<8x128xf32>
      %119 = math.exp %118 : vector<8x128xf32>
      %cst_108 = arith.constant 1.000000e+00 : f32
      %120 = vector.broadcast %cst_108 : f32 to vector<8x128xf32>
      %121 = arith.addf %120, %119 : vector<8x128xf32>
      %122 = arith.divf %120, %121 : vector<8x128xf32>
      %123 = vector.extract_strided_slice %110 {offsets = [0, 256], sizes = [8, 128], strides = [1, 1]} : vector<8x512xf32> to vector<8x128xf32>
      %124 = math.tanh %123 : vector<8x128xf32>
      %125 = vector.extract_strided_slice %110 {offsets = [0, 384], sizes = [8, 128], strides = [1, 1]} : vector<8x512xf32> to vector<8x128xf32>
      %126 = arith.negf %125 : vector<8x128xf32>
      %127 = math.exp %126 : vector<8x128xf32>
      %cst_109 = arith.constant 1.000000e+00 : f32
      %128 = vector.broadcast %cst_109 : f32 to vector<8x128xf32>
      %129 = arith.addf %128, %127 : vector<8x128xf32>
      %130 = arith.divf %128, %129 : vector<8x128xf32>
      %131 = arith.mulf %122, %106 : vector<8x128xf32>
      %132 = arith.mulf %116, %124 : vector<8x128xf32>
      %133 = arith.addf %131, %132 : vector<8x128xf32>
      %134 = math.tanh %133 : vector<8x128xf32>
      %135 = arith.mulf %130, %134 : vector<8x128xf32>
      %136 = vector.broadcast %c7_i32_87 : i32 to vector<8x1xi32>
      %137 = arith.cmpi slt, %136, %0 : vector<8x1xi32>
      %138 = vector.shape_cast %137 : vector<8x1xi1> to vector<8x1xi1>
      %139 = vector.broadcast %138 : vector<8x1xi1> to vector<8x128xi1>
      %140 = arith.select %139, %135, %105 : vector<8x128xi1>, vector<8x128xf32>
      %c0_110 = arith.constant 0 : index
      %c0_111 = arith.constant 0 : index
      %141 = vector.load %arg13[%c0_110, %c0_111] : memref<8x128xf32, #tpu.memory_space<vmem>>, vector<8x128xf32>
      tpu.vector_store %arg13[%c0_110, %c0_111], %140 {strides = array<i32>} : memref<8x128xf32, #tpu.memory_space<vmem>>, vector<8x128xf32>,
      %142 = vector.shape_cast %137 : vector<8x1xi1> to vector<8x1xi1>
      %143 = vector.broadcast %142 : vector<8x1xi1> to vector<8x128xi1>
      %144 = arith.select %143, %133, %106 : vector<8x128xi1>, vector<8x128xf32>
      %c0_112 = arith.constant 0 : index
      %c0_113 = arith.constant 0 : index
      %145 = vector.load %arg14[%c0_112, %c0_113] : memref<8x128xf32, #tpu.memory_space<vmem>>, vector<8x128xf32>
      tpu.vector_store %arg14[%c0_112, %c0_113], %144 {strides = array<i32>} : memref<8x128xf32, #tpu.memory_space<vmem>>, vector<8x128xf32>,
      %cst_114 = arith.constant 1.000000e+00 : f32
      %146 = vector.broadcast %cst_114 : f32 to vector<8x128xf32>
      %147 = vector.shape_cast %137 : vector<8x1xi1> to vector<8x1xi1>
      %148 = vector.broadcast %147 : vector<8x1xi1> to vector<8x128xi1>
      %149 = arith.select %148, %135, %146 : vector<8x128xi1>, vector<8x128xf32>
      %150 = arith.index_cast %104 : i32 to index
      %c0_115 = arith.constant 0 : index
      %151 = vector.load %arg8[%150, %c0_115] : memref<64x128xf32, #tpu.memory_space<vmem>>, vector<8x128xf32>
      tpu.vector_store %arg8[%150, %c0_115], %149 {strides = array<i32>} : memref<64x128xf32, #tpu.memory_space<vmem>>, vector<8x128xf32>,
    } else {
    }
    %c8_i32_89 = arith.constant 8 : i32
    %c0_90 = arith.constant 0 : index
    %c0_91 = arith.constant 0 : index
    %96 = vector.load %arg13[%c0_90, %c0_91] : memref<8x128xf32, #tpu.memory_space<vmem>>, vector<8x128xf32>
    %c1_92 = arith.constant 1 : index
    %c0_93 = arith.constant 0 : index
    %c0_94 = arith.constant 0 : index
    %97 = vector.load %arg9[%c1_92, %c0_93, %c0_94] : memref<2x8x128xf32, #tpu.memory_space<vmem>>, vector<1x8x128xf32>
    %98 = vector.shape_cast %97 : vector<1x8x128xf32> to vector<8x128xf32>
    %99 = vector.shape_cast %96 : vector<8x128xf32> to vector<1x8x128xf32>
    tpu.vector_store %arg9[%c1_92, %c0_93, %c0_94], %99 {strides = array<i32>} : memref<2x8x128xf32, #tpu.memory_space<vmem>>, vector<1x8x128xf32>,
    %c0_95 = arith.constant 0 : index
    %c0_96 = arith.constant 0 : index
    %100 = vector.load %arg14[%c0_95, %c0_96] : memref<8x128xf32, #tpu.memory_space<vmem>>, vector<8x128xf32>
    %c1_97 = arith.constant 1 : index
    %c0_98 = arith.constant 0 : index
    %c0_99 = arith.constant 0 : index
    %101 = vector.load %arg10[%c1_97, %c0_98, %c0_99] : memref<2x8x128xf32, #tpu.memory_space<vmem>>, vector<1x8x128xf32>
    %102 = vector.shape_cast %101 : vector<1x8x128xf32> to vector<8x128xf32>
    %103 = vector.shape_cast %100 : vector<8x128xf32> to vector<1x8x128xf32>
    tpu.vector_store %arg10[%c1_97, %c0_98, %c0_99], %103 {strides = array<i32>} : memref<2x8x128xf32, #tpu.memory_space<vmem>>, vector<1x8x128xf32>,
    return
  }
}

</mosaic_0001>

<llo_original>
// kernel: generator_forward.3
$region0: #{generator_forward.3}
  #allocation0 [shape = 'u32[]', space=smem, size = 0x4, offset = 0x4, fixed_abs, tag = 'smem constant byte address 0x4 - core index']
  #allocation1 [shape = 'u32[72,128]{1,0:T(1,128)}', space=vmem, size = 0x9000, scoped, tag = 'internal scratch']
  %s0 = inlined_call_operand.vmem [shape: f32[64,128], index: 0, kind: input, shape index: {}]
  %s1 = inlined_call_operand.vmem [shape: f32[128,128], index: 1, kind: input, shape index: {}]
  %s2 = inlined_call_operand.vmem [shape: f32[1,128], index: 2, kind: input, shape index: {}]
  %s3 = inlined_call_operand.vmem [shape: f32[64,128], index: 3, kind: output, shape index: {}]
  %s4 = sld [smem:[#allocation0]]
  $region22: #{generator_forward.3} parent=0
    _
  %s6 = ssub.s32 1, %s4
  %s7 = scalar_select 0, %s6, %s4
  // Predicated region
  $region2: #{generator_forward.3} parent=0 // pred_check
    _
  $region3: #{generator_forward.3} parent=0 // pred_check_branch
    %9 = sbr.rel (0) target = $region5
  $region4: #{generator_forward.3} parent=0 // pred_region
    _
  $region5: #{generator_forward.3} parent=0 // pred_fallthru
    _
  // Predicated region
  $region6: #{generator_forward.3} parent=0 // pred_check
    _
  $region7: #{generator_forward.3} parent=0 // pred_check_branch
    %11 = sbr.rel (0) target = $region9
  $region8: #{generator_forward.3} parent=0 // pred_region
    _
  $region9: #{generator_forward.3} parent=0 // pred_fallthru
    _
  // Predicated region
  $region10: #{generator_forward.3} parent=0 // pred_check
    _
  $region11: #{generator_forward.3} parent=0 // pred_check_branch
    %13 = sbr.rel (0) target = $region13
  $region12: #{generator_forward.3} parent=0 // pred_region
    _
  $region13: #{generator_forward.3} parent=0 // pred_fallthru
    _
  %v14 = vld [vmem:[%s0] sm:$0xff]
  %v15 = vld [vmem:[%s0 + $0x8] sm:$0xff]
  %v16 = vld [vmem:[%s0 + $0x10] sm:$0xff]
  %v17 = vld [vmem:[%s0 + $0x18] sm:$0xff]
  %v18 = vld [vmem:[%s0 + $0x20] sm:$0xff]
  %v19 = vld [vmem:[%s0 + $0x28] sm:$0xff]
  %v20 = vld [vmem:[%s0 + $0x30] sm:$0xff]
  %v21 = vld [vmem:[%s0 + $0x38] sm:$0xff]
  %v22 = vld [vmem:[%s1] sm:$0xff]
  %v23 = vld [vmem:[%s1 + $0x8] sm:$0xff]
  %v24 = vld [vmem:[%s1 + $0x10] sm:$0xff]
  %v25 = vld [vmem:[%s1 + $0x18] sm:$0xff]
  %v26 = vld [vmem:[%s1 + $0x20] sm:$0xff]
  %v27 = vld [vmem:[%s1 + $0x28] sm:$0xff]
  %v28 = vld [vmem:[%s1 + $0x30] sm:$0xff]
  %v29 = vld [vmem:[%s1 + $0x38] sm:$0xff]
  %v30 = vld [vmem:[%s1 + $0x40] sm:$0xff]
  %v31 = vld [vmem:[%s1 + $0x48] sm:$0xff]
  %v32 = vld [vmem:[%s1 + $0x50] sm:$0xff]
  %v33 = vld [vmem:[%s1 + $0x58] sm:$0xff]
  %v34 = vld [vmem:[%s1 + $0x60] sm:$0xff]
  %v35 = vld [vmem:[%s1 + $0x68] sm:$0xff]
  %v36 = vld [vmem:[%s1 + $0x70] sm:$0xff]
  %v37 = vld [vmem:[%s1 + $0x78] sm:$0xff]
  %v38 = vld [vmem:[%s2] sm:$0x1]
  %v40 = vperm.slane %v38, 0
  %42 = vmatpush.msra.mxu0 %v37
  %43 = vmatpush.msra.mxu0 %v36
  %44 = vmatpush.msra.mxu0 %v35
  %45 = vmatpush.msra.mxu0 %v34
  %46 = vmatpush.msra.mxu0 %v33
  %47 = vmatpush.msra.mxu0 %v32
  %48 = vmatpush.msra.mxu0 %v31
  %49 = vmatpush.msra.mxu0 %v30
  %50 = vmatpush.msra.mxu0 %v29
  %51 = vmatpush.msra.mxu0 %v28
  %52 = vmatpush.msra.mxu0 %v27
  %53 = vmatpush.msra.mxu0 %v26
  %54 = vmatpush.msra.mxu0 %v25
  %55 = vmatpush.msra.mxu0 %v24
  %56 = vmatpush.msra.mxu0 %v23
  %57 = vmatpush.msra.mxu0 %v22
  %58 = vmatmul.f32.gmra.mxu0 %v14
  %v59 = vpop.f32.mrf.mxu0
  %v60 = vadd.f32 %v40, %v59
  %61 = vmatmul.f32.gmra.mxu0 %v15
  %v62 = vpop.f32.mrf.mxu0
  %v63 = vadd.f32 %v40, %v62
  %64 = vmatmul.f32.gmra.mxu0 %v16
  %v65 = vpop.f32.mrf.mxu0
  %v66 = vadd.f32 %v40, %v65
  %67 = vmatmul.f32.gmra.mxu0 %v17
  %v68 = vpop.f32.mrf.mxu0
  %v69 = vadd.f32 %v40, %v68
  %70 = vmatmul.f32.gmra.mxu0 %v18
  %v71 = vpop.f32.mrf.mxu0
  %v72 = vadd.f32 %v40, %v71
  %73 = vmatmul.f32.gmra.mxu0 %v19
  %v74 = vpop.f32.mrf.mxu0
  %v75 = vadd.f32 %v40, %v74
  %76 = vmatmul.f32.gmra.mxu0 %v20
  %v77 = vpop.f32.mrf.mxu0
  %v78 = vadd.f32 %v40, %v77
  %79 = vmatmul.f32.gmra.mxu0 %v21
  %v80 = vpop.f32.mrf.mxu0
  %v81 = vadd.f32 %v40, %v80
  %82 = vdwg.mxu0
  %83 = vst [vmem:[%s3] sm:$0xff] %v60
  %84 = vst [vmem:[%s3 + $0x8] sm:$0xff] %v63
  %85 = vst [vmem:[%s3 + $0x10] sm:$0xff] %v66
  %86 = vst [vmem:[%s3 + $0x18] sm:$0xff] %v69
  %87 = vst [vmem:[%s3 + $0x20] sm:$0xff] %v72
  %88 = vst [vmem:[%s3 + $0x28] sm:$0xff] %v75
  %89 = vst [vmem:[%s3 + $0x30] sm:$0xff] %v78
  %90 = vst [vmem:[%s3 + $0x38] sm:$0xff] %v81
  // Predicated region
  $region14: #{generator_forward.3} parent=0 // pred_check
    _
  $region15: #{generator_forward.3} parent=0 // pred_check_branch
    %92 = sbr.rel (0) target = $region17
  $region16: #{generator_forward.3} parent=0 // pred_region
    _
  $region17: #{generator_forward.3} parent=0 // pred_fallthru
    _
  // Predicated region
  $region18: #{generator_forward.3} parent=0 // pred_check
    _
  $region19: #{generator_forward.3} parent=0 // pred_check_branch
    %94 = sbr.rel (0) target = $region21
  $region20: #{generator_forward.3} parent=0 // pred_region
    _
  $region21: #{generator_forward.3} parent=0 // pred_fallthru
    _

// kernel: generator_forward.2
$region0: #{generator_forward.2}
  #allocation0 [shape = 'u32[]', space=smem, size = 0x4, offset = 0x4, fixed_abs, tag = 'smem constant byte address 0x4 - core index']
  #allocation1 [shape = 'u32[72,128]{1,0:T(1,128)}', space=vmem, size = 0x9000, scoped, tag = 'internal scratch']
  #allocation2 [shape = 'f32[64,128]{1,0:T(8,128)}', space=vmem, size = 0x8000, scoped, tag = 'scratch operand']
  #allocation3 [shape = 'f32[64,512]{1,0:T(8,128)}', space=vmem, size = 0x20000, scoped, tag = 'scratch operand']
  #allocation4 [shape = 'f32[8,128]{1,0:T(8,128)}', space=vmem, size = 0x1000, scoped, tag = 'scratch operand']
  #allocation5 [shape = 'f32[8,128]{1,0:T(8,128)}', space=vmem, size = 0x1000, scoped, tag = 'scratch operand']
  #allocation6 [shape = 's32[1]{0:T(128)S(6)}', space=smem, size = 0x200, scoped, tag = 'scoped memory for generator_forward.2']
  %s0 = inlined_call_operand.vmem [shape: f32[64,128], index: 0, kind: input, shape index: {}]
  %s1 = inlined_call_operand.vmem [shape: f32[2,8,128], index: 1, kind: input, shape index: {}]
  %s2 = inlined_call_operand.vmem [shape: f32[2,8,128], index: 2, kind: input, shape index: {}]
  %s3 = inlined_call_operand.vmem [shape: s32[8,1], index: 3, kind: input, shape index: {}]
  %s4 = inlined_call_operand.<no memory space> [shape: s32[1], index: 4, kind: input, shape index: {}]
  %s5 = inlined_call_operand.hbm [shape: f32[2,128,512], index: 5, kind: input, shape index: {}]
  %s6 = inlined_call_operand.hbm [shape: f32[2,128,512], index: 6, kind: input, shape index: {}]
  %s7 = inlined_call_operand.vmem [shape: f32[2,1,512], index: 7, kind: input, shape index: {}]
  %s8 = inlined_call_operand.vmem [shape: f32[64,128], index: 8, kind: output, shape index: {0}]
  %s9 = inlined_call_operand.vmem [shape: f32[2,8,128], index: 9, kind: output, shape index: {1}]
  %s10 = inlined_call_operand.vmem [shape: f32[2,8,128], index: 10, kind: output, shape index: {2}]
  %11 = xla_tuple %s8, %s9, %s10
  %s12 = sld [smem:[#allocation0]]
  $region130: #{generator_forward.2} parent=0
    _
  %s14 = ssub.s32 1, %s12
  %s15 = scalar_select 0, %s14, %s12
  %16 = sst [smem:[#allocation6]] %s4
  $region1: #{generator_forward.2} parent=0
    #allocation7 [shape = 'u8[524288]{0}', space=vmem, size = 0x80000, scoped, tag = 'input window, operand 5, single buffered']
    #allocation8 [shape = 's32[1]{0}', space=sflag, size = 0x4, scoped, tag = 'scoped memory for generator_forward.2']
    #allocation9 [shape = 'u8[524288]{0}', space=vmem, size = 0x80000, scoped, tag = 'input window, operand 6, single buffered']
    #allocation10 [shape = 's32[1]{0}', space=sflag, size = 0x4, scoped, tag = 'scoped memory for generator_forward.2']
    %17 = vsyncpa [#allocation8], 0
    %18 = vsyncpa [#allocation10], 0
    // Predicated region
    $region2: #{generator_forward.2} parent=1 // pred_check
      _
    $region3: #{generator_forward.2} parent=1 // pred_check_branch
      %20 = sbr.rel (0) target = $region5
    $region4: #{generator_forward.2} parent=1 // pred_region
      _
    $region5: #{generator_forward.2} parent=1 // pred_fallthru
      _
    // Predicated region
    $region6: #{generator_forward.2} parent=1 // pred_check
      _
    $region7: #{generator_forward.2} parent=1 // pred_check_branch
      %22 = sbr.rel (0) target = $region9
    $region8: #{generator_forward.2} parent=1 // pred_region
      _
    $region9: #{generator_forward.2} parent=1 // pred_fallthru
      _
    // Predicated region
    $region10: #{generator_forward.2} parent=1 // pred_check
      _
    $region11: #{generator_forward.2} parent=1 // pred_check_branch
      %24 = sbr.rel (0) target = $region13
    $region12: #{generator_forward.2} parent=1 // pred_region
      _
    $region13: #{generator_forward.2} parent=1 // pred_fallthru
      _
    // Predicated region
    $region14: #{generator_forward.2} parent=1 // pred_check
      _
    $region15: #{generator_forward.2} parent=1 // pred_check_branch
      %26 = sbr.rel (0) target = $region17
    $region16: #{generator_forward.2} parent=1 // pred_region
      _
    $region17: #{generator_forward.2} parent=1 // pred_fallthru
      _
    // Predicated region
    $region18: #{generator_forward.2} parent=1 // pred_check
      _
    $region19: #{generator_forward.2} parent=1 // pred_check_branch
      %28 = sbr.rel (0) target = $region21
    $region20: #{generator_forward.2} parent=1 // pred_region
      _
    $region21: #{generator_forward.2} parent=1 // pred_fallthru
      _
    // Predicated region
    $region22: #{generator_forward.2} parent=1 // pred_check
      _
    $region23: #{generator_forward.2} parent=1 // pred_check_branch
      %30 = sbr.rel (0) target = $region25
    $region24: #{generator_forward.2} parent=1 // pred_region
      %32 = vsyncadd [#allocation8], 0
      %s33 = sshll.u32 %s5, 4
      %s34 = int_to_ptr.hbm [resolvable:$true] %s33
      %s35 = sshll.u32 [#allocation7], 4
      %s36 = int_to_ptr.vmem [resolvable:$true] %s35
      %41 = dma.hbm_to_vmem [thread:$0]  %s34, 16384, %s36, [#allocation8], 512, 512, 32
    $region25: #{generator_forward.2} parent=1 // pred_fallthru
      _
    // Predicated region
    $region26: #{generator_forward.2} parent=1 // pred_check
      _
    $region27: #{generator_forward.2} parent=1 // pred_check_branch
      %43 = sbr.rel (0) target = $region29
    $region28: #{generator_forward.2} parent=1 // pred_region
      %45 = vsyncadd [#allocation10], 0
      %s46 = sshll.u32 %s6, 4
      %s47 = int_to_ptr.hbm [resolvable:$true] %s46
      %s48 = sshll.u32 [#allocation9], 4
      %s49 = int_to_ptr.vmem [resolvable:$true] %s48
      %54 = dma.hbm_to_vmem [thread:$0]  %s47, 16384, %s49, [#allocation10], 512, 512, 32
    $region29: #{generator_forward.2} parent=1 // pred_fallthru
      _
    // Predicated region
    $region30: #{generator_forward.2} parent=1 // pred_check
      _
    $region31: #{generator_forward.2} parent=1 // pred_check_branch
      %56 = sbr.rel (0) target = $region33
    $region32: #{generator_forward.2} parent=1 // pred_region
      _
    $region33: #{generator_forward.2} parent=1 // pred_fallthru
      _
    // Predicated region
    $region34: #{generator_forward.2} parent=1 // pred_check
      _
    $region35: #{generator_forward.2} parent=1 // pred_check_branch
      %58 = sbr.rel (0) target = $region37
    $region36: #{generator_forward.2} parent=1 // pred_region
      %60 = dma.done [#allocation8], 16384
    $region37: #{generator_forward.2} parent=1 // pred_fallthru
      _
    // Predicated region
    $region38: #{generator_forward.2} parent=1 // pred_check
      _
    $region39: #{generator_forward.2} parent=1 // pred_check_branch
      %62 = sbr.rel (0) target = $region41
    $region40: #{generator_forward.2} parent=1 // pred_region
      %64 = dma.done [#allocation10], 16384
    $region41: #{generator_forward.2} parent=1 // pred_fallthru
      _
    %v65 = vld [vmem:[%s3] sm:$0xff]
    %s66 = sld [smem:[#allocation6]]
    %v67 = vld [vmem:[%s0] sm:$0xff]
    %v68 = vld [vmem:[%s0 + $0x8] sm:$0xff]
    %v69 = vld [vmem:[%s0 + $0x10] sm:$0xff]
    %v70 = vld [vmem:[%s0 + $0x18] sm:$0xff]
    %v71 = vld [vmem:[%s0 + $0x20] sm:$0xff]
    %v72 = vld [vmem:[%s0 + $0x28] sm:$0xff]
    %v73 = vld [vmem:[%s0 + $0x30] sm:$0xff]
    %v74 = vld [vmem:[%s0 + $0x38] sm:$0xff]
    %75 = vst [vmem:[#allocation2] sm:$0xff] %v67
    %76 = vst [vmem:[#allocation2 + $0x8] sm:$0xff] %v68
    %77 = vst [vmem:[#allocation2 + $0x10] sm:$0xff] %v69
    %78 = vst [vmem:[#allocation2 + $0x18] sm:$0xff] %v70
    %79 = vst [vmem:[#allocation2 + $0x20] sm:$0xff] %v71
    %80 = vst [vmem:[#allocation2 + $0x28] sm:$0xff] %v72
    %81 = vst [vmem:[#allocation2 + $0x30] sm:$0xff] %v73
    %82 = vst [vmem:[#allocation2 + $0x38] sm:$0xff] %v74
    %83 = vst [vmem:[%s8] sm:$0xff] 1.0
    %84 = vst [vmem:[%s8 + $0x8] sm:$0xff] 1.0
    %85 = vst [vmem:[%s8 + $0x10] sm:$0xff] 1.0
    %86 = vst [vmem:[%s8 + $0x18] sm:$0xff] 1.0
    %87 = vst [vmem:[%s8 + $0x20] sm:$0xff] 1.0
    %88 = vst [vmem:[%s8 + $0x28] sm:$0xff] 1.0
    %89 = vst [vmem:[%s8 + $0x30] sm:$0xff] 1.0
    %90 = vst [vmem:[%s8 + $0x38] sm:$0xff] 1.0
    %v91 = vld [vmem:[#allocation9] sm:$0xff]
    %v92 = vld [vmem:[#allocation9 + $0x8] sm:$0xff]
    %v93 = vld [vmem:[#allocation9 + $0x10] sm:$0xff]
    %v94 = vld [vmem:[#allocation9 + $0x18] sm:$0xff]
    %v95 = vld [vmem:[#allocation9 + $0x20] sm:$0xff]
    %v96 = vld [vmem:[#allocation9 + $0x28] sm:$0xff]
    %v97 = vld [vmem:[#allocation9 + $0x30] sm:$0xff]
    %v98 = vld [vmem:[#allocation9 + $0x38] sm:$0xff]
    %v99 = vld [vmem:[#allocation9 + $0x40] sm:$0xff]
    %v100 = vld [vmem:[#allocation9 + $0x48] sm:$0xff]
    %v101 = vld [vmem:[#allocation9 + $0x50] sm:$0xff]
    %v102 = vld [vmem:[#allocation9 + $0x58] sm:$0xff]
    %v103 = vld [vmem:[#allocation9 + $0x60] sm:$0xff]
    %v104 = vld [vmem:[#allocation9 + $0x68] sm:$0xff]
    %v105 = vld [vmem:[#allocation9 + $0x70] sm:$0xff]
    %v106 = vld [vmem:[#allocation9 + $0x78] sm:$0xff]
    %v107 = vld [vmem:[#allocation9 + $0x80] sm:$0xff]
    %v108 = vld [vmem:[#allocation9 + $0x88] sm:$0xff]
    %v109 = vld [vmem:[#allocation9 + $0x90] sm:$0xff]
    %v110 = vld [vmem:[#allocation9 + $0x98] sm:$0xff]
    %v111 = vld [vmem:[#allocation9 + $0xa0] sm:$0xff]
    %v112 = vld [vmem:[#allocation9 + $0xa8] sm:$0xff]
    %v113 = vld [vmem:[#allocation9 + $0xb0] sm:$0xff]
    %v114 = vld [vmem:[#allocation9 + $0xb8] sm:$0xff]
    %v115 = vld [vmem:[#allocation9 + $0xc0] sm:$0xff]
    %v116 = vld [vmem:[#allocation9 + $0xc8] sm:$0xff]
    %v117 = vld [vmem:[#allocation9 + $0xd0] sm:$0xff]
    %v118 = vld [vmem:[#allocation9 + $0xd8] sm:$0xff]
    %v119 = vld [vmem:[#allocation9 + $0xe0] sm:$0xff]
    %v120 = vld [vmem:[#allocation9 + $0xe8] sm:$0xff]
    %v121 = vld [vmem:[#allocation9 + $0xf0] sm:$0xff]
    %v122 = vld [vmem:[#allocation9 + $0xf8] sm:$0xff]
    %v123 = vld [vmem:[#allocation9 + $0x100] sm:$0xff]
    %v124 = vld [vmem:[#allocation9 + $0x108] sm:$0xff]
    %v125 = vld [vmem:[#allocation9 + $0x110] sm:$0xff]
    %v126 = vld [vmem:[#allocation9 + $0x118] sm:$0xff]
    %v127 = vld [vmem:[#allocation9 + $0x120] sm:$0xff]
    %v128 = vld [vmem:[#allocation9 + $0x128] sm:$0xff]
    %v129 = vld [vmem:[#allocation9 + $0x130] sm:$0xff]
    %v130 = vld [vmem:[#allocation9 + $0x138] sm:$0xff]
    %v131 = vld [vmem:[#allocation9 + $0x140] sm:$0xff]
    %v132 = vld [vmem:[#allocation9 + $0x148] sm:$0xff]
    %v133 = vld [vmem:[#allocation9 + $0x150] sm:$0xff]
    %v134 = vld [vmem:[#allocation9 + $0x158] sm:$0xff]
    %v135 = vld [vmem:[#allocation9 + $0x160] sm:$0xff]
    %v136 = vld [vmem:[#allocation9 + $0x168] sm:$0xff]
    %v137 = vld [vmem:[#allocation9 + $0x170] sm:$0xff]
    %v138 = vld [vmem:[#allocation9 + $0x178] sm:$0xff]
    %v139 = vld [vmem:[#allocation9 + $0x180] sm:$0xff]
    %v140 = vld [vmem:[#allocation9 + $0x188] sm:$0xff]
    %v141 = vld [vmem:[#allocation9 + $0x190] sm:$0xff]
    %v142 = vld [vmem:[#allocation9 + $0x198] sm:$0xff]
    %v143 = vld [vmem:[#allocation9 + $0x1a0] sm:$0xff]
    %v144 = vld [vmem:[#allocation9 + $0x1a8] sm:$0xff]
    %v145 = vld [vmem:[#allocation9 + $0x1b0] sm:$0xff]
    %v146 = vld [vmem:[#allocation9 + $0x1b8] sm:$0xff]
    %v147 = vld [vmem:[#allocation9 + $0x1c0] sm:$0xff]
    %v148 = vld [vmem:[#allocation9 + $0x1c8] sm:$0xff]
    %v149 = vld [vmem:[#allocation9 + $0x1d0] sm:$0xff]
    %v150 = vld [vmem:[#allocation9 + $0x1d8] sm:$0xff]
    %v151 = vld [vmem:[#allocation9 + $0x1e0] sm:$0xff]
    %v152 = vld [vmem:[#allocation9 + $0x1e8] sm:$0xff]
    %v153 = vld [vmem:[#allocation9 + $0x1f0] sm:$0xff]
    %v154 = vld [vmem:[#allocation9 + $0x1f8] sm:$0xff]
    %v155 = vld [vmem:[#allocation2] sm:$0xff]
    %v156 = vld [vmem:[#allocation2 + $0x8] sm:$0xff]
    %v157 = vld [vmem:[#allocation2 + $0x10] sm:$0xff]
    %v158 = vld [vmem:[#allocation2 + $0x18] sm:$0xff]
    %v159 = vld [vmem:[#allocation2 + $0x20] sm:$0xff]
    %v160 = vld [vmem:[#allocation2 + $0x28] sm:$0xff]
    %v161 = vld [vmem:[#allocation2 + $0x30] sm:$0xff]
    %v162 = vld [vmem:[#allocation2 + $0x38] sm:$0xff]
    %v163 = vld [vmem:[#allocation7] sm:$0xff]
    %v164 = vld [vmem:[#allocation7 + $0x8] sm:$0xff]
    %v165 = vld [vmem:[#allocation7 + $0x10] sm:$0xff]
    %v166 = vld [vmem:[#allocation7 + $0x18] sm:$0xff]
    %v167 = vld [vmem:[#allocation7 + $0x20] sm:$0xff]
    %v168 = vld [vmem:[#allocation7 + $0x28] sm:$0xff]
    %v169 = vld [vmem:[#allocation7 + $0x30] sm:$0xff]
    %v170 = vld [vmem:[#allocation7 + $0x38] sm:$0xff]
    %v171 = vld [vmem:[#allocation7 + $0x40] sm:$0xff]
    %v172 = vld [vmem:[#allocation7 + $0x48] sm:$0xff]
    %v173 = vld [vmem:[#allocation7 + $0x50] sm:$0xff]
    %v174 = vld [vmem:[#allocation7 + $0x58] sm:$0xff]
    %v175 = vld [vmem:[#allocation7 + $0x60] sm:$0xff]
    %v176 = vld [vmem:[#allocation7 + $0x68] sm:$0xff]
    %v177 = vld [vmem:[#allocation7 + $0x70] sm:$0xff]
    %v178 = vld [vmem:[#allocation7 + $0x78] sm:$0xff]
    %v179 = vld [vmem:[#allocation7 + $0x80] sm:$0xff]
    %v180 = vld [vmem:[#allocation7 + $0x88] sm:$0xff]
    %v181 = vld [vmem:[#allocation7 + $0x90] sm:$0xff]
    %v182 = vld [vmem:[#allocation7 + $0x98] sm:$0xff]
    %v183 = vld [vmem:[#allocation7 + $0xa0] sm:$0xff]
    %v184 = vld [vmem:[#allocation7 + $0xa8] sm:$0xff]
    %v185 = vld [vmem:[#allocation7 + $0xb0] sm:$0xff]
    %v186 = vld [vmem:[#allocation7 + $0xb8] sm:$0xff]
    %v187 = vld [vmem:[#allocation7 + $0xc0] sm:$0xff]
    %v188 = vld [vmem:[#allocation7 + $0xc8] sm:$0xff]
    %v189 = vld [vmem:[#allocation7 + $0xd0] sm:$0xff]
    %v190 = vld [vmem:[#allocation7 + $0xd8] sm:$0xff]
    %v191 = vld [vmem:[#allocation7 + $0xe0] sm:$0xff]
    %v192 = vld [vmem:[#allocation7 + $0xe8] sm:$0xff]
    %v193 = vld [vmem:[#allocation7 + $0xf0] sm:$0xff]
    %v194 = vld [vmem:[#allocation7 + $0xf8] sm:$0xff]
    %v195 = vld [vmem:[#allocation7 + $0x100] sm:$0xff]
    %v196 = vld [vmem:[#allocation7 + $0x108] sm:$0xff]
    %v197 = vld [vmem:[#allocation7 + $0x110] sm:$0xff]
    %v198 = vld [vmem:[#allocation7 + $0x118] sm:$0xff]
    %v199 = vld [vmem:[#allocation7 + $0x120] sm:$0xff]
    %v200 = vld [vmem:[#allocation7 + $0x128] sm:$0xff]
    %v201 = vld [vmem:[#allocation7 + $0x130] sm:$0xff]
    %v202 = vld [vmem:[#allocation7 + $0x138] sm:$0xff]
    %v203 = vld [vmem:[#allocation7 + $0x140] sm:$0xff]
    %v204 = vld [vmem:[#allocation7 + $0x148] sm:$0xff]
    %v205 = vld [vmem:[#allocation7 + $0x150] sm:$0xff]
    %v206 = vld [vmem:[#allocation7 + $0x158] sm:$0xff]
    %v207 = vld [vmem:[#allocation7 + $0x160] sm:$0xff]
    %v208 = vld [vmem:[#allocation7 + $0x168] sm:$0xff]
    %v209 = vld [vmem:[#allocation7 + $0x170] sm:$0xff]
    %v210 = vld [vmem:[#allocation7 + $0x178] sm:$0xff]
    %v211 = vld [vmem:[#allocation7 + $0x180] sm:$0xff]
    %v212 = vld [vmem:[#allocation7 + $0x188] sm:$0xff]
    %v213 = vld [vmem:[#allocation7 + $0x190] sm:$0xff]
    %v214 = vld [vmem:[#allocation7 + $0x198] sm:$0xff]
    %v215 = vld [vmem:[#allocation7 + $0x1a0] sm:$0xff]
    %v216 = vld [vmem:[#allocation7 + $0x1a8] sm:$0xff]
    %v217 = vld [vmem:[#allocation7 + $0x1b0] sm:$0xff]
    %v218 = vld [vmem:[#allocation7 + $0x1b8] sm:$0xff]
    %v219 = vld [vmem:[#allocation7 + $0x1c0] sm:$0xff]
    %v220 = vld [vmem:[#allocation7 + $0x1c8] sm:$0xff]
    %v221 = vld [vmem:[#allocation7 + $0x1d0] sm:$0xff]
    %v222 = vld [vmem:[#allocation7 + $0x1d8] sm:$0xff]
    %v223 = vld [vmem:[#allocation7 + $0x1e0] sm:$0xff]
    %v224 = vld [vmem:[#allocation7 + $0x1e8] sm:$0xff]
    %v225 = vld [vmem:[#allocation7 + $0x1f0] sm:$0xff]
    %v226 = vld [vmem:[#allocation7 + $0x1f8] sm:$0xff]
    %v227 = vld [vmem:[%s7] sm:$0xf]
    %v229 = vperm.slane %v227, 0
    %v230 = vperm.slane %v227, 1
    %v231 = vperm.slane %v227, 2
    %v232 = vperm.slane %v227, 3
    %237 = vmatpush.msra.mxu0 %v223
    %238 = vmatpush.msra.mxu0 %v219
    %239 = vmatpush.msra.mxu0 %v215
    %240 = vmatpush.msra.mxu0 %v211
    %241 = vmatpush.msra.mxu0 %v207
    %242 = vmatpush.msra.mxu0 %v203
    %243 = vmatpush.msra.mxu0 %v199
    %244 = vmatpush.msra.mxu0 %v195
    %245 = vmatpush.msra.mxu0 %v191
    %246 = vmatpush.msra.mxu0 %v187
    %247 = vmatpush.msra.mxu0 %v183
    %248 = vmatpush.msra.mxu0 %v179
    %249 = vmatpush.msra.mxu0 %v175
    %250 = vmatpush.msra.mxu0 %v171
    %251 = vmatpush.msra.mxu0 %v167
    %252 = vmatpush.msra.mxu0 %v163
    %253 = vmatmul.f32.gmra.mxu0 %v155
    %v254 = vpop.f32.mrf.mxu0
    %v255 = vadd.f32 %v229, %v254
    %256 = vmatmul.f32.gmra.mxu0 %v156
    %v257 = vpop.f32.mrf.mxu0
    %v258 = vadd.f32 %v229, %v257
    %259 = vmatmul.f32.gmra.mxu0 %v157
    %v260 = vpop.f32.mrf.mxu0
    %v261 = vadd.f32 %v229, %v260
    %262 = vmatmul.f32.gmra.mxu0 %v158
    %v263 = vpop.f32.mrf.mxu0
    %v264 = vadd.f32 %v229, %v263
    %265 = vmatmul.f32.gmra.mxu0 %v159
    %v266 = vpop.f32.mrf.mxu0
    %v267 = vadd.f32 %v229, %v266
    %268 = vmatmul.f32.gmra.mxu0 %v160
    %v269 = vpop.f32.mrf.mxu0
    %v270 = vadd.f32 %v229, %v269
    %271 = vmatmul.f32.gmra.mxu0 %v161
    %v272 = vpop.f32.mrf.mxu0
    %v273 = vadd.f32 %v229, %v272
    %274 = vmatmul.f32.gmra.mxu0 %v162
    %v275 = vpop.f32.mrf.mxu0
    %v276 = vadd.f32 %v229, %v275
    %277 = vdwg.mxu0
    %278 = vmatpush.msra.mxu0 %v224
    %279 = vmatpush.msra.mxu0 %v220
    %280 = vmatpush.msra.mxu0 %v216
    %281 = vmatpush.msra.mxu0 %v212
    %282 = vmatpush.msra.mxu0 %v208
    %283 = vmatpush.msra.mxu0 %v204
    %284 = vmatpush.msra.mxu0 %v200
    %285 = vmatpush.msra.mxu0 %v196
    %286 = vmatpush.msra.mxu0 %v192
    %287 = vmatpush.msra.mxu0 %v188
    %288 = vmatpush.msra.mxu0 %v184
    %289 = vmatpush.msra.mxu0 %v180
    %290 = vmatpush.msra.mxu0 %v176
    %291 = vmatpush.msra.mxu0 %v172
    %292 = vmatpush.msra.mxu0 %v168
    %293 = vmatpush.msra.mxu0 %v164
    %294 = vmatmul.f32.gmra.mxu0 %v155
    %v295 = vpop.f32.mrf.mxu0
    %v296 = vadd.f32 %v230, %v295
    %297 = vmatmul.f32.gmra.mxu0 %v156
    %v298 = vpop.f32.mrf.mxu0
    %v299 = vadd.f32 %v230, %v298
    %300 = vmatmul.f32.gmra.mxu0 %v157
    %v301 = vpop.f32.mrf.mxu0
    %v302 = vadd.f32 %v230, %v301
    %303 = vmatmul.f32.gmra.mxu0 %v158
    %v304 = vpop.f32.mrf.mxu0
    %v305 = vadd.f32 %v230, %v304
    %306 = vmatmul.f32.gmra.mxu0 %v159
    %v307 = vpop.f32.mrf.mxu0
    %v308 = vadd.f32 %v230, %v307
    %309 = vmatmul.f32.gmra.mxu0 %v160
    %v310 = vpop.f32.mrf.mxu0
    %v311 = vadd.f32 %v230, %v310
    %312 = vmatmul.f32.gmra.mxu0 %v161
    %v313 = vpop.f32.mrf.mxu0
    %v314 = vadd.f32 %v230, %v313
    %315 = vmatmul.f32.gmra.mxu0 %v162
    %v316 = vpop.f32.mrf.mxu0
    %v317 = vadd.f32 %v230, %v316
    %318 = vdwg.mxu0
    %319 = vmatpush.msra.mxu0 %v225
    %320 = vmatpush.msra.mxu0 %v221
    %321 = vmatpush.msra.mxu0 %v217
    %322 = vmatpush.msra.mxu0 %v213
    %323 = vmatpush.msra.mxu0 %v209
    %324 = vmatpush.msra.mxu0 %v205
    %325 = vmatpush.msra.mxu0 %v201
    %326 = vmatpush.msra.mxu0 %v197
    %327 = vmatpush.msra.mxu0 %v193
    %328 = vmatpush.msra.mxu0 %v189
    %329 = vmatpush.msra.mxu0 %v185
    %330 = vmatpush.msra.mxu0 %v181
    %331 = vmatpush.msra.mxu0 %v177
    %332 = vmatpush.msra.mxu0 %v173
    %333 = vmatpush.msra.mxu0 %v169
    %334 = vmatpush.msra.mxu0 %v165
    %335 = vmatmul.f32.gmra.mxu0 %v155
    %v336 = vpop.f32.mrf.mxu0
    %v337 = vadd.f32 %v231, %v336
    %338 = vmatmul.f32.gmra.mxu0 %v156
    %v339 = vpop.f32.mrf.mxu0
    %v340 = vadd.f32 %v231, %v339
    %341 = vmatmul.f32.gmra.mxu0 %v157
    %v342 = vpop.f32.mrf.mxu0
    %v343 = vadd.f32 %v231, %v342
    %344 = vmatmul.f32.gmra.mxu0 %v158
    %v345 = vpop.f32.mrf.mxu0
    %v346 = vadd.f32 %v231, %v345
    %347 = vmatmul.f32.gmra.mxu0 %v159
    %v348 = vpop.f32.mrf.mxu0
    %v349 = vadd.f32 %v231, %v348
    %350 = vmatmul.f32.gmra.mxu0 %v160
    %v351 = vpop.f32.mrf.mxu0
    %v352 = vadd.f32 %v231, %v351
    %353 = vmatmul.f32.gmra.mxu0 %v161
    %v354 = vpop.f32.mrf.mxu0
    %v355 = vadd.f32 %v231, %v354
    %356 = vmatmul.f32.gmra.mxu0 %v162
    %v357 = vpop.f32.mrf.mxu0
    %v358 = vadd.f32 %v231, %v357
    %359 = vdwg.mxu0
    %360 = vmatpush.msra.mxu0 %v226
    %361 = vmatpush.msra.mxu0 %v222
    %362 = vmatpush.msra.mxu0 %v218
    %363 = vmatpush.msra.mxu0 %v214
    %364 = vmatpush.msra.mxu0 %v210
    %365 = vmatpush.msra.mxu0 %v206
    %366 = vmatpush.msra.mxu0 %v202
    %367 = vmatpush.msra.mxu0 %v198
    %368 = vmatpush.msra.mxu0 %v194
    %369 = vmatpush.msra.mxu0 %v190
    %370 = vmatpush.msra.mxu0 %v186
    %371 = vmatpush.msra.mxu0 %v182
    %372 = vmatpush.msra.mxu0 %v178
    %373 = vmatpush.msra.mxu0 %v174
    %374 = vmatpush.msra.mxu0 %v170
    %375 = vmatpush.msra.mxu0 %v166
    %376 = vmatmul.f32.gmra.mxu0 %v155
    %v377 = vpop.f32.mrf.mxu0
    %v378 = vadd.f32 %v232, %v377
    %379 = vmatmul.f32.gmra.mxu0 %v156
    %v380 = vpop.f32.mrf.mxu0
    %v381 = vadd.f32 %v232, %v380
    %382 = vmatmul.f32.gmra.mxu0 %v157
    %v383 = vpop.f32.mrf.mxu0
    %v384 = vadd.f32 %v232, %v383
    %385 = vmatmul.f32.gmra.mxu0 %v158
    %v386 = vpop.f32.mrf.mxu0
    %v387 = vadd.f32 %v232, %v386
    %388 = vmatmul.f32.gmra.mxu0 %v159
    %v389 = vpop.f32.mrf.mxu0
    %v390 = vadd.f32 %v232, %v389
    %391 = vmatmul.f32.gmra.mxu0 %v160
    %v392 = vpop.f32.mrf.mxu0
    %v393 = vadd.f32 %v232, %v392
    %394 = vmatmul.f32.gmra.mxu0 %v161
    %v395 = vpop.f32.mrf.mxu0
    %v396 = vadd.f32 %v232, %v395
    %397 = vmatmul.f32.gmra.mxu0 %v162
    %v398 = vpop.f32.mrf.mxu0
    %v399 = vadd.f32 %v232, %v398
    %400 = vdwg.mxu0
    %401 = vst [vmem:[#allocation3] sm:$0xff] %v255
    %402 = vst [vmem:[#allocation3 + $0x8] sm:$0xff] %v296
    %403 = vst [vmem:[#allocation3 + $0x10] sm:$0xff] %v337
    %404 = vst [vmem:[#allocation3 + $0x18] sm:$0xff] %v378
    %405 = vst [vmem:[#allocation3 + $0x20] sm:$0xff] %v258
    %406 = vst [vmem:[#allocation3 + $0x28] sm:$0xff] %v299
    %407 = vst [vmem:[#allocation3 + $0x30] sm:$0xff] %v340
    %408 = vst [vmem:[#allocation3 + $0x38] sm:$0xff] %v381
    %409 = vst [vmem:[#allocation3 + $0x40] sm:$0xff] %v261
    %410 = vst [vmem:[#allocation3 + $0x48] sm:$0xff] %v302
    %411 = vst [vmem:[#allocation3 + $0x50] sm:$0xff] %v343
    %412 = vst [vmem:[#allocation3 + $0x58] sm:$0xff] %v384
    %413 = vst [vmem:[#allocation3 + $0x60] sm:$0xff] %v264
    %414 = vst [vmem:[#allocation3 + $0x68] sm:$0xff] %v305
    %415 = vst [vmem:[#allocation3 + $0x70] sm:$0xff] %v346
    %416 = vst [vmem:[#allocation3 + $0x78] sm:$0xff] %v387
    %417 = vst [vmem:[#allocation3 + $0x80] sm:$0xff] %v267
    %418 = vst [vmem:[#allocation3 + $0x88] sm:$0xff] %v308
    %419 = vst [vmem:[#allocation3 + $0x90] sm:$0xff] %v349
    %420 = vst [vmem:[#allocation3 + $0x98] sm:$0xff] %v390
    %421 = vst [vmem:[#allocation3 + $0xa0] sm:$0xff] %v270
    %422 = vst [vmem:[#allocation3 + $0xa8] sm:$0xff] %v311
    %423 = vst [vmem:[#allocation3 + $0xb0] sm:$0xff] %v352
    %424 = vst [vmem:[#allocation3 + $0xb8] sm:$0xff] %v393
    %425 = vst [vmem:[#allocation3 + $0xc0] sm:$0xff] %v273
    %426 = vst [vmem:[#allocation3 + $0xc8] sm:$0xff] %v314
    %427 = vst [vmem:[#allocation3 + $0xd0] sm:$0xff] %v355
    %428 = vst [vmem:[#allocation3 + $0xd8] sm:$0xff] %v396
    %429 = vst [vmem:[#allocation3 + $0xe0] sm:$0xff] %v276
    %430 = vst [vmem:[#allocation3 + $0xe8] sm:$0xff] %v317
    %431 = vst [vmem:[#allocation3 + $0xf0] sm:$0xff] %v358
    %432 = vst [vmem:[#allocation3 + $0xf8] sm:$0xff] %v399
    %v433 = vld [vmem:[%s1] sm:$0xff]
    %434 = vst [vmem:[#allocation4] sm:$0xff] %v433
    %v435 = vld [vmem:[%s2] sm:$0xff]
    %436 = vst [vmem:[#allocation5] sm:$0xff] %v435
    %p437 = scmp.gt.s32.totalorder %s66, 0
    // Predicated region
    $region42: #{generator_forward.2} parent=1 // pred_check
      %p438 = pneg %p437
    $region43: #{generator_forward.2} parent=1 // pred_check_branch
      %440 = sbr.rel (%p438) target = $region45
    $region44: #{generator_forward.2} parent=1 // pred_region
      %v441 = vld [vmem:[#allocation4] sm:$0xff]
      %v442 = vld [vmem:[#allocation5] sm:$0xff]
      %v443 = vld [vmem:[#allocation3] sm:$0xff]
      %v444 = vld [vmem:[#allocation3 + $0x8] sm:$0xff]
      %v445 = vld [vmem:[#allocation3 + $0x10] sm:$0xff]
      %v446 = vld [vmem:[#allocation3 + $0x18] sm:$0xff]
      %447 = vmatpush.msra.mxu0 %v151
      %448 = vmatpush.msra.mxu0 %v147
      %449 = vmatpush.msra.mxu0 %v143
      %450 = vmatpush.msra.mxu0 %v139
      %451 = vmatpush.msra.mxu0 %v135
      %452 = vmatpush.msra.mxu0 %v131
      %453 = vmatpush.msra.mxu0 %v127
      %454 = vmatpush.msra.mxu0 %v123
      %455 = vmatpush.msra.mxu0 %v119
      %456 = vmatpush.msra.mxu0 %v115
      %457 = vmatpush.msra.mxu0 %v111
      %458 = vmatpush.msra.mxu0 %v107
      %459 = vmatpush.msra.mxu0 %v103
      %460 = vmatpush.msra.mxu0 %v99
      %461 = vmatpush.msra.mxu0 %v95
      %462 = vmatpush.msra.mxu0 %v91
      %463 = vmatmul.f32.gmra.mxu0 %v441
      %v464 = vpop.f32.mrf.mxu0
      %v465 = vadd.f32 0.0, %v464
      %466 = vdwg.mxu0
      %467 = vmatpush.msra.mxu0 %v152
      %468 = vmatpush.msra.mxu0 %v148
      %469 = vmatpush.msra.mxu0 %v144
      %470 = vmatpush.msra.mxu0 %v140
      %471 = vmatpush.msra.mxu0 %v136
      %472 = vmatpush.msra.mxu0 %v132
      %473 = vmatpush.msra.mxu0 %v128
      %474 = vmatpush.msra.mxu0 %v124
      %475 = vmatpush.msra.mxu0 %v120
      %476 = vmatpush.msra.mxu0 %v116
      %477 = vmatpush.msra.mxu0 %v112
      %478 = vmatpush.msra.mxu0 %v108
      %479 = vmatpush.msra.mxu0 %v104
      %480 = vmatpush.msra.mxu0 %v100
      %481 = vmatpush.msra.mxu0 %v96
      %482 = vmatpush.msra.mxu0 %v92
      %483 = vmatmul.f32.gmra.mxu0 %v441
      %v484 = vpop.f32.mrf.mxu0
      %v485 = vadd.f32 0.0, %v484
      %486 = vdwg.mxu0
      %487 = vmatpush.msra.mxu0 %v153
      %488 = vmatpush.msra.mxu0 %v149
      %489 = vmatpush.msra.mxu0 %v145
      %490 = vmatpush.msra.mxu0 %v141
      %491 = vmatpush.msra.mxu0 %v137
      %492 = vmatpush.msra.mxu0 %v133
      %493 = vmatpush.msra.mxu0 %v129
      %494 = vmatpush.msra.mxu0 %v125
      %495 = vmatpush.msra.mxu0 %v121
      %496 = vmatpush.msra.mxu0 %v117
      %497 = vmatpush.msra.mxu0 %v113
      %498 = vmatpush.msra.mxu0 %v109
      %499 = vmatpush.msra.mxu0 %v105
      %500 = vmatpush.msra.mxu0 %v101
      %501 = vmatpush.msra.mxu0 %v97
      %502 = vmatpush.msra.mxu0 %v93
      %503 = vmatmul.f32.gmra.mxu0 %v441
      %v504 = vpop.f32.mrf.mxu0
      %v505 = vadd.f32 0.0, %v504
      %506 = vdwg.mxu0
      %507 = vmatpush.msra.mxu0 %v154
      %508 = vmatpush.msra.mxu0 %v150
      %509 = vmatpush.msra.mxu0 %v146
      %510 = vmatpush.msra.mxu0 %v142
      %511 = vmatpush.msra.mxu0 %v138
      %512 = vmatpush.msra.mxu0 %v134
      %513 = vmatpush.msra.mxu0 %v130
      %514 = vmatpush.msra.mxu0 %v126
      %515 = vmatpush.msra.mxu0 %v122
      %516 = vmatpush.msra.mxu0 %v118
      %517 = vmatpush.msra.mxu0 %v114
      %518 = vmatpush.msra.mxu0 %v110
      %519 = vmatpush.msra.mxu0 %v106
      %520 = vmatpush.msra.mxu0 %v102
      %521 = vmatpush.msra.mxu0 %v98
      %522 = vmatpush.msra.mxu0 %v94
      %523 = vmatmul.f32.gmra.mxu0 %v441
      %v524 = vpop.f32.mrf.mxu0
      %v525 = vadd.f32 0.0, %v524
      %526 = vdwg.mxu0
      %v527 = vadd.f32 %v443, %v465
      %v528 = vadd.f32 %v444, %v485
      %v529 = vadd.f32 %v445, %v505
      %v530 = vadd.f32 %v446, %v525
      %v531 = vxor.u32 %v527, 2147483648
      %v532 = vmul.f32 %v531, 1.442695
      %v533 = vpow.pop %v532
      %v534 = vadd.f32 %v533, 1.0
      %v535 = vrcp.pop %v534
      %v536 = vmul.f32 %v534, %v535
      %v537 = vsub.f32 1.0, %v536
      %v538 = vmul.f32 %v535, %v537
      %v539 = vadd.f32 %v535, %v538
      %vm540 = vweird.f32 %v534
      %vm541 = vweird.f32 %v535
      %vm542 = vmor %vm540, %vm541
      %v543 = vsel %vm542, %v535, %v539
      %v544 = vand.u32 2147483647, %v534
      %vm545 = vcmp.eq.f32.partialorder %v544, 8.507059e+37
      %v546 = vand.u32 %v534, 2147483648
      %v547 = vor.u32 1.1754944e-38, %v546
      %v548 = vsel %vm545, %v547, %v543
      %v549 = vmul.f32 1.0, %v548
      %v550 = vxor.u32 %v528, 2147483648
      %v551 = vmul.f32 %v550, 1.442695
      %v552 = vpow.pop %v551
      %v553 = vadd.f32 %v552, 1.0
      %v554 = vrcp.pop %v553
      %v555 = vmul.f32 %v553, %v554
      %v556 = vsub.f32 1.0, %v555
      %v557 = vmul.f32 %v554, %v556
      %v558 = vadd.f32 %v554, %v557
      %vm559 = vweird.f32 %v553
      %vm560 = vweird.f32 %v554
      %vm561 = vmor %vm559, %vm560
      %v562 = vsel %vm561, %v554, %v558
      %v563 = vand.u32 2147483647, %v553
      %vm564 = vcmp.eq.f32.partialorder %v563, 8.507059e+37
      %v565 = vand.u32 %v553, 2147483648
      %v566 = vor.u32 1.1754944e-38, %v565
      %v567 = vsel %vm564, %v566, %v562
      %v568 = vmul.f32 1.0, %v567
      %v569 = vtanh.pop %v529
      %v570 = vxor.u32 %v530, 2147483648
      %v571 = vmul.f32 %v570, 1.442695
      %v572 = vpow.pop %v571
      %v573 = vadd.f32 %v572, 1.0
      %v574 = vrcp.pop %v573
      %v575 = vmul.f32 %v573, %v574
      %v576 = vsub.f32 1.0, %v575
      %v577 = vmul.f32 %v574, %v576
      %v578 = vadd.f32 %v574, %v577
      %vm579 = vweird.f32 %v573
      %vm580 = vweird.f32 %v574
      %vm581 = vmor %vm579, %vm580
      %v582 = vsel %vm581, %v574, %v578
      %v583 = vand.u32 2147483647, %v573
      %vm584 = vcmp.eq.f32.partialorder %v583, 8.507059e+37
      %v585 = vand.u32 %v573, 2147483648
      %v586 = vor.u32 1.1754944e-38, %v585
      %v587 = vsel %vm584, %v586, %v582
      %v588 = vmul.f32 1.0, %v587
      %v589 = vmul.f32 %v568, %v442
      %v590 = vmul.f32 %v549, %v569
      %v591 = vadd.f32 %v589, %v590
      %v592 = vtanh.pop %v591
      %v593 = vmul.f32 %v588, %v592
      %vm594 = vcmp.gt.s32.totalorder %v65, 0
      %v595 = vsel %vm594, 1, 0
      %596 = vset.pattern.permute.xlu0 0
      %597 = vperm.xlu0 %596, %v595
      %v598 = vpop.permute.xlu0 %597
      %vm599 = vcmp.eq.s32.totalorder %v598, 1
      %v600 = vsel %vm599, %v593, %v441
      %601 = vst [vmem:[#allocation4] sm:$0xff] %v600
      %v602 = vsel %vm599, %v591, %v442
      %603 = vst [vmem:[#allocation5] sm:$0xff] %v602
      %604 = vst [vmem:[#allocation2] sm:$0xff] %v593
    $region45: #{generator_forward.2} parent=1 // pred_fallthru
      _
    %p605 = scmp.gt.s32.totalorder %s66, 1
    // Predicated region
    $region46: #{generator_forward.2} parent=1 // pred_check
      %p606 = pneg %p605
    $region47: #{generator_forward.2} parent=1 // pred_check_branch
      %608 = sbr.rel (%p606) target = $region49
    $region48: #{generator_forward.2} parent=1 // pred_region
      %v609 = vld [vmem:[#allocation4] sm:$0xff]
      %v610 = vld [vmem:[#allocation5] sm:$0xff]
      %v611 = vld [vmem:[#allocation3 + $0x20] sm:$0xff]
      %v612 = vld [vmem:[#allocation3 + $0x28] sm:$0xff]
      %v613 = vld [vmem:[#allocation3 + $0x30] sm:$0xff]
      %v614 = vld [vmem:[#allocation3 + $0x38] sm:$0xff]
      %615 = vmatpush.msra.mxu0 %v151
      %616 = vmatpush.msra.mxu0 %v147
      %617 = vmatpush.msra.mxu0 %v143
      %618 = vmatpush.msra.mxu0 %v139
      %619 = vmatpush.msra.mxu0 %v135
      %620 = vmatpush.msra.mxu0 %v131
      %621 = vmatpush.msra.mxu0 %v127
      %622 = vmatpush.msra.mxu0 %v123
      %623 = vmatpush.msra.mxu0 %v119
      %624 = vmatpush.msra.mxu0 %v115
      %625 = vmatpush.msra.mxu0 %v111
      %626 = vmatpush.msra.mxu0 %v107
      %627 = vmatpush.msra.mxu0 %v103
      %628 = vmatpush.msra.mxu0 %v99
      %629 = vmatpush.msra.mxu0 %v95
      %630 = vmatpush.msra.mxu0 %v91
      %631 = vmatmul.f32.gmra.mxu0 %v609
      %v632 = vpop.f32.mrf.mxu0
      %v633 = vadd.f32 0.0, %v632
      %634 = vdwg.mxu0
      %635 = vmatpush.msra.mxu0 %v152
      %636 = vmatpush.msra.mxu0 %v148
      %637 = vmatpush.msra.mxu0 %v144
      %638 = vmatpush.msra.mxu0 %v140
      %639 = vmatpush.msra.mxu0 %v136
      %640 = vmatpush.msra.mxu0 %v132
      %641 = vmatpush.msra.mxu0 %v128
      %642 = vmatpush.msra.mxu0 %v124
      %643 = vmatpush.msra.mxu0 %v120
      %644 = vmatpush.msra.mxu0 %v116
      %645 = vmatpush.msra.mxu0 %v112
      %646 = vmatpush.msra.mxu0 %v108
      %647 = vmatpush.msra.mxu0 %v104
      %648 = vmatpush.msra.mxu0 %v100
      %649 = vmatpush.msra.mxu0 %v96
      %650 = vmatpush.msra.mxu0 %v92
      %651 = vmatmul.f32.gmra.mxu0 %v609
      %v652 = vpop.f32.mrf.mxu0
      %v653 = vadd.f32 0.0, %v652
      %654 = vdwg.mxu0
      %655 = vmatpush.msra.mxu0 %v153
      %656 = vmatpush.msra.mxu0 %v149
      %657 = vmatpush.msra.mxu0 %v145
      %658 = vmatpush.msra.mxu0 %v141
      %659 = vmatpush.msra.mxu0 %v137
      %660 = vmatpush.msra.mxu0 %v133
      %661 = vmatpush.msra.mxu0 %v129
      %662 = vmatpush.msra.mxu0 %v125
      %663 = vmatpush.msra.mxu0 %v121
      %664 = vmatpush.msra.mxu0 %v117
      %665 = vmatpush.msra.mxu0 %v113
      %666 = vmatpush.msra.mxu0 %v109
      %667 = vmatpush.msra.mxu0 %v105
      %668 = vmatpush.msra.mxu0 %v101
      %669 = vmatpush.msra.mxu0 %v97
      %670 = vmatpush.msra.mxu0 %v93
      %671 = vmatmul.f32.gmra.mxu0 %v609
      %v672 = vpop.f32.mrf.mxu0
      %v673 = vadd.f32 0.0, %v672
      %674 = vdwg.mxu0
      %675 = vmatpush.msra.mxu0 %v154
      %676 = vmatpush.msra.mxu0 %v150
      %677 = vmatpush.msra.mxu0 %v146
      %678 = vmatpush.msra.mxu0 %v142
      %679 = vmatpush.msra.mxu0 %v138
      %680 = vmatpush.msra.mxu0 %v134
      %681 = vmatpush.msra.mxu0 %v130
      %682 = vmatpush.msra.mxu0 %v126
      %683 = vmatpush.msra.mxu0 %v122
      %684 = vmatpush.msra.mxu0 %v118
      %685 = vmatpush.msra.mxu0 %v114
      %686 = vmatpush.msra.mxu0 %v110
      %687 = vmatpush.msra.mxu0 %v106
      %688 = vmatpush.msra.mxu0 %v102
      %689 = vmatpush.msra.mxu0 %v98
      %690 = vmatpush.msra.mxu0 %v94
      %691 = vmatmul.f32.gmra.mxu0 %v609
      %v692 = vpop.f32.mrf.mxu0
      %v693 = vadd.f32 0.0, %v692
      %694 = vdwg.mxu0
      %v695 = vadd.f32 %v611, %v633
      %v696 = vadd.f32 %v612, %v653
      %v697 = vadd.f32 %v613, %v673
      %v698 = vadd.f32 %v614, %v693
      %v699 = vxor.u32 %v695, 2147483648
      %v700 = vmul.f32 %v699, 1.442695
      %v701 = vpow.pop %v700
      %v702 = vadd.f32 %v701, 1.0
      %v703 = vrcp.pop %v702
      %v704 = vmul.f32 %v702, %v703
      %v705 = vsub.f32 1.0, %v704
      %v706 = vmul.f32 %v703, %v705
      %v707 = vadd.f32 %v703, %v706
      %vm708 = vweird.f32 %v702
      %vm709 = vweird.f32 %v703
      %vm710 = vmor %vm708, %vm709
      %v711 = vsel %vm710, %v703, %v707
      %v712 = vand.u32 2147483647, %v702
      %vm713 = vcmp.eq.f32.partialorder %v712, 8.507059e+37
      %v714 = vand.u32 %v702, 2147483648
      %v715 = vor.u32 1.1754944e-38, %v714
      %v716 = vsel %vm713, %v715, %v711
      %v717 = vmul.f32 1.0, %v716
      %v718 = vxor.u32 %v696, 2147483648
      %v719 = vmul.f32 %v718, 1.442695
      %v720 = vpow.pop %v719
      %v721 = vadd.f32 %v720, 1.0
      %v722 = vrcp.pop %v721
      %v723 = vmul.f32 %v721, %v722
      %v724 = vsub.f32 1.0, %v723
      %v725 = vmul.f32 %v722, %v724
      %v726 = vadd.f32 %v722, %v725
      %vm727 = vweird.f32 %v721
      %vm728 = vweird.f32 %v722
      %vm729 = vmor %vm727, %vm728
      %v730 = vsel %vm729, %v722, %v726
      %v731 = vand.u32 2147483647, %v721
      %vm732 = vcmp.eq.f32.partialorder %v731, 8.507059e+37
      %v733 = vand.u32 %v721, 2147483648
      %v734 = vor.u32 1.1754944e-38, %v733
      %v735 = vsel %vm732, %v734, %v730
      %v736 = vmul.f32 1.0, %v735
      %v737 = vtanh.pop %v697
      %v738 = vxor.u32 %v698, 2147483648
      %v739 = vmul.f32 %v738, 1.442695
      %v740 = vpow.pop %v739
      %v741 = vadd.f32 %v740, 1.0
      %v742 = vrcp.pop %v741
      %v743 = vmul.f32 %v741, %v742
      %v744 = vsub.f32 1.0, %v743
      %v745 = vmul.f32 %v742, %v744
      %v746 = vadd.f32 %v742, %v745
      %vm747 = vweird.f32 %v741
      %vm748 = vweird.f32 %v742
      %vm749 = vmor %vm747, %vm748
      %v750 = vsel %vm749, %v742, %v746
      %v751 = vand.u32 2147483647, %v741
      %vm752 = vcmp.eq.f32.partialorder %v751, 8.507059e+37
      %v753 = vand.u32 %v741, 2147483648
      %v754 = vor.u32 1.1754944e-38, %v753
      %v755 = vsel %vm752, %v754, %v750
      %v756 = vmul.f32 1.0, %v755
      %v757 = vmul.f32 %v736, %v610
      %v758 = vmul.f32 %v717, %v737
      %v759 = vadd.f32 %v757, %v758
      %v760 = vtanh.pop %v759
      %v761 = vmul.f32 %v756, %v760
      %vm762 = vcmp.gt.s32.totalorder %v65, 1
      %v763 = vsel %vm762, 1, 0
      %764 = vset.pattern.permute.xlu0 0
      %765 = vperm.xlu0 %764, %v763
      %v766 = vpop.permute.xlu0 %765
      %vm767 = vcmp.eq.s32.totalorder %v766, 1
      %v768 = vsel %vm767, %v761, %v609
      %769 = vst [vmem:[#allocation4] sm:$0xff] %v768
      %v770 = vsel %vm767, %v759, %v610
      %771 = vst [vmem:[#allocation5] sm:$0xff] %v770
      %772 = vst [vmem:[#allocation2 + $0x8] sm:$0xff] %v761
    $region49: #{generator_forward.2} parent=1 // pred_fallthru
      _
    %p773 = scmp.gt.s32.totalorder %s66, 2
    // Predicated region
    $region50: #{generator_forward.2} parent=1 // pred_check
      %p774 = pneg %p773
    $region51: #{generator_forward.2} parent=1 // pred_check_branch
      %776 = sbr.rel (%p774) target = $region53
    $region52: #{generator_forward.2} parent=1 // pred_region
      %v777 = vld [vmem:[#allocation4] sm:$0xff]
      %v778 = vld [vmem:[#allocation5] sm:$0xff]
      %v779 = vld [vmem:[#allocation3 + $0x40] sm:$0xff]
      %v780 = vld [vmem:[#allocation3 + $0x48] sm:$0xff]
      %v781 = vld [vmem:[#allocation3 + $0x50] sm:$0xff]
      %v782 = vld [vmem:[#allocation3 + $0x58] sm:$0xff]
      %783 = vmatpush.msra.mxu0 %v151
      %784 = vmatpush.msra.mxu0 %v147
      %785 = vmatpush.msra.mxu0 %v143
      %786 = vmatpush.msra.mxu0 %v139
      %787 = vmatpush.msra.mxu0 %v135
      %788 = vmatpush.msra.mxu0 %v131
      %789 = vmatpush.msra.mxu0 %v127
      %790 = vmatpush.msra.mxu0 %v123
      %791 = vmatpush.msra.mxu0 %v119
      %792 = vmatpush.msra.mxu0 %v115
      %793 = vmatpush.msra.mxu0 %v111
      %794 = vmatpush.msra.mxu0 %v107
      %795 = vmatpush.msra.mxu0 %v103
      %796 = vmatpush.msra.mxu0 %v99
      %797 = vmatpush.msra.mxu0 %v95
      %798 = vmatpush.msra.mxu0 %v91
      %799 = vmatmul.f32.gmra.mxu0 %v777
      %v800 = vpop.f32.mrf.mxu0
      %v801 = vadd.f32 0.0, %v800
      %802 = vdwg.mxu0
      %803 = vmatpush.msra.mxu0 %v152
      %804 = vmatpush.msra.mxu0 %v148
      %805 = vmatpush.msra.mxu0 %v144
      %806 = vmatpush.msra.mxu0 %v140
      %807 = vmatpush.msra.mxu0 %v136
      %808 = vmatpush.msra.mxu0 %v132
      %809 = vmatpush.msra.mxu0 %v128
      %810 = vmatpush.msra.mxu0 %v124
      %811 = vmatpush.msra.mxu0 %v120
      %812 = vmatpush.msra.mxu0 %v116
      %813 = vmatpush.msra.mxu0 %v112
      %814 = vmatpush.msra.mxu0 %v108
      %815 = vmatpush.msra.mxu0 %v104
      %816 = vmatpush.msra.mxu0 %v100
      %817 = vmatpush.msra.mxu0 %v96
      %818 = vmatpush.msra.mxu0 %v92
      %819 = vmatmul.f32.gmra.mxu0 %v777
      %v820 = vpop.f32.mrf.mxu0
      %v821 = vadd.f32 0.0, %v820
      %822 = vdwg.mxu0
      %823 = vmatpush.msra.mxu0 %v153
      %824 = vmatpush.msra.mxu0 %v149
      %825 = vmatpush.msra.mxu0 %v145
      %826 = vmatpush.msra.mxu0 %v141
      %827 = vmatpush.msra.mxu0 %v137
      %828 = vmatpush.msra.mxu0 %v133
      %829 = vmatpush.msra.mxu0 %v129
      %830 = vmatpush.msra.mxu0 %v125
      %831 = vmatpush.msra.mxu0 %v121
      %832 = vmatpush.msra.mxu0 %v117
      %833 = vmatpush.msra.mxu0 %v113
      %834 = vmatpush.msra.mxu0 %v109
      %835 = vmatpush.msra.mxu0 %v105
      %836 = vmatpush.msra.mxu0 %v101
      %837 = vmatpush.msra.mxu0 %v97
      %838 = vmatpush.msra.mxu0 %v93
      %839 = vmatmul.f32.gmra.mxu0 %v777
      %v840 = vpop.f32.mrf.mxu0
      %v841 = vadd.f32 0.0, %v840
      %842 = vdwg.mxu0
      %843 = vmatpush.msra.mxu0 %v154
      %844 = vmatpush.msra.mxu0 %v150
      %845 = vmatpush.msra.mxu0 %v146
      %846 = vmatpush.msra.mxu0 %v142
      %847 = vmatpush.msra.mxu0 %v138
      %848 = vmatpush.msra.mxu0 %v134
      %849 = vmatpush.msra.mxu0 %v130
      %850 = vmatpush.msra.mxu0 %v126
      %851 = vmatpush.msra.mxu0 %v122
      %852 = vmatpush.msra.mxu0 %v118
      %853 = vmatpush.msra.mxu0 %v114
      %854 = vmatpush.msra.mxu0 %v110
      %855 = vmatpush.msra.mxu0 %v106
      %856 = vmatpush.msra.mxu0 %v102
      %857 = vmatpush.msra.mxu0 %v98
      %858 = vmatpush.msra.mxu0 %v94
      %859 = vmatmul.f32.gmra.mxu0 %v777
      %v860 = vpop.f32.mrf.mxu0
      %v861 = vadd.f32 0.0, %v860
      %862 = vdwg.mxu0
      %v863 = vadd.f32 %v779, %v801
      %v864 = vadd.f32 %v780, %v821
      %v865 = vadd.f32 %v781, %v841
      %v866 = vadd.f32 %v782, %v861
      %v867 = vxor.u32 %v863, 2147483648
      %v868 = vmul.f32 %v867, 1.442695
      %v869 = vpow.pop %v868
      %v870 = vadd.f32 %v869, 1.0
      %v871 = vrcp.pop %v870
      %v872 = vmul.f32 %v870, %v871
      %v873 = vsub.f32 1.0, %v872
      %v874 = vmul.f32 %v871, %v873
      %v875 = vadd.f32 %v871, %v874
      %vm876 = vweird.f32 %v870
      %vm877 = vweird.f32 %v871
      %vm878 = vmor %vm876, %vm877
      %v879 = vsel %vm878, %v871, %v875
      %v880 = vand.u32 2147483647, %v870
      %vm881 = vcmp.eq.f32.partialorder %v880, 8.507059e+37
      %v882 = vand.u32 %v870, 2147483648
      %v883 = vor.u32 1.1754944e-38, %v882
      %v884 = vsel %vm881, %v883, %v879
      %v885 = vmul.f32 1.0, %v884
      %v886 = vxor.u32 %v864, 2147483648
      %v887 = vmul.f32 %v886, 1.442695
      %v888 = vpow.pop %v887
      %v889 = vadd.f32 %v888, 1.0
      %v890 = vrcp.pop %v889
      %v891 = vmul.f32 %v889, %v890
      %v892 = vsub.f32 1.0, %v891
      %v893 = vmul.f32 %v890, %v892
      %v894 = vadd.f32 %v890, %v893
      %vm895 = vweird.f32 %v889
      %vm896 = vweird.f32 %v890
      %vm897 = vmor %vm895, %vm896
      %v898 = vsel %vm897, %v890, %v894
      %v899 = vand.u32 2147483647, %v889
      %vm900 = vcmp.eq.f32.partialorder %v899, 8.507059e+37
      %v901 = vand.u32 %v889, 2147483648
      %v902 = vor.u32 1.1754944e-38, %v901
      %v903 = vsel %vm900, %v902, %v898
      %v904 = vmul.f32 1.0, %v903
      %v905 = vtanh.pop %v865
      %v906 = vxor.u32 %v866, 2147483648
      %v907 = vmul.f32 %v906, 1.442695
      %v908 = vpow.pop %v907
      %v909 = vadd.f32 %v908, 1.0
      %v910 = vrcp.pop %v909
      %v911 = vmul.f32 %v909, %v910
      %v912 = vsub.f32 1.0, %v911
      %v913 = vmul.f32 %v910, %v912
      %v914 = vadd.f32 %v910, %v913
      %vm915 = vweird.f32 %v909
      %vm916 = vweird.f32 %v910
      %vm917 = vmor %vm915, %vm916
      %v918 = vsel %vm917, %v910, %v914
      %v919 = vand.u32 2147483647, %v909
      %vm920 = vcmp.eq.f32.partialorder %v919, 8.507059e+37
      %v921 = vand.u32 %v909, 2147483648
      %v922 = vor.u32 1.1754944e-38, %v921
      %v923 = vsel %vm920, %v922, %v918
      %v924 = vmul.f32 1.0, %v923
      %v925 = vmul.f32 %v904, %v778
      %v926 = vmul.f32 %v885, %v905
      %v927 = vadd.f32 %v925, %v926
      %v928 = vtanh.pop %v927
      %v929 = vmul.f32 %v924, %v928
      %vm930 = vcmp.gt.s32.totalorder %v65, 2
      %v931 = vsel %vm930, 1, 0
      %932 = vset.pattern.permute.xlu0 0
      %933 = vperm.xlu0 %932, %v931
      %v934 = vpop.permute.xlu0 %933
      %vm935 = vcmp.eq.s32.totalorder %v934, 1
      %v936 = vsel %vm935, %v929, %v777
      %937 = vst [vmem:[#allocation4] sm:$0xff] %v936
      %v938 = vsel %vm935, %v927, %v778
      %939 = vst [vmem:[#allocation5] sm:$0xff] %v938
      %940 = vst [vmem:[#allocation2 + $0x10] sm:$0xff] %v929
    $region53: #{generator_forward.2} parent=1 // pred_fallthru
      _
    %p941 = scmp.gt.s32.totalorder %s66, 3
    // Predicated region
    $region54: #{generator_forward.2} parent=1 // pred_check
      %p942 = pneg %p941
    $region55: #{generator_forward.2} parent=1 // pred_check_branch
      %944 = sbr.rel (%p942) target = $region57
    $region56: #{generator_forward.2} parent=1 // pred_region
      %v945 = vld [vmem:[#allocation4] sm:$0xff]
      %v946 = vld [vmem:[#allocation5] sm:$0xff]
      %v947 = vld [vmem:[#allocation3 + $0x60] sm:$0xff]
      %v948 = vld [vmem:[#allocation3 + $0x68] sm:$0xff]
      %v949 = vld [vmem:[#allocation3 + $0x70] sm:$0xff]
      %v950 = vld [vmem:[#allocation3 + $0x78] sm:$0xff]
      %951 = vmatpush.msra.mxu0 %v151
      %952 = vmatpush.msra.mxu0 %v147
      %953 = vmatpush.msra.mxu0 %v143
      %954 = vmatpush.msra.mxu0 %v139
      %955 = vmatpush.msra.mxu0 %v135
      %956 = vmatpush.msra.mxu0 %v131
      %957 = vmatpush.msra.mxu0 %v127
      %958 = vmatpush.msra.mxu0 %v123
      %959 = vmatpush.msra.mxu0 %v119
      %960 = vmatpush.msra.mxu0 %v115
      %961 = vmatpush.msra.mxu0 %v111
      %962 = vmatpush.msra.mxu0 %v107
      %963 = vmatpush.msra.mxu0 %v103
      %964 = vmatpush.msra.mxu0 %v99
      %965 = vmatpush.msra.mxu0 %v95
      %966 = vmatpush.msra.mxu0 %v91
      %967 = vmatmul.f32.gmra.mxu0 %v945
      %v968 = vpop.f32.mrf.mxu0
      %v969 = vadd.f32 0.0, %v968
      %970 = vdwg.mxu0
      %971 = vmatpush.msra.mxu0 %v152
      %972 = vmatpush.msra.mxu0 %v148
      %973 = vmatpush.msra.mxu0 %v144
      %974 = vmatpush.msra.mxu0 %v140
      %975 = vmatpush.msra.mxu0 %v136
      %976 = vmatpush.msra.mxu0 %v132
      %977 = vmatpush.msra.mxu0 %v128
      %978 = vmatpush.msra.mxu0 %v124
      %979 = vmatpush.msra.mxu0 %v120
      %980 = vmatpush.msra.mxu0 %v116
      %981 = vmatpush.msra.mxu0 %v112
      %982 = vmatpush.msra.mxu0 %v108
      %983 = vmatpush.msra.mxu0 %v104
      %984 = vmatpush.msra.mxu0 %v100
      %985 = vmatpush.msra.mxu0 %v96
      %986 = vmatpush.msra.mxu0 %v92
      %987 = vmatmul.f32.gmra.mxu0 %v945
      %v988 = vpop.f32.mrf.mxu0
      %v989 = vadd.f32 0.0, %v988
      %990 = vdwg.mxu0
      %991 = vmatpush.msra.mxu0 %v153
      %992 = vmatpush.msra.mxu0 %v149
      %993 = vmatpush.msra.mxu0 %v145
      %994 = vmatpush.msra.mxu0 %v141
      %995 = vmatpush.msra.mxu0 %v137
      %996 = vmatpush.msra.mxu0 %v133
      %997 = vmatpush.msra.mxu0 %v129
      %998 = vmatpush.msra.mxu0 %v125
      %999 = vmatpush.msra.mxu0 %v121
      %1000 = vmatpush.msra.mxu0 %v117
      %1001 = vmatpush.msra.mxu0 %v113
      %1002 = vmatpush.msra.mxu0 %v109
      %1003 = vmatpush.msra.mxu0 %v105
      %1004 = vmatpush.msra.mxu0 %v101
      %1005 = vmatpush.msra.mxu0 %v97
      %1006 = vmatpush.msra.mxu0 %v93
      %1007 = vmatmul.f32.gmra.mxu0 %v945
      %v1008 = vpop.f32.mrf.mxu0
      %v1009 = vadd.f32 0.0, %v1008
      %1010 = vdwg.mxu0
      %1011 = vmatpush.msra.mxu0 %v154
      %1012 = vmatpush.msra.mxu0 %v150
      %1013 = vmatpush.msra.mxu0 %v146
      %1014 = vmatpush.msra.mxu0 %v142
      %1015 = vmatpush.msra.mxu0 %v138
      %1016 = vmatpush.msra.mxu0 %v134
      %1017 = vmatpush.msra.mxu0 %v130
      %1018 = vmatpush.msra.mxu0 %v126
      %1019 = vmatpush.msra.mxu0 %v122
      %1020 = vmatpush.msra.mxu0 %v118
      %1021 = vmatpush.msra.mxu0 %v114
      %1022 = vmatpush.msra.mxu0 %v110
      %1023 = vmatpush.msra.mxu0 %v106
      %1024 = vmatpush.msra.mxu0 %v102
      %1025 = vmatpush.msra.mxu0 %v98
      %1026 = vmatpush.msra.mxu0 %v94
      %1027 = vmatmul.f32.gmra.mxu0 %v945
      %v1028 = vpop.f32.mrf.mxu0
      %v1029 = vadd.f32 0.0, %v1028
      %1030 = vdwg.mxu0
      %v1031 = vadd.f32 %v947, %v969
      %v1032 = vadd.f32 %v948, %v989
      %v1033 = vadd.f32 %v949, %v1009
      %v1034 = vadd.f32 %v950, %v1029
      %v1035 = vxor.u32 %v1031, 2147483648
      %v1036 = vmul.f32 %v1035, 1.442695
      %v1037 = vpow.pop %v1036
      %v1038 = vadd.f32 %v1037, 1.0
      %v1039 = vrcp.pop %v1038
      %v1040 = vmul.f32 %v1038, %v1039
      %v1041 = vsub.f32 1.0, %v1040
      %v1042 = vmul.f32 %v1039, %v1041
      %v1043 = vadd.f32 %v1039, %v1042
      %vm1044 = vweird.f32 %v1038
      %vm1045 = vweird.f32 %v1039
      %vm1046 = vmor %vm1044, %vm1045
      %v1047 = vsel %vm1046, %v1039, %v1043
      %v1048 = vand.u32 2147483647, %v1038
      %vm1049 = vcmp.eq.f32.partialorder %v1048, 8.507059e+37
      %v1050 = vand.u32 %v1038, 2147483648
      %v1051 = vor.u32 1.1754944e-38, %v1050
      %v1052 = vsel %vm1049, %v1051, %v1047
      %v1053 = vmul.f32 1.0, %v1052
      %v1054 = vxor.u32 %v1032, 2147483648
      %v1055 = vmul.f32 %v1054, 1.442695
      %v1056 = vpow.pop %v1055
      %v1057 = vadd.f32 %v1056, 1.0
      %v1058 = vrcp.pop %v1057
      %v1059 = vmul.f32 %v1057, %v1058
      %v1060 = vsub.f32 1.0, %v1059
      %v1061 = vmul.f32 %v1058, %v1060
      %v1062 = vadd.f32 %v1058, %v1061
      %vm1063 = vweird.f32 %v1057
      %vm1064 = vweird.f32 %v1058
      %vm1065 = vmor %vm1063, %vm1064
      %v1066 = vsel %vm1065, %v1058, %v1062
      %v1067 = vand.u32 2147483647, %v1057
      %vm1068 = vcmp.eq.f32.partialorder %v1067, 8.507059e+37
      %v1069 = vand.u32 %v1057, 2147483648
      %v1070 = vor.u32 1.1754944e-38, %v1069
      %v1071 = vsel %vm1068, %v1070, %v1066
      %v1072 = vmul.f32 1.0, %v1071
      %v1073 = vtanh.pop %v1033
      %v1074 = vxor.u32 %v1034, 2147483648
      %v1075 = vmul.f32 %v1074, 1.442695
      %v1076 = vpow.pop %v1075
      %v1077 = vadd.f32 %v1076, 1.0
      %v1078 = vrcp.pop %v1077
      %v1079 = vmul.f32 %v1077, %v1078
      %v1080 = vsub.f32 1.0, %v1079
      %v1081 = vmul.f32 %v1078, %v1080
      %v1082 = vadd.f32 %v1078, %v1081
      %vm1083 = vweird.f32 %v1077
      %vm1084 = vweird.f32 %v1078
      %vm1085 = vmor %vm1083, %vm1084
      %v1086 = vsel %vm1085, %v1078, %v1082
      %v1087 = vand.u32 2147483647, %v1077
      %vm1088 = vcmp.eq.f32.partialorder %v1087, 8.507059e+37
      %v1089 = vand.u32 %v1077, 2147483648
      %v1090 = vor.u32 1.1754944e-38, %v1089
      %v1091 = vsel %vm1088, %v1090, %v1086
      %v1092 = vmul.f32 1.0, %v1091
      %v1093 = vmul.f32 %v1072, %v946
      %v1094 = vmul.f32 %v1053, %v1073
      %v1095 = vadd.f32 %v1093, %v1094
      %v1096 = vtanh.pop %v1095
      %v1097 = vmul.f32 %v1092, %v1096
      %vm1098 = vcmp.gt.s32.totalorder %v65, 3
      %v1099 = vsel %vm1098, 1, 0
      %1100 = vset.pattern.permute.xlu0 0
      %1101 = vperm.xlu0 %1100, %v1099
      %v1102 = vpop.permute.xlu0 %1101
      %vm1103 = vcmp.eq.s32.totalorder %v1102, 1
      %v1104 = vsel %vm1103, %v1097, %v945
      %1105 = vst [vmem:[#allocation4] sm:$0xff] %v1104
      %v1106 = vsel %vm1103, %v1095, %v946
      %1107 = vst [vmem:[#allocation5] sm:$0xff] %v1106
      %1108 = vst [vmem:[#allocation2 + $0x18] sm:$0xff] %v1097
    $region57: #{generator_forward.2} parent=1 // pred_fallthru
      _
    %p1109 = scmp.gt.s32.totalorder %s66, 4
    // Predicated region
    $region58: #{generator_forward.2} parent=1 // pred_check
      %p1110 = pneg %p1109
    $region59: #{generator_forward.2} parent=1 // pred_check_branch
      %1112 = sbr.rel (%p1110) target = $region61
    $region60: #{generator_forward.2} parent=1 // pred_region
      %v1113 = vld [vmem:[#allocation4] sm:$0xff]
      %v1114 = vld [vmem:[#allocation5] sm:$0xff]
      %v1115 = vld [vmem:[#allocation3 + $0x80] sm:$0xff]
      %v1116 = vld [vmem:[#allocation3 + $0x88] sm:$0xff]
      %v1117 = vld [vmem:[#allocation3 + $0x90] sm:$0xff]
      %v1118 = vld [vmem:[#allocation3 + $0x98] sm:$0xff]
      %1119 = vmatpush.msra.mxu0 %v151
      %1120 = vmatpush.msra.mxu0 %v147
      %1121 = vmatpush.msra.mxu0 %v143
      %1122 = vmatpush.msra.mxu0 %v139
      %1123 = vmatpush.msra.mxu0 %v135
      %1124 = vmatpush.msra.mxu0 %v131
      %1125 = vmatpush.msra.mxu0 %v127
      %1126 = vmatpush.msra.mxu0 %v123
      %1127 = vmatpush.msra.mxu0 %v119
      %1128 = vmatpush.msra.mxu0 %v115
      %1129 = vmatpush.msra.mxu0 %v111
      %1130 = vmatpush.msra.mxu0 %v107
      %1131 = vmatpush.msra.mxu0 %v103
      %1132 = vmatpush.msra.mxu0 %v99
      %1133 = vmatpush.msra.mxu0 %v95
      %1134 = vmatpush.msra.mxu0 %v91
      %1135 = vmatmul.f32.gmra.mxu0 %v1113
      %v1136 = vpop.f32.mrf.mxu0
      %v1137 = vadd.f32 0.0, %v1136
      %1138 = vdwg.mxu0
      %1139 = vmatpush.msra.mxu0 %v152
      %1140 = vmatpush.msra.mxu0 %v148
      %1141 = vmatpush.msra.mxu0 %v144
      %1142 = vmatpush.msra.mxu0 %v140
      %1143 = vmatpush.msra.mxu0 %v136
      %1144 = vmatpush.msra.mxu0 %v132
      %1145 = vmatpush.msra.mxu0 %v128
      %1146 = vmatpush.msra.mxu0 %v124
      %1147 = vmatpush.msra.mxu0 %v120
      %1148 = vmatpush.msra.mxu0 %v116
      %1149 = vmatpush.msra.mxu0 %v112
      %1150 = vmatpush.msra.mxu0 %v108
      %1151 = vmatpush.msra.mxu0 %v104
      %1152 = vmatpush.msra.mxu0 %v100
      %1153 = vmatpush.msra.mxu0 %v96
      %1154 = vmatpush.msra.mxu0 %v92
      %1155 = vmatmul.f32.gmra.mxu0 %v1113
      %v1156 = vpop.f32.mrf.mxu0
      %v1157 = vadd.f32 0.0, %v1156
      %1158 = vdwg.mxu0
      %1159 = vmatpush.msra.mxu0 %v153
      %1160 = vmatpush.msra.mxu0 %v149
      %1161 = vmatpush.msra.mxu0 %v145
      %1162 = vmatpush.msra.mxu0 %v141
      %1163 = vmatpush.msra.mxu0 %v137
      %1164 = vmatpush.msra.mxu0 %v133
      %1165 = vmatpush.msra.mxu0 %v129
      %1166 = vmatpush.msra.mxu0 %v125
      %1167 = vmatpush.msra.mxu0 %v121
      %1168 = vmatpush.msra.mxu0 %v117
      %1169 = vmatpush.msra.mxu0 %v113
      %1170 = vmatpush.msra.mxu0 %v109
      %1171 = vmatpush.msra.mxu0 %v105
      %1172 = vmatpush.msra.mxu0 %v101
      %1173 = vmatpush.msra.mxu0 %v97
      %1174 = vmatpush.msra.mxu0 %v93
      %1175 = vmatmul.f32.gmra.mxu0 %v1113
      %v1176 = vpop.f32.mrf.mxu0
      %v1177 = vadd.f32 0.0, %v1176
      %1178 = vdwg.mxu0
      %1179 = vmatpush.msra.mxu0 %v154
      %1180 = vmatpush.msra.mxu0 %v150
      %1181 = vmatpush.msra.mxu0 %v146
      %1182 = vmatpush.msra.mxu0 %v142
      %1183 = vmatpush.msra.mxu0 %v138
      %1184 = vmatpush.msra.mxu0 %v134
      %1185 = vmatpush.msra.mxu0 %v130
      %1186 = vmatpush.msra.mxu0 %v126
      %1187 = vmatpush.msra.mxu0 %v122
      %1188 = vmatpush.msra.mxu0 %v118
      %1189 = vmatpush.msra.mxu0 %v114
      %1190 = vmatpush.msra.mxu0 %v110
      %1191 = vmatpush.msra.mxu0 %v106
      %1192 = vmatpush.msra.mxu0 %v102
      %1193 = vmatpush.msra.mxu0 %v98
      %1194 = vmatpush.msra.mxu0 %v94
      %1195 = vmatmul.f32.gmra.mxu0 %v1113
      %v1196 = vpop.f32.mrf.mxu0
      %v1197 = vadd.f32 0.0, %v1196
      %1198 = vdwg.mxu0
      %v1199 = vadd.f32 %v1115, %v1137
      %v1200 = vadd.f32 %v1116, %v1157
      %v1201 = vadd.f32 %v1117, %v1177
      %v1202 = vadd.f32 %v1118, %v1197
      %v1203 = vxor.u32 %v1199, 2147483648
      %v1204 = vmul.f32 %v1203, 1.442695
      %v1205 = vpow.pop %v1204
      %v1206 = vadd.f32 %v1205, 1.0
      %v1207 = vrcp.pop %v1206
      %v1208 = vmul.f32 %v1206, %v1207
      %v1209 = vsub.f32 1.0, %v1208
      %v1210 = vmul.f32 %v1207, %v1209
      %v1211 = vadd.f32 %v1207, %v1210
      %vm1212 = vweird.f32 %v1206
      %vm1213 = vweird.f32 %v1207
      %vm1214 = vmor %vm1212, %vm1213
      %v1215 = vsel %vm1214, %v1207, %v1211
      %v1216 = vand.u32 2147483647, %v1206
      %vm1217 = vcmp.eq.f32.partialorder %v1216, 8.507059e+37
      %v1218 = vand.u32 %v1206, 2147483648
      %v1219 = vor.u32 1.1754944e-38, %v1218
      %v1220 = vsel %vm1217, %v1219, %v1215
      %v1221 = vmul.f32 1.0, %v1220
      %v1222 = vxor.u32 %v1200, 2147483648
      %v1223 = vmul.f32 %v1222, 1.442695
      %v1224 = vpow.pop %v1223
      %v1225 = vadd.f32 %v1224, 1.0
      %v1226 = vrcp.pop %v1225
      %v1227 = vmul.f32 %v1225, %v1226
      %v1228 = vsub.f32 1.0, %v1227
      %v1229 = vmul.f32 %v1226, %v1228
      %v1230 = vadd.f32 %v1226, %v1229
      %vm1231 = vweird.f32 %v1225
      %vm1232 = vweird.f32 %v1226
      %vm1233 = vmor %vm1231, %vm1232
      %v1234 = vsel %vm1233, %v1226, %v1230
      %v1235 = vand.u32 2147483647, %v1225
      %vm1236 = vcmp.eq.f32.partialorder %v1235, 8.507059e+37
      %v1237 = vand.u32 %v1225, 2147483648
      %v1238 = vor.u32 1.1754944e-38, %v1237
      %v1239 = vsel %vm1236, %v1238, %v1234
      %v1240 = vmul.f32 1.0, %v1239
      %v1241 = vtanh.pop %v1201
      %v1242 = vxor.u32 %v1202, 2147483648
      %v1243 = vmul.f32 %v1242, 1.442695
      %v1244 = vpow.pop %v1243
      %v1245 = vadd.f32 %v1244, 1.0
      %v1246 = vrcp.pop %v1245
      %v1247 = vmul.f32 %v1245, %v1246
      %v1248 = vsub.f32 1.0, %v1247
      %v1249 = vmul.f32 %v1246, %v1248
      %v1250 = vadd.f32 %v1246, %v1249
      %vm1251 = vweird.f32 %v1245
      %vm1252 = vweird.f32 %v1246
      %vm1253 = vmor %vm1251, %vm1252
      %v1254 = vsel %vm1253, %v1246, %v1250
      %v1255 = vand.u32 2147483647, %v1245
      %vm1256 = vcmp.eq.f32.partialorder %v1255, 8.507059e+37
      %v1257 = vand.u32 %v1245, 2147483648
      %v1258 = vor.u32 1.1754944e-38, %v1257
      %v1259 = vsel %vm1256, %v1258, %v1254
      %v1260 = vmul.f32 1.0, %v1259
      %v1261 = vmul.f32 %v1240, %v1114
      %v1262 = vmul.f32 %v1221, %v1241
      %v1263 = vadd.f32 %v1261, %v1262
      %v1264 = vtanh.pop %v1263
      %v1265 = vmul.f32 %v1260, %v1264
      %vm1266 = vcmp.gt.s32.totalorder %v65, 4
      %v1267 = vsel %vm1266, 1, 0
      %1268 = vset.pattern.permute.xlu0 0
      %1269 = vperm.xlu0 %1268, %v1267
      %v1270 = vpop.permute.xlu0 %1269
      %vm1271 = vcmp.eq.s32.totalorder %v1270, 1
      %v1272 = vsel %vm1271, %v1265, %v1113
      %1273 = vst [vmem:[#allocation4] sm:$0xff] %v1272
      %v1274 = vsel %vm1271, %v1263, %v1114
      %1275 = vst [vmem:[#allocation5] sm:$0xff] %v1274
      %1276 = vst [vmem:[#allocation2 + $0x20] sm:$0xff] %v1265
    $region61: #{generator_forward.2} parent=1 // pred_fallthru
      _
    %p1277 = scmp.gt.s32.totalorder %s66, 5
    // Predicated region
    $region62: #{generator_forward.2} parent=1 // pred_check
      %p1278 = pneg %p1277
    $region63: #{generator_forward.2} parent=1 // pred_check_branch
      %1280 = sbr.rel (%p1278) target = $region65
    $region64: #{generator_forward.2} parent=1 // pred_region
      %v1281 = vld [vmem:[#allocation4] sm:$0xff]
      %v1282 = vld [vmem:[#allocation5] sm:$0xff]
      %v1283 = vld [vmem:[#allocation3 + $0xa0] sm:$0xff]
      %v1284 = vld [vmem:[#allocation3 + $0xa8] sm:$0xff]
      %v1285 = vld [vmem:[#allocation3 + $0xb0] sm:$0xff]
      %v1286 = vld [vmem:[#allocation3 + $0xb8] sm:$0xff]
      %1287 = vmatpush.msra.mxu0 %v151
      %1288 = vmatpush.msra.mxu0 %v147
      %1289 = vmatpush.msra.mxu0 %v143
      %1290 = vmatpush.msra.mxu0 %v139
      %1291 = vmatpush.msra.mxu0 %v135
      %1292 = vmatpush.msra.mxu0 %v131
      %1293 = vmatpush.msra.mxu0 %v127
      %1294 = vmatpush.msra.mxu0 %v123
      %1295 = vmatpush.msra.mxu0 %v119
      %1296 = vmatpush.msra.mxu0 %v115
      %1297 = vmatpush.msra.mxu0 %v111
      %1298 = vmatpush.msra.mxu0 %v107
      %1299 = vmatpush.msra.mxu0 %v103
      %1300 = vmatpush.msra.mxu0 %v99
      %1301 = vmatpush.msra.mxu0 %v95
      %1302 = vmatpush.msra.mxu0 %v91
      %1303 = vmatmul.f32.gmra.mxu0 %v1281
      %v1304 = vpop.f32.mrf.mxu0
      %v1305 = vadd.f32 0.0, %v1304
      %1306 = vdwg.mxu0
      %1307 = vmatpush.msra.mxu0 %v152
      %1308 = vmatpush.msra.mxu0 %v148
      %1309 = vmatpush.msra.mxu0 %v144
      %1310 = vmatpush.msra.mxu0 %v140
      %1311 = vmatpush.msra.mxu0 %v136
      %1312 = vmatpush.msra.mxu0 %v132
      %1313 = vmatpush.msra.mxu0 %v128
      %1314 = vmatpush.msra.mxu0 %v124
      %1315 = vmatpush.msra.mxu0 %v120
      %1316 = vmatpush.msra.mxu0 %v116
      %1317 = vmatpush.msra.mxu0 %v112
      %1318 = vmatpush.msra.mxu0 %v108
      %1319 = vmatpush.msra.mxu0 %v104
      %1320 = vmatpush.msra.mxu0 %v100
      %1321 = vmatpush.msra.mxu0 %v96
      %1322 = vmatpush.msra.mxu0 %v92
      %1323 = vmatmul.f32.gmra.mxu0 %v1281
      %v1324 = vpop.f32.mrf.mxu0
      %v1325 = vadd.f32 0.0, %v1324
      %1326 = vdwg.mxu0
      %1327 = vmatpush.msra.mxu0 %v153
      %1328 = vmatpush.msra.mxu0 %v149
      %1329 = vmatpush.msra.mxu0 %v145
      %1330 = vmatpush.msra.mxu0 %v141
      %1331 = vmatpush.msra.mxu0 %v137
      %1332 = vmatpush.msra.mxu0 %v133
      %1333 = vmatpush.msra.mxu0 %v129
      %1334 = vmatpush.msra.mxu0 %v125
      %1335 = vmatpush.msra.mxu0 %v121
      %1336 = vmatpush.msra.mxu0 %v117
      %1337 = vmatpush.msra.mxu0 %v113
      %1338 = vmatpush.msra.mxu0 %v109
      %1339 = vmatpush.msra.mxu0 %v105
      %1340 = vmatpush.msra.mxu0 %v101
      %1341 = vmatpush.msra.mxu0 %v97
      %1342 = vmatpush.msra.mxu0 %v93
      %1343 = vmatmul.f32.gmra.mxu0 %v1281
      %v1344 = vpop.f32.mrf.mxu0
      %v1345 = vadd.f32 0.0, %v1344
      %1346 = vdwg.mxu0
      %1347 = vmatpush.msra.mxu0 %v154
      %1348 = vmatpush.msra.mxu0 %v150
      %1349 = vmatpush.msra.mxu0 %v146
      %1350 = vmatpush.msra.mxu0 %v142
      %1351 = vmatpush.msra.mxu0 %v138
      %1352 = vmatpush.msra.mxu0 %v134
      %1353 = vmatpush.msra.mxu0 %v130
      %1354 = vmatpush.msra.mxu0 %v126
      %1355 = vmatpush.msra.mxu0 %v122
      %1356 = vmatpush.msra.mxu0 %v118
      %1357 = vmatpush.msra.mxu0 %v114
      %1358 = vmatpush.msra.mxu0 %v110
      %1359 = vmatpush.msra.mxu0 %v106
      %1360 = vmatpush.msra.mxu0 %v102
      %1361 = vmatpush.msra.mxu0 %v98
      %1362 = vmatpush.msra.mxu0 %v94
      %1363 = vmatmul.f32.gmra.mxu0 %v1281
      %v1364 = vpop.f32.mrf.mxu0
      %v1365 = vadd.f32 0.0, %v1364
      %1366 = vdwg.mxu0
      %v1367 = vadd.f32 %v1283, %v1305
      %v1368 = vadd.f32 %v1284, %v1325
      %v1369 = vadd.f32 %v1285, %v1345
      %v1370 = vadd.f32 %v1286, %v1365
      %v1371 = vxor.u32 %v1367, 2147483648
      %v1372 = vmul.f32 %v1371, 1.442695
      %v1373 = vpow.pop %v1372
      %v1374 = vadd.f32 %v1373, 1.0
      %v1375 = vrcp.pop %v1374
      %v1376 = vmul.f32 %v1374, %v1375
      %v1377 = vsub.f32 1.0, %v1376
      %v1378 = vmul.f32 %v1375, %v1377
      %v1379 = vadd.f32 %v1375, %v1378
      %vm1380 = vweird.f32 %v1374
      %vm1381 = vweird.f32 %v1375
      %vm1382 = vmor %vm1380, %vm1381
      %v1383 = vsel %vm1382, %v1375, %v1379
      %v1384 = vand.u32 2147483647, %v1374
      %vm1385 = vcmp.eq.f32.partialorder %v1384, 8.507059e+37
      %v1386 = vand.u32 %v1374, 2147483648
      %v1387 = vor.u32 1.1754944e-38, %v1386
      %v1388 = vsel %vm1385, %v1387, %v1383
      %v1389 = vmul.f32 1.0, %v1388
      %v1390 = vxor.u32 %v1368, 2147483648
      %v1391 = vmul.f32 %v1390, 1.442695
      %v1392 = vpow.pop %v1391
      %v1393 = vadd.f32 %v1392, 1.0
      %v1394 = vrcp.pop %v1393
      %v1395 = vmul.f32 %v1393, %v1394
      %v1396 = vsub.f32 1.0, %v1395
      %v1397 = vmul.f32 %v1394, %v1396
      %v1398 = vadd.f32 %v1394, %v1397
      %vm1399 = vweird.f32 %v1393
      %vm1400 = vweird.f32 %v1394
      %vm1401 = vmor %vm1399, %vm1400
      %v1402 = vsel %vm1401, %v1394, %v1398
      %v1403 = vand.u32 2147483647, %v1393
      %vm1404 = vcmp.eq.f32.partialorder %v1403, 8.507059e+37
      %v1405 = vand.u32 %v1393, 2147483648
      %v1406 = vor.u32 1.1754944e-38, %v1405
      %v1407 = vsel %vm1404, %v1406, %v1402
      %v1408 = vmul.f32 1.0, %v1407
      %v1409 = vtanh.pop %v1369
      %v1410 = vxor.u32 %v1370, 2147483648
      %v1411 = vmul.f32 %v1410, 1.442695
      %v1412 = vpow.pop %v1411
      %v1413 = vadd.f32 %v1412, 1.0
      %v1414 = vrcp.pop %v1413
      %v1415 = vmul.f32 %v1413, %v1414
      %v1416 = vsub.f32 1.0, %v1415
      %v1417 = vmul.f32 %v1414, %v1416
      %v1418 = vadd.f32 %v1414, %v1417
      %vm1419 = vweird.f32 %v1413
      %vm1420 = vweird.f32 %v1414
      %vm1421 = vmor %vm1419, %vm1420
      %v1422 = vsel %vm1421, %v1414, %v1418
      %v1423 = vand.u32 2147483647, %v1413
      %vm1424 = vcmp.eq.f32.partialorder %v1423, 8.507059e+37
      %v1425 = vand.u32 %v1413, 2147483648
      %v1426 = vor.u32 1.1754944e-38, %v1425
      %v1427 = vsel %vm1424, %v1426, %v1422
      %v1428 = vmul.f32 1.0, %v1427
      %v1429 = vmul.f32 %v1408, %v1282
      %v1430 = vmul.f32 %v1389, %v1409
      %v1431 = vadd.f32 %v1429, %v1430
      %v1432 = vtanh.pop %v1431
      %v1433 = vmul.f32 %v1428, %v1432
      %vm1434 = vcmp.gt.s32.totalorder %v65, 5
      %v1435 = vsel %vm1434, 1, 0
      %1436 = vset.pattern.permute.xlu0 0
      %1437 = vperm.xlu0 %1436, %v1435
      %v1438 = vpop.permute.xlu0 %1437
      %vm1439 = vcmp.eq.s32.totalorder %v1438, 1
      %v1440 = vsel %vm1439, %v1433, %v1281
      %1441 = vst [vmem:[#allocation4] sm:$0xff] %v1440
      %v1442 = vsel %vm1439, %v1431, %v1282
      %1443 = vst [vmem:[#allocation5] sm:$0xff] %v1442
      %1444 = vst [vmem:[#allocation2 + $0x28] sm:$0xff] %v1433
    $region65: #{generator_forward.2} parent=1 // pred_fallthru
      _
    %p1445 = scmp.gt.s32.totalorder %s66, 6
    // Predicated region
    $region66: #{generator_forward.2} parent=1 // pred_check
      %p1446 = pneg %p1445
    $region67: #{generator_forward.2} parent=1 // pred_check_branch
      %1448 = sbr.rel (%p1446) target = $region69
    $region68: #{generator_forward.2} parent=1 // pred_region
      %v1449 = vld [vmem:[#allocation4] sm:$0xff]
      %v1450 = vld [vmem:[#allocation5] sm:$0xff]
      %v1451 = vld [vmem:[#allocation3 + $0xc0] sm:$0xff]
      %v1452 = vld [vmem:[#allocation3 + $0xc8] sm:$0xff]
      %v1453 = vld [vmem:[#allocation3 + $0xd0] sm:$0xff]
      %v1454 = vld [vmem:[#allocation3 + $0xd8] sm:$0xff]
      %1455 = vmatpush.msra.mxu0 %v151
      %1456 = vmatpush.msra.mxu0 %v147
      %1457 = vmatpush.msra.mxu0 %v143
      %1458 = vmatpush.msra.mxu0 %v139
      %1459 = vmatpush.msra.mxu0 %v135
      %1460 = vmatpush.msra.mxu0 %v131
      %1461 = vmatpush.msra.mxu0 %v127
      %1462 = vmatpush.msra.mxu0 %v123
      %1463 = vmatpush.msra.mxu0 %v119
      %1464 = vmatpush.msra.mxu0 %v115
      %1465 = vmatpush.msra.mxu0 %v111
      %1466 = vmatpush.msra.mxu0 %v107
      %1467 = vmatpush.msra.mxu0 %v103
      %1468 = vmatpush.msra.mxu0 %v99
      %1469 = vmatpush.msra.mxu0 %v95
      %1470 = vmatpush.msra.mxu0 %v91
      %1471 = vmatmul.f32.gmra.mxu0 %v1449
      %v1472 = vpop.f32.mrf.mxu0
      %v1473 = vadd.f32 0.0, %v1472
      %1474 = vdwg.mxu0
      %1475 = vmatpush.msra.mxu0 %v152
      %1476 = vmatpush.msra.mxu0 %v148
      %1477 = vmatpush.msra.mxu0 %v144
      %1478 = vmatpush.msra.mxu0 %v140
      %1479 = vmatpush.msra.mxu0 %v136
      %1480 = vmatpush.msra.mxu0 %v132
      %1481 = vmatpush.msra.mxu0 %v128
      %1482 = vmatpush.msra.mxu0 %v124
      %1483 = vmatpush.msra.mxu0 %v120
      %1484 = vmatpush.msra.mxu0 %v116
      %1485 = vmatpush.msra.mxu0 %v112
      %1486 = vmatpush.msra.mxu0 %v108
      %1487 = vmatpush.msra.mxu0 %v104
      %1488 = vmatpush.msra.mxu0 %v100
      %1489 = vmatpush.msra.mxu0 %v96
      %1490 = vmatpush.msra.mxu0 %v92
      %1491 = vmatmul.f32.gmra.mxu0 %v1449
      %v1492 = vpop.f32.mrf.mxu0
      %v1493 = vadd.f32 0.0, %v1492
      %1494 = vdwg.mxu0
      %1495 = vmatpush.msra.mxu0 %v153
      %1496 = vmatpush.msra.mxu0 %v149
      %1497 = vmatpush.msra.mxu0 %v145
      %1498 = vmatpush.msra.mxu0 %v141
      %1499 = vmatpush.msra.mxu0 %v137
      %1500 = vmatpush.msra.mxu0 %v133
      %1501 = vmatpush.msra.mxu0 %v129
      %1502 = vmatpush.msra.mxu0 %v125
      %1503 = vmatpush.msra.mxu0 %v121
      %1504 = vmatpush.msra.mxu0 %v117
      %1505 = vmatpush.msra.mxu0 %v113
      %1506 = vmatpush.msra.mxu0 %v109
      %1507 = vmatpush.msra.mxu0 %v105
      %1508 = vmatpush.msra.mxu0 %v101
      %1509 = vmatpush.msra.mxu0 %v97
      %1510 = vmatpush.msra.mxu0 %v93
      %1511 = vmatmul.f32.gmra.mxu0 %v1449
      %v1512 = vpop.f32.mrf.mxu0
      %v1513 = vadd.f32 0.0, %v1512
      %1514 = vdwg.mxu0
      %1515 = vmatpush.msra.mxu0 %v154
      %1516 = vmatpush.msra.mxu0 %v150
      %1517 = vmatpush.msra.mxu0 %v146
      %1518 = vmatpush.msra.mxu0 %v142
      %1519 = vmatpush.msra.mxu0 %v138
      %1520 = vmatpush.msra.mxu0 %v134
      %1521 = vmatpush.msra.mxu0 %v130
      %1522 = vmatpush.msra.mxu0 %v126
      %1523 = vmatpush.msra.mxu0 %v122
      %1524 = vmatpush.msra.mxu0 %v118
      %1525 = vmatpush.msra.mxu0 %v114
      %1526 = vmatpush.msra.mxu0 %v110
      %1527 = vmatpush.msra.mxu0 %v106
      %1528 = vmatpush.msra.mxu0 %v102
      %1529 = vmatpush.msra.mxu0 %v98
      %1530 = vmatpush.msra.mxu0 %v94
      %1531 = vmatmul.f32.gmra.mxu0 %v1449
      %v1532 = vpop.f32.mrf.mxu0
      %v1533 = vadd.f32 0.0, %v1532
      %1534 = vdwg.mxu0
      %v1535 = vadd.f32 %v1451, %v1473
      %v1536 = vadd.f32 %v1452, %v1493
      %v1537 = vadd.f32 %v1453, %v1513
      %v1538 = vadd.f32 %v1454, %v1533
      %v1539 = vxor.u32 %v1535, 2147483648
      %v1540 = vmul.f32 %v1539, 1.442695
      %v1541 = vpow.pop %v1540
      %v1542 = vadd.f32 %v1541, 1.0
      %v1543 = vrcp.pop %v1542
      %v1544 = vmul.f32 %v1542, %v1543
      %v1545 = vsub.f32 1.0, %v1544
      %v1546 = vmul.f32 %v1543, %v1545
      %v1547 = vadd.f32 %v1543, %v1546
      %vm1548 = vweird.f32 %v1542
      %vm1549 = vweird.f32 %v1543
      %vm1550 = vmor %vm1548, %vm1549
      %v1551 = vsel %vm1550, %v1543, %v1547
      %v1552 = vand.u32 2147483647, %v1542
      %vm1553 = vcmp.eq.f32.partialorder %v1552, 8.507059e+37
      %v1554 = vand.u32 %v1542, 2147483648
      %v1555 = vor.u32 1.1754944e-38, %v1554
      %v1556 = vsel %vm1553, %v1555, %v1551
      %v1557 = vmul.f32 1.0, %v1556
      %v1558 = vxor.u32 %v1536, 2147483648
      %v1559 = vmul.f32 %v1558, 1.442695
      %v1560 = vpow.pop %v1559
      %v1561 = vadd.f32 %v1560, 1.0
      %v1562 = vrcp.pop %v1561
      %v1563 = vmul.f32 %v1561, %v1562
      %v1564 = vsub.f32 1.0, %v1563
      %v1565 = vmul.f32 %v1562, %v1564
      %v1566 = vadd.f32 %v1562, %v1565
      %vm1567 = vweird.f32 %v1561
      %vm1568 = vweird.f32 %v1562
      %vm1569 = vmor %vm1567, %vm1568
      %v1570 = vsel %vm1569, %v1562, %v1566
      %v1571 = vand.u32 2147483647, %v1561
      %vm1572 = vcmp.eq.f32.partialorder %v1571, 8.507059e+37
      %v1573 = vand.u32 %v1561, 2147483648
      %v1574 = vor.u32 1.1754944e-38, %v1573
      %v1575 = vsel %vm1572, %v1574, %v1570
      %v1576 = vmul.f32 1.0, %v1575
      %v1577 = vtanh.pop %v1537
      %v1578 = vxor.u32 %v1538, 2147483648
      %v1579 = vmul.f32 %v1578, 1.442695
      %v1580 = vpow.pop %v1579
      %v1581 = vadd.f32 %v1580, 1.0
      %v1582 = vrcp.pop %v1581
      %v1583 = vmul.f32 %v1581, %v1582
      %v1584 = vsub.f32 1.0, %v1583
      %v1585 = vmul.f32 %v1582, %v1584
      %v1586 = vadd.f32 %v1582, %v1585
      %vm1587 = vweird.f32 %v1581
      %vm1588 = vweird.f32 %v1582
      %vm1589 = vmor %vm1587, %vm1588
      %v1590 = vsel %vm1589, %v1582, %v1586
      %v1591 = vand.u32 2147483647, %v1581
      %vm1592 = vcmp.eq.f32.partialorder %v1591, 8.507059e+37
      %v1593 = vand.u32 %v1581, 2147483648
      %v1594 = vor.u32 1.1754944e-38, %v1593
      %v1595 = vsel %vm1592, %v1594, %v1590
      %v1596 = vmul.f32 1.0, %v1595
      %v1597 = vmul.f32 %v1576, %v1450
      %v1598 = vmul.f32 %v1557, %v1577
      %v1599 = vadd.f32 %v1597, %v1598
      %v1600 = vtanh.pop %v1599
      %v1601 = vmul.f32 %v1596, %v1600
      %vm1602 = vcmp.gt.s32.totalorder %v65, 6
      %v1603 = vsel %vm1602, 1, 0
      %1604 = vset.pattern.permute.xlu0 0
      %1605 = vperm.xlu0 %1604, %v1603
      %v1606 = vpop.permute.xlu0 %1605
      %vm1607 = vcmp.eq.s32.totalorder %v1606, 1
      %v1608 = vsel %vm1607, %v1601, %v1449
      %1609 = vst [vmem:[#allocation4] sm:$0xff] %v1608
      %v1610 = vsel %vm1607, %v1599, %v1450
      %1611 = vst [vmem:[#allocation5] sm:$0xff] %v1610
      %1612 = vst [vmem:[#allocation2 + $0x30] sm:$0xff] %v1601
    $region69: #{generator_forward.2} parent=1 // pred_fallthru
      _
    %p1613 = scmp.gt.s32.totalorder %s66, 7
    // Predicated region
    $region70: #{generator_forward.2} parent=1 // pred_check
      %p1614 = pneg %p1613
    $region71: #{generator_forward.2} parent=1 // pred_check_branch
      %1616 = sbr.rel (%p1614) target = $region73
    $region72: #{generator_forward.2} parent=1 // pred_region
      %v1617 = vld [vmem:[#allocation4] sm:$0xff]
      %v1618 = vld [vmem:[#allocation5] sm:$0xff]
      %v1619 = vld [vmem:[#allocation3 + $0xe0] sm:$0xff]
      %v1620 = vld [vmem:[#allocation3 + $0xe8] sm:$0xff]
      %v1621 = vld [vmem:[#allocation3 + $0xf0] sm:$0xff]
      %v1622 = vld [vmem:[#allocation3 + $0xf8] sm:$0xff]
      %1623 = vmatpush.msra.mxu0 %v151
      %1624 = vmatpush.msra.mxu0 %v147
      %1625 = vmatpush.msra.mxu0 %v143
      %1626 = vmatpush.msra.mxu0 %v139
      %1627 = vmatpush.msra.mxu0 %v135
      %1628 = vmatpush.msra.mxu0 %v131
      %1629 = vmatpush.msra.mxu0 %v127
      %1630 = vmatpush.msra.mxu0 %v123
      %1631 = vmatpush.msra.mxu0 %v119
      %1632 = vmatpush.msra.mxu0 %v115
      %1633 = vmatpush.msra.mxu0 %v111
      %1634 = vmatpush.msra.mxu0 %v107
      %1635 = vmatpush.msra.mxu0 %v103
      %1636 = vmatpush.msra.mxu0 %v99
      %1637 = vmatpush.msra.mxu0 %v95
      %1638 = vmatpush.msra.mxu0 %v91
      %1639 = vmatmul.f32.gmra.mxu0 %v1617
      %v1640 = vpop.f32.mrf.mxu0
      %v1641 = vadd.f32 0.0, %v1640
      %1642 = vdwg.mxu0
      %1643 = vmatpush.msra.mxu0 %v152
      %1644 = vmatpush.msra.mxu0 %v148
      %1645 = vmatpush.msra.mxu0 %v144
      %1646 = vmatpush.msra.mxu0 %v140
      %1647 = vmatpush.msra.mxu0 %v136
      %1648 = vmatpush.msra.mxu0 %v132
      %1649 = vmatpush.msra.mxu0 %v128
      %1650 = vmatpush.msra.mxu0 %v124
      %1651 = vmatpush.msra.mxu0 %v120
      %1652 = vmatpush.msra.mxu0 %v116
      %1653 = vmatpush.msra.mxu0 %v112
      %1654 = vmatpush.msra.mxu0 %v108
      %1655 = vmatpush.msra.mxu0 %v104
      %1656 = vmatpush.msra.mxu0 %v100
      %1657 = vmatpush.msra.mxu0 %v96
      %1658 = vmatpush.msra.mxu0 %v92
      %1659 = vmatmul.f32.gmra.mxu0 %v1617
      %v1660 = vpop.f32.mrf.mxu0
      %v1661 = vadd.f32 0.0, %v1660
      %1662 = vdwg.mxu0
      %1663 = vmatpush.msra.mxu0 %v153
      %1664 = vmatpush.msra.mxu0 %v149
      %1665 = vmatpush.msra.mxu0 %v145
      %1666 = vmatpush.msra.mxu0 %v141
      %1667 = vmatpush.msra.mxu0 %v137
      %1668 = vmatpush.msra.mxu0 %v133
      %1669 = vmatpush.msra.mxu0 %v129
      %1670 = vmatpush.msra.mxu0 %v125
      %1671 = vmatpush.msra.mxu0 %v121
      %1672 = vmatpush.msra.mxu0 %v117
      %1673 = vmatpush.msra.mxu0 %v113
      %1674 = vmatpush.msra.mxu0 %v109
      %1675 = vmatpush.msra.mxu0 %v105
      %1676 = vmatpush.msra.mxu0 %v101
      %1677 = vmatpush.msra.mxu0 %v97
      %1678 = vmatpush.msra.mxu0 %v93
      %1679 = vmatmul.f32.gmra.mxu0 %v1617
      %v1680 = vpop.f32.mrf.mxu0
      %v1681 = vadd.f32 0.0, %v1680
      %1682 = vdwg.mxu0
      %1683 = vmatpush.msra.mxu0 %v154
      %1684 = vmatpush.msra.mxu0 %v150
      %1685 = vmatpush.msra.mxu0 %v146
      %1686 = vmatpush.msra.mxu0 %v142
      %1687 = vmatpush.msra.mxu0 %v138
      %1688 = vmatpush.msra.mxu0 %v134
      %1689 = vmatpush.msra.mxu0 %v130
      %1690 = vmatpush.msra.mxu0 %v126
      %1691 = vmatpush.msra.mxu0 %v122
      %1692 = vmatpush.msra.mxu0 %v118
      %1693 = vmatpush.msra.mxu0 %v114
      %1694 = vmatpush.msra.mxu0 %v110
      %1695 = vmatpush.msra.mxu0 %v106
      %1696 = vmatpush.msra.mxu0 %v102
      %1697 = vmatpush.msra.mxu0 %v98
      %1698 = vmatpush.msra.mxu0 %v94
      %1699 = vmatmul.f32.gmra.mxu0 %v1617
      %v1700 = vpop.f32.mrf.mxu0
      %v1701 = vadd.f32 0.0, %v1700
      %1702 = vdwg.mxu0
      %v1703 = vadd.f32 %v1619, %v1641
      %v1704 = vadd.f32 %v1620, %v1661
      %v1705 = vadd.f32 %v1621, %v1681
      %v1706 = vadd.f32 %v1622, %v1701
      %v1707 = vxor.u32 %v1703, 2147483648
      %v1708 = vmul.f32 %v1707, 1.442695
      %v1709 = vpow.pop %v1708
      %v1710 = vadd.f32 %v1709, 1.0
      %v1711 = vrcp.pop %v1710
      %v1712 = vmul.f32 %v1710, %v1711
      %v1713 = vsub.f32 1.0, %v1712
      %v1714 = vmul.f32 %v1711, %v1713
      %v1715 = vadd.f32 %v1711, %v1714
      %vm1716 = vweird.f32 %v1710
      %vm1717 = vweird.f32 %v1711
      %vm1718 = vmor %vm1716, %vm1717
      %v1719 = vsel %vm1718, %v1711, %v1715
      %v1720 = vand.u32 2147483647, %v1710
      %vm1721 = vcmp.eq.f32.partialorder %v1720, 8.507059e+37
      %v1722 = vand.u32 %v1710, 2147483648
      %v1723 = vor.u32 1.1754944e-38, %v1722
      %v1724 = vsel %vm1721, %v1723, %v1719
      %v1725 = vmul.f32 1.0, %v1724
      %v1726 = vxor.u32 %v1704, 2147483648
      %v1727 = vmul.f32 %v1726, 1.442695
      %v1728 = vpow.pop %v1727
      %v1729 = vadd.f32 %v1728, 1.0
      %v1730 = vrcp.pop %v1729
      %v1731 = vmul.f32 %v1729, %v1730
      %v1732 = vsub.f32 1.0, %v1731
      %v1733 = vmul.f32 %v1730, %v1732
      %v1734 = vadd.f32 %v1730, %v1733
      %vm1735 = vweird.f32 %v1729
      %vm1736 = vweird.f32 %v1730
      %vm1737 = vmor %vm1735, %vm1736
      %v1738 = vsel %vm1737, %v1730, %v1734
      %v1739 = vand.u32 2147483647, %v1729
      %vm1740 = vcmp.eq.f32.partialorder %v1739, 8.507059e+37
      %v1741 = vand.u32 %v1729, 2147483648
      %v1742 = vor.u32 1.1754944e-38, %v1741
      %v1743 = vsel %vm1740, %v1742, %v1738
      %v1744 = vmul.f32 1.0, %v1743
      %v1745 = vtanh.pop %v1705
      %v1746 = vxor.u32 %v1706, 2147483648
      %v1747 = vmul.f32 %v1746, 1.442695
      %v1748 = vpow.pop %v1747
      %v1749 = vadd.f32 %v1748, 1.0
      %v1750 = vrcp.pop %v1749
      %v1751 = vmul.f32 %v1749, %v1750
      %v1752 = vsub.f32 1.0, %v1751
      %v1753 = vmul.f32 %v1750, %v1752
      %v1754 = vadd.f32 %v1750, %v1753
      %vm1755 = vweird.f32 %v1749
      %vm1756 = vweird.f32 %v1750
      %vm1757 = vmor %vm1755, %vm1756
      %v1758 = vsel %vm1757, %v1750, %v1754
      %v1759 = vand.u32 2147483647, %v1749
      %vm1760 = vcmp.eq.f32.partialorder %v1759, 8.507059e+37
      %v1761 = vand.u32 %v1749, 2147483648
      %v1762 = vor.u32 1.1754944e-38, %v1761
      %v1763 = vsel %vm1760, %v1762, %v1758
      %v1764 = vmul.f32 1.0, %v1763
      %v1765 = vmul.f32 %v1744, %v1618
      %v1766 = vmul.f32 %v1725, %v1745
      %v1767 = vadd.f32 %v1765, %v1766
      %v1768 = vtanh.pop %v1767
      %v1769 = vmul.f32 %v1764, %v1768
      %vm1770 = vcmp.gt.s32.totalorder %v65, 7
      %v1771 = vsel %vm1770, 1, 0
      %1772 = vset.pattern.permute.xlu0 0
      %1773 = vperm.xlu0 %1772, %v1771
      %v1774 = vpop.permute.xlu0 %1773
      %vm1775 = vcmp.eq.s32.totalorder %v1774, 1
      %v1776 = vsel %vm1775, %v1769, %v1617
      %1777 = vst [vmem:[#allocation4] sm:$0xff] %v1776
      %v1778 = vsel %vm1775, %v1767, %v1618
      %1779 = vst [vmem:[#allocation5] sm:$0xff] %v1778
      %1780 = vst [vmem:[#allocation2 + $0x38] sm:$0xff] %v1769
    $region73: #{generator_forward.2} parent=1 // pred_fallthru
      _
    %v1781 = vld [vmem:[#allocation4] sm:$0xff]
    %1782 = vst [vmem:[%s9] sm:$0xff] %v1781
    %v1783 = vld [vmem:[#allocation5] sm:$0xff]
    %1784 = vst [vmem:[%s10] sm:$0xff] %v1783
    %s1785 = scalar_lea.vmem [#allocation9], 512
    %v1786 = vld [vmem:[%s1785] sm:$0xff]
    %v1787 = vld [vmem:[%s1785 + $0x8] sm:$0xff]
    %v1788 = vld [vmem:[%s1785 + $0x10] sm:$0xff]
    %v1789 = vld [vmem:[%s1785 + $0x18] sm:$0xff]
    %v1790 = vld [vmem:[%s1785 + $0x20] sm:$0xff]
    %v1791 = vld [vmem:[%s1785 + $0x28] sm:$0xff]
    %v1792 = vld [vmem:[%s1785 + $0x30] sm:$0xff]
    %v1793 = vld [vmem:[%s1785 + $0x38] sm:$0xff]
    %v1794 = vld [vmem:[%s1785 + $0x40] sm:$0xff]
    %v1795 = vld [vmem:[%s1785 + $0x48] sm:$0xff]
    %v1796 = vld [vmem:[%s1785 + $0x50] sm:$0xff]
    %v1797 = vld [vmem:[%s1785 + $0x58] sm:$0xff]
    %v1798 = vld [vmem:[%s1785 + $0x60] sm:$0xff]
    %v1799 = vld [vmem:[%s1785 + $0x68] sm:$0xff]
    %v1800 = vld [vmem:[%s1785 + $0x70] sm:$0xff]
    %v1801 = vld [vmem:[%s1785 + $0x78] sm:$0xff]
    %v1802 = vld [vmem:[%s1785 + $0x80] sm:$0xff]
    %v1803 = vld [vmem:[%s1785 + $0x88] sm:$0xff]
    %v1804 = vld [vmem:[%s1785 + $0x90] sm:$0xff]
    %v1805 = vld [vmem:[%s1785 + $0x98] sm:$0xff]
    %v1806 = vld [vmem:[%s1785 + $0xa0] sm:$0xff]
    %v1807 = vld [vmem:[%s1785 + $0xa8] sm:$0xff]
    %v1808 = vld [vmem:[%s1785 + $0xb0] sm:$0xff]
    %v1809 = vld [vmem:[%s1785 + $0xb8] sm:$0xff]
    %v1810 = vld [vmem:[%s1785 + $0xc0] sm:$0xff]
    %v1811 = vld [vmem:[%s1785 + $0xc8] sm:$0xff]
    %v1812 = vld [vmem:[%s1785 + $0xd0] sm:$0xff]
    %v1813 = vld [vmem:[%s1785 + $0xd8] sm:$0xff]
    %v1814 = vld [vmem:[%s1785 + $0xe0] sm:$0xff]
    %v1815 = vld [vmem:[%s1785 + $0xe8] sm:$0xff]
    %v1816 = vld [vmem:[%s1785 + $0xf0] sm:$0xff]
    %v1817 = vld [vmem:[%s1785 + $0xf8] sm:$0xff]
    %v1818 = vld [vmem:[%s1785 + $0x100] sm:$0xff]
    %v1819 = vld [vmem:[%s1785 + $0x108] sm:$0xff]
    %v1820 = vld [vmem:[%s1785 + $0x110] sm:$0xff]
    %v1821 = vld [vmem:[%s1785 + $0x118] sm:$0xff]
    %v1822 = vld [vmem:[%s1785 + $0x120] sm:$0xff]
    %v1823 = vld [vmem:[%s1785 + $0x128] sm:$0xff]
    %v1824 = vld [vmem:[%s1785 + $0x130] sm:$0xff]
    %v1825 = vld [vmem:[%s1785 + $0x138] sm:$0xff]
    %v1826 = vld [vmem:[%s1785 + $0x140] sm:$0xff]
    %v1827 = vld [vmem:[%s1785 + $0x148] sm:$0xff]
    %v1828 = vld [vmem:[%s1785 + $0x150] sm:$0xff]
    %v1829 = vld [vmem:[%s1785 + $0x158] sm:$0xff]
    %v1830 = vld [vmem:[%s1785 + $0x160] sm:$0xff]
    %v1831 = vld [vmem:[%s1785 + $0x168] sm:$0xff]
    %v1832 = vld [vmem:[%s1785 + $0x170] sm:$0xff]
    %v1833 = vld [vmem:[%s1785 + $0x178] sm:$0xff]
    %v1834 = vld [vmem:[%s1785 + $0x180] sm:$0xff]
    %v1835 = vld [vmem:[%s1785 + $0x188] sm:$0xff]
    %v1836 = vld [vmem:[%s1785 + $0x190] sm:$0xff]
    %v1837 = vld [vmem:[%s1785 + $0x198] sm:$0xff]
    %v1838 = vld [vmem:[%s1785 + $0x1a0] sm:$0xff]
    %v1839 = vld [vmem:[%s1785 + $0x1a8] sm:$0xff]
    %v1840 = vld [vmem:[%s1785 + $0x1b0] sm:$0xff]
    %v1841 = vld [vmem:[%s1785 + $0x1b8] sm:$0xff]
    %v1842 = vld [vmem:[%s1785 + $0x1c0] sm:$0xff]
    %v1843 = vld [vmem:[%s1785 + $0x1c8] sm:$0xff]
    %v1844 = vld [vmem:[%s1785 + $0x1d0] sm:$0xff]
    %v1845 = vld [vmem:[%s1785 + $0x1d8] sm:$0xff]
    %v1846 = vld [vmem:[%s1785 + $0x1e0] sm:$0xff]
    %v1847 = vld [vmem:[%s1785 + $0x1e8] sm:$0xff]
    %v1848 = vld [vmem:[%s1785 + $0x1f0] sm:$0xff]
    %v1849 = vld [vmem:[%s1785 + $0x1f8] sm:$0xff]
    %v1850 = vld [vmem:[#allocation2] sm:$0xff]
    %v1851 = vld [vmem:[#allocation2 + $0x8] sm:$0xff]
    %v1852 = vld [vmem:[#allocation2 + $0x10] sm:$0xff]
    %v1853 = vld [vmem:[#allocation2 + $0x18] sm:$0xff]
    %v1854 = vld [vmem:[#allocation2 + $0x20] sm:$0xff]
    %v1855 = vld [vmem:[#allocation2 + $0x28] sm:$0xff]
    %v1856 = vld [vmem:[#allocation2 + $0x30] sm:$0xff]
    %v1857 = vld [vmem:[#allocation2 + $0x38] sm:$0xff]
    %s1858 = scalar_lea.vmem [#allocation7], 512
    %v1859 = vld [vmem:[%s1858] sm:$0xff]
    %v1860 = vld [vmem:[%s1858 + $0x8] sm:$0xff]
    %v1861 = vld [vmem:[%s1858 + $0x10] sm:$0xff]
    %v1862 = vld [vmem:[%s1858 + $0x18] sm:$0xff]
    %v1863 = vld [vmem:[%s1858 + $0x20] sm:$0xff]
    %v1864 = vld [vmem:[%s1858 + $0x28] sm:$0xff]
    %v1865 = vld [vmem:[%s1858 + $0x30] sm:$0xff]
    %v1866 = vld [vmem:[%s1858 + $0x38] sm:$0xff]
    %v1867 = vld [vmem:[%s1858 + $0x40] sm:$0xff]
    %v1868 = vld [vmem:[%s1858 + $0x48] sm:$0xff]
    %v1869 = vld [vmem:[%s1858 + $0x50] sm:$0xff]
    %v1870 = vld [vmem:[%s1858 + $0x58] sm:$0xff]
    %v1871 = vld [vmem:[%s1858 + $0x60] sm:$0xff]
    %v1872 = vld [vmem:[%s1858 + $0x68] sm:$0xff]
    %v1873 = vld [vmem:[%s1858 + $0x70] sm:$0xff]
    %v1874 = vld [vmem:[%s1858 + $0x78] sm:$0xff]
    %v1875 = vld [vmem:[%s1858 + $0x80] sm:$0xff]
    %v1876 = vld [vmem:[%s1858 + $0x88] sm:$0xff]
    %v1877 = vld [vmem:[%s1858 + $0x90] sm:$0xff]
    %v1878 = vld [vmem:[%s1858 + $0x98] sm:$0xff]
    %v1879 = vld [vmem:[%s1858 + $0xa0] sm:$0xff]
    %v1880 = vld [vmem:[%s1858 + $0xa8] sm:$0xff]
    %v1881 = vld [vmem:[%s1858 + $0xb0] sm:$0xff]
    %v1882 = vld [vmem:[%s1858 + $0xb8] sm:$0xff]
    %v1883 = vld [vmem:[%s1858 + $0xc0] sm:$0xff]
    %v1884 = vld [vmem:[%s1858 + $0xc8] sm:$0xff]
    %v1885 = vld [vmem:[%s1858 + $0xd0] sm:$0xff]
    %v1886 = vld [vmem:[%s1858 + $0xd8] sm:$0xff]
    %v1887 = vld [vmem:[%s1858 + $0xe0] sm:$0xff]
    %v1888 = vld [vmem:[%s1858 + $0xe8] sm:$0xff]
    %v1889 = vld [vmem:[%s1858 + $0xf0] sm:$0xff]
    %v1890 = vld [vmem:[%s1858 + $0xf8] sm:$0xff]
    %v1891 = vld [vmem:[%s1858 + $0x100] sm:$0xff]
    %v1892 = vld [vmem:[%s1858 + $0x108] sm:$0xff]
    %v1893 = vld [vmem:[%s1858 + $0x110] sm:$0xff]
    %v1894 = vld [vmem:[%s1858 + $0x118] sm:$0xff]
    %v1895 = vld [vmem:[%s1858 + $0x120] sm:$0xff]
    %v1896 = vld [vmem:[%s1858 + $0x128] sm:$0xff]
    %v1897 = vld [vmem:[%s1858 + $0x130] sm:$0xff]
    %v1898 = vld [vmem:[%s1858 + $0x138] sm:$0xff]
    %v1899 = vld [vmem:[%s1858 + $0x140] sm:$0xff]
    %v1900 = vld [vmem:[%s1858 + $0x148] sm:$0xff]
    %v1901 = vld [vmem:[%s1858 + $0x150] sm:$0xff]
    %v1902 = vld [vmem:[%s1858 + $0x158] sm:$0xff]
    %v1903 = vld [vmem:[%s1858 + $0x160] sm:$0xff]
    %v1904 = vld [vmem:[%s1858 + $0x168] sm:$0xff]
    %v1905 = vld [vmem:[%s1858 + $0x170] sm:$0xff]
    %v1906 = vld [vmem:[%s1858 + $0x178] sm:$0xff]
    %v1907 = vld [vmem:[%s1858 + $0x180] sm:$0xff]
    %v1908 = vld [vmem:[%s1858 + $0x188] sm:$0xff]
    %v1909 = vld [vmem:[%s1858 + $0x190] sm:$0xff]
    %v1910 = vld [vmem:[%s1858 + $0x198] sm:$0xff]
    %v1911 = vld [vmem:[%s1858 + $0x1a0] sm:$0xff]
    %v1912 = vld [vmem:[%s1858 + $0x1a8] sm:$0xff]
    %v1913 = vld [vmem:[%s1858 + $0x1b0] sm:$0xff]
    %v1914 = vld [vmem:[%s1858 + $0x1b8] sm:$0xff]
    %v1915 = vld [vmem:[%s1858 + $0x1c0] sm:$0xff]
    %v1916 = vld [vmem:[%s1858 + $0x1c8] sm:$0xff]
    %v1917 = vld [vmem:[%s1858 + $0x1d0] sm:$0xff]
    %v1918 = vld [vmem:[%s1858 + $0x1d8] sm:$0xff]
    %v1919 = vld [vmem:[%s1858 + $0x1e0] sm:$0xff]
    %v1920 = vld [vmem:[%s1858 + $0x1e8] sm:$0xff]
    %v1921 = vld [vmem:[%s1858 + $0x1f0] sm:$0xff]
    %v1922 = vld [vmem:[%s1858 + $0x1f8] sm:$0xff]
    %s1923 = scalar_lea.vmem %s7, 4
    %v1924 = vld [vmem:[%s1923] sm:$0xf]
    %v1926 = vperm.slane %v1924, 0
    %v1927 = vperm.slane %v1924, 1
    %v1928 = vperm.slane %v1924, 2
    %v1929 = vperm.slane %v1924, 3
    %1934 = vmatpush.msra.mxu0 %v1919
    %1935 = vmatpush.msra.mxu0 %v1915
    %1936 = vmatpush.msra.mxu0 %v1911
    %1937 = vmatpush.msra.mxu0 %v1907
    %1938 = vmatpush.msra.mxu0 %v1903
    %1939 = vmatpush.msra.mxu0 %v1899
    %1940 = vmatpush.msra.mxu0 %v1895
    %1941 = vmatpush.msra.mxu0 %v1891
    %1942 = vmatpush.msra.mxu0 %v1887
    %1943 = vmatpush.msra.mxu0 %v1883
    %1944 = vmatpush.msra.mxu0 %v1879
    %1945 = vmatpush.msra.mxu0 %v1875
    %1946 = vmatpush.msra.mxu0 %v1871
    %1947 = vmatpush.msra.mxu0 %v1867
    %1948 = vmatpush.msra.mxu0 %v1863
    %1949 = vmatpush.msra.mxu0 %v1859
    %1950 = vmatmul.f32.gmra.mxu0 %v1850
    %v1951 = vpop.f32.mrf.mxu0
    %v1952 = vadd.f32 %v1926, %v1951
    %1953 = vmatmul.f32.gmra.mxu0 %v1851
    %v1954 = vpop.f32.mrf.mxu0
    %v1955 = vadd.f32 %v1926, %v1954
    %1956 = vmatmul.f32.gmra.mxu0 %v1852
    %v1957 = vpop.f32.mrf.mxu0
    %v1958 = vadd.f32 %v1926, %v1957
    %1959 = vmatmul.f32.gmra.mxu0 %v1853
    %v1960 = vpop.f32.mrf.mxu0
    %v1961 = vadd.f32 %v1926, %v1960
    %1962 = vmatmul.f32.gmra.mxu0 %v1854
    %v1963 = vpop.f32.mrf.mxu0
    %v1964 = vadd.f32 %v1926, %v1963
    %1965 = vmatmul.f32.gmra.mxu0 %v1855
    %v1966 = vpop.f32.mrf.mxu0
    %v1967 = vadd.f32 %v1926, %v1966
    %1968 = vmatmul.f32.gmra.mxu0 %v1856
    %v1969 = vpop.f32.mrf.mxu0
    %v1970 = vadd.f32 %v1926, %v1969
    %1971 = vmatmul.f32.gmra.mxu0 %v1857
    %v1972 = vpop.f32.mrf.mxu0
    %v1973 = vadd.f32 %v1926, %v1972
    %1974 = vdwg.mxu0
    %1975 = vmatpush.msra.mxu0 %v1920
    %1976 = vmatpush.msra.mxu0 %v1916
    %1977 = vmatpush.msra.mxu0 %v1912
    %1978 = vmatpush.msra.mxu0 %v1908
    %1979 = vmatpush.msra.mxu0 %v1904
    %1980 = vmatpush.msra.mxu0 %v1900
    %1981 = vmatpush.msra.mxu0 %v1896
    %1982 = vmatpush.msra.mxu0 %v1892
    %1983 = vmatpush.msra.mxu0 %v1888
    %1984 = vmatpush.msra.mxu0 %v1884
    %1985 = vmatpush.msra.mxu0 %v1880
    %1986 = vmatpush.msra.mxu0 %v1876
    %1987 = vmatpush.msra.mxu0 %v1872
    %1988 = vmatpush.msra.mxu0 %v1868
    %1989 = vmatpush.msra.mxu0 %v1864
    %1990 = vmatpush.msra.mxu0 %v1860
    %1991 = vmatmul.f32.gmra.mxu0 %v1850
    %v1992 = vpop.f32.mrf.mxu0
    %v1993 = vadd.f32 %v1927, %v1992
    %1994 = vmatmul.f32.gmra.mxu0 %v1851
    %v1995 = vpop.f32.mrf.mxu0
    %v1996 = vadd.f32 %v1927, %v1995
    %1997 = vmatmul.f32.gmra.mxu0 %v1852
    %v1998 = vpop.f32.mrf.mxu0
    %v1999 = vadd.f32 %v1927, %v1998
    %2000 = vmatmul.f32.gmra.mxu0 %v1853
    %v2001 = vpop.f32.mrf.mxu0
    %v2002 = vadd.f32 %v1927, %v2001
    %2003 = vmatmul.f32.gmra.mxu0 %v1854
    %v2004 = vpop.f32.mrf.mxu0
    %v2005 = vadd.f32 %v1927, %v2004
    %2006 = vmatmul.f32.gmra.mxu0 %v1855
    %v2007 = vpop.f32.mrf.mxu0
    %v2008 = vadd.f32 %v1927, %v2007
    %2009 = vmatmul.f32.gmra.mxu0 %v1856
    %v2010 = vpop.f32.mrf.mxu0
    %v2011 = vadd.f32 %v1927, %v2010
    %2012 = vmatmul.f32.gmra.mxu0 %v1857
    %v2013 = vpop.f32.mrf.mxu0
    %v2014 = vadd.f32 %v1927, %v2013
    %2015 = vdwg.mxu0
    %2016 = vmatpush.msra.mxu0 %v1921
    %2017 = vmatpush.msra.mxu0 %v1917
    %2018 = vmatpush.msra.mxu0 %v1913
    %2019 = vmatpush.msra.mxu0 %v1909
    %2020 = vmatpush.msra.mxu0 %v1905
    %2021 = vmatpush.msra.mxu0 %v1901
    %2022 = vmatpush.msra.mxu0 %v1897
    %2023 = vmatpush.msra.mxu0 %v1893
    %2024 = vmatpush.msra.mxu0 %v1889
    %2025 = vmatpush.msra.mxu0 %v1885
    %2026 = vmatpush.msra.mxu0 %v1881
    %2027 = vmatpush.msra.mxu0 %v1877
    %2028 = vmatpush.msra.mxu0 %v1873
    %2029 = vmatpush.msra.mxu0 %v1869
    %2030 = vmatpush.msra.mxu0 %v1865
    %2031 = vmatpush.msra.mxu0 %v1861
    %2032 = vmatmul.f32.gmra.mxu0 %v1850
    %v2033 = vpop.f32.mrf.mxu0
    %v2034 = vadd.f32 %v1928, %v2033
    %2035 = vmatmul.f32.gmra.mxu0 %v1851
    %v2036 = vpop.f32.mrf.mxu0
    %v2037 = vadd.f32 %v1928, %v2036
    %2038 = vmatmul.f32.gmra.mxu0 %v1852
    %v2039 = vpop.f32.mrf.mxu0
    %v2040 = vadd.f32 %v1928, %v2039
    %2041 = vmatmul.f32.gmra.mxu0 %v1853
    %v2042 = vpop.f32.mrf.mxu0
    %v2043 = vadd.f32 %v1928, %v2042
    %2044 = vmatmul.f32.gmra.mxu0 %v1854
    %v2045 = vpop.f32.mrf.mxu0
    %v2046 = vadd.f32 %v1928, %v2045
    %2047 = vmatmul.f32.gmra.mxu0 %v1855
    %v2048 = vpop.f32.mrf.mxu0
    %v2049 = vadd.f32 %v1928, %v2048
    %2050 = vmatmul.f32.gmra.mxu0 %v1856
    %v2051 = vpop.f32.mrf.mxu0
    %v2052 = vadd.f32 %v1928, %v2051
    %2053 = vmatmul.f32.gmra.mxu0 %v1857
    %v2054 = vpop.f32.mrf.mxu0
    %v2055 = vadd.f32 %v1928, %v2054
    %2056 = vdwg.mxu0
    %2057 = vmatpush.msra.mxu0 %v1922
    %2058 = vmatpush.msra.mxu0 %v1918
    %2059 = vmatpush.msra.mxu0 %v1914
    %2060 = vmatpush.msra.mxu0 %v1910
    %2061 = vmatpush.msra.mxu0 %v1906
    %2062 = vmatpush.msra.mxu0 %v1902
    %2063 = vmatpush.msra.mxu0 %v1898
    %2064 = vmatpush.msra.mxu0 %v1894
    %2065 = vmatpush.msra.mxu0 %v1890
    %2066 = vmatpush.msra.mxu0 %v1886
    %2067 = vmatpush.msra.mxu0 %v1882
    %2068 = vmatpush.msra.mxu0 %v1878
    %2069 = vmatpush.msra.mxu0 %v1874
    %2070 = vmatpush.msra.mxu0 %v1870
    %2071 = vmatpush.msra.mxu0 %v1866
    %2072 = vmatpush.msra.mxu0 %v1862
    %2073 = vmatmul.f32.gmra.mxu0 %v1850
    %v2074 = vpop.f32.mrf.mxu0
    %v2075 = vadd.f32 %v1929, %v2074
    %2076 = vmatmul.f32.gmra.mxu0 %v1851
    %v2077 = vpop.f32.mrf.mxu0
    %v2078 = vadd.f32 %v1929, %v2077
    %2079 = vmatmul.f32.gmra.mxu0 %v1852
    %v2080 = vpop.f32.mrf.mxu0
    %v2081 = vadd.f32 %v1929, %v2080
    %2082 = vmatmul.f32.gmra.mxu0 %v1853
    %v2083 = vpop.f32.mrf.mxu0
    %v2084 = vadd.f32 %v1929, %v2083
    %2085 = vmatmul.f32.gmra.mxu0 %v1854
    %v2086 = vpop.f32.mrf.mxu0
    %v2087 = vadd.f32 %v1929, %v2086
    %2088 = vmatmul.f32.gmra.mxu0 %v1855
    %v2089 = vpop.f32.mrf.mxu0
    %v2090 = vadd.f32 %v1929, %v2089
    %2091 = vmatmul.f32.gmra.mxu0 %v1856
    %v2092 = vpop.f32.mrf.mxu0
    %v2093 = vadd.f32 %v1929, %v2092
    %2094 = vmatmul.f32.gmra.mxu0 %v1857
    %v2095 = vpop.f32.mrf.mxu0
    %v2096 = vadd.f32 %v1929, %v2095
    %2097 = vdwg.mxu0
    %2098 = vst [vmem:[#allocation3] sm:$0xff] %v1952
    %2099 = vst [vmem:[#allocation3 + $0x8] sm:$0xff] %v1993
    %2100 = vst [vmem:[#allocation3 + $0x10] sm:$0xff] %v2034
    %2101 = vst [vmem:[#allocation3 + $0x18] sm:$0xff] %v2075
    %2102 = vst [vmem:[#allocation3 + $0x20] sm:$0xff] %v1955
    %2103 = vst [vmem:[#allocation3 + $0x28] sm:$0xff] %v1996
    %2104 = vst [vmem:[#allocation3 + $0x30] sm:$0xff] %v2037
    %2105 = vst [vmem:[#allocation3 + $0x38] sm:$0xff] %v2078
    %2106 = vst [vmem:[#allocation3 + $0x40] sm:$0xff] %v1958
    %2107 = vst [vmem:[#allocation3 + $0x48] sm:$0xff] %v1999
    %2108 = vst [vmem:[#allocation3 + $0x50] sm:$0xff] %v2040
    %2109 = vst [vmem:[#allocation3 + $0x58] sm:$0xff] %v2081
    %2110 = vst [vmem:[#allocation3 + $0x60] sm:$0xff] %v1961
    %2111 = vst [vmem:[#allocation3 + $0x68] sm:$0xff] %v2002
    %2112 = vst [vmem:[#allocation3 + $0x70] sm:$0xff] %v2043
    %2113 = vst [vmem:[#allocation3 + $0x78] sm:$0xff] %v2084
    %2114 = vst [vmem:[#allocation3 + $0x80] sm:$0xff] %v1964
    %2115 = vst [vmem:[#allocation3 + $0x88] sm:$0xff] %v2005
    %2116 = vst [vmem:[#allocation3 + $0x90] sm:$0xff] %v2046
    %2117 = vst [vmem:[#allocation3 + $0x98] sm:$0xff] %v2087
    %2118 = vst [vmem:[#allocation3 + $0xa0] sm:$0xff] %v1967
    %2119 = vst [vmem:[#allocation3 + $0xa8] sm:$0xff] %v2008
    %2120 = vst [vmem:[#allocation3 + $0xb0] sm:$0xff] %v2049
    %2121 = vst [vmem:[#allocation3 + $0xb8] sm:$0xff] %v2090
    %2122 = vst [vmem:[#allocation3 + $0xc0] sm:$0xff] %v1970
    %2123 = vst [vmem:[#allocation3 + $0xc8] sm:$0xff] %v2011
    %2124 = vst [vmem:[#allocation3 + $0xd0] sm:$0xff] %v2052
    %2125 = vst [vmem:[#allocation3 + $0xd8] sm:$0xff] %v2093
    %2126 = vst [vmem:[#allocation3 + $0xe0] sm:$0xff] %v1973
    %2127 = vst [vmem:[#allocation3 + $0xe8] sm:$0xff] %v2014
    %2128 = vst [vmem:[#allocation3 + $0xf0] sm:$0xff] %v2055
    %2129 = vst [vmem:[#allocation3 + $0xf8] sm:$0xff] %v2096
    %s2130 = scalar_lea.vmem %s1, 8
    %v2131 = vld [vmem:[%s2130] sm:$0xff]
    %2132 = vst [vmem:[#allocation4] sm:$0xff] %v2131
    %s2133 = scalar_lea.vmem %s2, 8
    %v2134 = vld [vmem:[%s2133] sm:$0xff]
    %2135 = vst [vmem:[#allocation5] sm:$0xff] %v2134
    // Predicated region
    $region74: #{generator_forward.2} parent=1 // pred_check
      %p2136 = pneg %p437
    $region75: #{generator_forward.2} parent=1 // pred_check_branch
      %2138 = sbr.rel (%p2136) target = $region77
    $region76: #{generator_forward.2} parent=1 // pred_region
      %v2139 = vld [vmem:[#allocation4] sm:$0xff]
      %v2140 = vld [vmem:[#allocation5] sm:$0xff]
      %v2141 = vld [vmem:[#allocation3] sm:$0xff]
      %v2142 = vld [vmem:[#allocation3 + $0x8] sm:$0xff]
      %v2143 = vld [vmem:[#allocation3 + $0x10] sm:$0xff]
      %v2144 = vld [vmem:[#allocation3 + $0x18] sm:$0xff]
      %2145 = vmatpush.msra.mxu0 %v1846
      %2146 = vmatpush.msra.mxu0 %v1842
      %2147 = vmatpush.msra.mxu0 %v1838
      %2148 = vmatpush.msra.mxu0 %v1834
      %2149 = vmatpush.msra.mxu0 %v1830
      %2150 = vmatpush.msra.mxu0 %v1826
      %2151 = vmatpush.msra.mxu0 %v1822
      %2152 = vmatpush.msra.mxu0 %v1818
      %2153 = vmatpush.msra.mxu0 %v1814
      %2154 = vmatpush.msra.mxu0 %v1810
      %2155 = vmatpush.msra.mxu0 %v1806
      %2156 = vmatpush.msra.mxu0 %v1802
      %2157 = vmatpush.msra.mxu0 %v1798
      %2158 = vmatpush.msra.mxu0 %v1794
      %2159 = vmatpush.msra.mxu0 %v1790
      %2160 = vmatpush.msra.mxu0 %v1786
      %2161 = vmatmul.f32.gmra.mxu0 %v2139
      %v2162 = vpop.f32.mrf.mxu0
      %v2163 = vadd.f32 0.0, %v2162
      %2164 = vdwg.mxu0
      %2165 = vmatpush.msra.mxu0 %v1847
      %2166 = vmatpush.msra.mxu0 %v1843
      %2167 = vmatpush.msra.mxu0 %v1839
      %2168 = vmatpush.msra.mxu0 %v1835
      %2169 = vmatpush.msra.mxu0 %v1831
      %2170 = vmatpush.msra.mxu0 %v1827
      %2171 = vmatpush.msra.mxu0 %v1823
      %2172 = vmatpush.msra.mxu0 %v1819
      %2173 = vmatpush.msra.mxu0 %v1815
      %2174 = vmatpush.msra.mxu0 %v1811
      %2175 = vmatpush.msra.mxu0 %v1807
      %2176 = vmatpush.msra.mxu0 %v1803
      %2177 = vmatpush.msra.mxu0 %v1799
      %2178 = vmatpush.msra.mxu0 %v1795
      %2179 = vmatpush.msra.mxu0 %v1791
      %2180 = vmatpush.msra.mxu0 %v1787
      %2181 = vmatmul.f32.gmra.mxu0 %v2139
      %v2182 = vpop.f32.mrf.mxu0
      %v2183 = vadd.f32 0.0, %v2182
      %2184 = vdwg.mxu0
      %2185 = vmatpush.msra.mxu0 %v1848
      %2186 = vmatpush.msra.mxu0 %v1844
      %2187 = vmatpush.msra.mxu0 %v1840
      %2188 = vmatpush.msra.mxu0 %v1836
      %2189 = vmatpush.msra.mxu0 %v1832
      %2190 = vmatpush.msra.mxu0 %v1828
      %2191 = vmatpush.msra.mxu0 %v1824
      %2192 = vmatpush.msra.mxu0 %v1820
      %2193 = vmatpush.msra.mxu0 %v1816
      %2194 = vmatpush.msra.mxu0 %v1812
      %2195 = vmatpush.msra.mxu0 %v1808
      %2196 = vmatpush.msra.mxu0 %v1804
      %2197 = vmatpush.msra.mxu0 %v1800
      %2198 = vmatpush.msra.mxu0 %v1796
      %2199 = vmatpush.msra.mxu0 %v1792
      %2200 = vmatpush.msra.mxu0 %v1788
      %2201 = vmatmul.f32.gmra.mxu0 %v2139
      %v2202 = vpop.f32.mrf.mxu0
      %v2203 = vadd.f32 0.0, %v2202
      %2204 = vdwg.mxu0
      %2205 = vmatpush.msra.mxu0 %v1849
      %2206 = vmatpush.msra.mxu0 %v1845
      %2207 = vmatpush.msra.mxu0 %v1841
      %2208 = vmatpush.msra.mxu0 %v1837
      %2209 = vmatpush.msra.mxu0 %v1833
      %2210 = vmatpush.msra.mxu0 %v1829
      %2211 = vmatpush.msra.mxu0 %v1825
      %2212 = vmatpush.msra.mxu0 %v1821
      %2213 = vmatpush.msra.mxu0 %v1817
      %2214 = vmatpush.msra.mxu0 %v1813
      %2215 = vmatpush.msra.mxu0 %v1809
      %2216 = vmatpush.msra.mxu0 %v1805
      %2217 = vmatpush.msra.mxu0 %v1801
      %2218 = vmatpush.msra.mxu0 %v1797
      %2219 = vmatpush.msra.mxu0 %v1793
      %2220 = vmatpush.msra.mxu0 %v1789
      %2221 = vmatmul.f32.gmra.mxu0 %v2139
      %v2222 = vpop.f32.mrf.mxu0
      %v2223 = vadd.f32 0.0, %v2222
      %2224 = vdwg.mxu0
      %v2225 = vadd.f32 %v2141, %v2163
      %v2226 = vadd.f32 %v2142, %v2183
      %v2227 = vadd.f32 %v2143, %v2203
      %v2228 = vadd.f32 %v2144, %v2223
      %v2229 = vxor.u32 %v2225, 2147483648
      %v2230 = vmul.f32 %v2229, 1.442695
      %v2231 = vpow.pop %v2230
      %v2232 = vadd.f32 %v2231, 1.0
      %v2233 = vrcp.pop %v2232
      %v2234 = vmul.f32 %v2232, %v2233
      %v2235 = vsub.f32 1.0, %v2234
      %v2236 = vmul.f32 %v2233, %v2235
      %v2237 = vadd.f32 %v2233, %v2236
      %vm2238 = vweird.f32 %v2232
      %vm2239 = vweird.f32 %v2233
      %vm2240 = vmor %vm2238, %vm2239
      %v2241 = vsel %vm2240, %v2233, %v2237
      %v2242 = vand.u32 2147483647, %v2232
      %vm2243 = vcmp.eq.f32.partialorder %v2242, 8.507059e+37
      %v2244 = vand.u32 %v2232, 2147483648
      %v2245 = vor.u32 1.1754944e-38, %v2244
      %v2246 = vsel %vm2243, %v2245, %v2241
      %v2247 = vmul.f32 1.0, %v2246
      %v2248 = vxor.u32 %v2226, 2147483648
      %v2249 = vmul.f32 %v2248, 1.442695
      %v2250 = vpow.pop %v2249
      %v2251 = vadd.f32 %v2250, 1.0
      %v2252 = vrcp.pop %v2251
      %v2253 = vmul.f32 %v2251, %v2252
      %v2254 = vsub.f32 1.0, %v2253
      %v2255 = vmul.f32 %v2252, %v2254
      %v2256 = vadd.f32 %v2252, %v2255
      %vm2257 = vweird.f32 %v2251
      %vm2258 = vweird.f32 %v2252
      %vm2259 = vmor %vm2257, %vm2258
      %v2260 = vsel %vm2259, %v2252, %v2256
      %v2261 = vand.u32 2147483647, %v2251
      %vm2262 = vcmp.eq.f32.partialorder %v2261, 8.507059e+37
      %v2263 = vand.u32 %v2251, 2147483648
      %v2264 = vor.u32 1.1754944e-38, %v2263
      %v2265 = vsel %vm2262, %v2264, %v2260
      %v2266 = vmul.f32 1.0, %v2265
      %v2267 = vtanh.pop %v2227
      %v2268 = vxor.u32 %v2228, 2147483648
      %v2269 = vmul.f32 %v2268, 1.442695
      %v2270 = vpow.pop %v2269
      %v2271 = vadd.f32 %v2270, 1.0
      %v2272 = vrcp.pop %v2271
      %v2273 = vmul.f32 %v2271, %v2272
      %v2274 = vsub.f32 1.0, %v2273
      %v2275 = vmul.f32 %v2272, %v2274
      %v2276 = vadd.f32 %v2272, %v2275
      %vm2277 = vweird.f32 %v2271
      %vm2278 = vweird.f32 %v2272
      %vm2279 = vmor %vm2277, %vm2278
      %v2280 = vsel %vm2279, %v2272, %v2276
      %v2281 = vand.u32 2147483647, %v2271
      %vm2282 = vcmp.eq.f32.partialorder %v2281, 8.507059e+37
      %v2283 = vand.u32 %v2271, 2147483648
      %v2284 = vor.u32 1.1754944e-38, %v2283
      %v2285 = vsel %vm2282, %v2284, %v2280
      %v2286 = vmul.f32 1.0, %v2285
      %v2287 = vmul.f32 %v2266, %v2140
      %v2288 = vmul.f32 %v2247, %v2267
      %v2289 = vadd.f32 %v2287, %v2288
      %v2290 = vtanh.pop %v2289
      %v2291 = vmul.f32 %v2286, %v2290
      %vm2292 = vcmp.gt.s32.totalorder %v65, 0
      %v2293 = vsel %vm2292, 1, 0
      %2294 = vset.pattern.permute.xlu0 0
      %2295 = vperm.xlu0 %2294, %v2293
      %v2296 = vpop.permute.xlu0 %2295
      %vm2297 = vcmp.eq.s32.totalorder %v2296, 1
      %v2298 = vsel %vm2297, %v2291, %v2139
      %2299 = vst [vmem:[#allocation4] sm:$0xff] %v2298
      %v2300 = vsel %vm2297, %v2289, %v2140
      %2301 = vst [vmem:[#allocation5] sm:$0xff] %v2300
      %v2302 = vsel %vm2297, %v2291, 1.0
      %2303 = vst [vmem:[%s8] sm:$0xff] %v2302
    $region77: #{generator_forward.2} parent=1 // pred_fallthru
      _
    // Predicated region
    $region78: #{generator_forward.2} parent=1 // pred_check
      %p2304 = pneg %p605
    $region79: #{generator_forward.2} parent=1 // pred_check_branch
      %2306 = sbr.rel (%p2304) target = $region81
    $region80: #{generator_forward.2} parent=1 // pred_region
      %v2307 = vld [vmem:[#allocation4] sm:$0xff]
      %v2308 = vld [vmem:[#allocation5] sm:$0xff]
      %v2309 = vld [vmem:[#allocation3 + $0x20] sm:$0xff]
      %v2310 = vld [vmem:[#allocation3 + $0x28] sm:$0xff]
      %v2311 = vld [vmem:[#allocation3 + $0x30] sm:$0xff]
      %v2312 = vld [vmem:[#allocation3 + $0x38] sm:$0xff]
      %2313 = vmatpush.msra.mxu0 %v1846
      %2314 = vmatpush.msra.mxu0 %v1842
      %2315 = vmatpush.msra.mxu0 %v1838
      %2316 = vmatpush.msra.mxu0 %v1834
      %2317 = vmatpush.msra.mxu0 %v1830
      %2318 = vmatpush.msra.mxu0 %v1826
      %2319 = vmatpush.msra.mxu0 %v1822
      %2320 = vmatpush.msra.mxu0 %v1818
      %2321 = vmatpush.msra.mxu0 %v1814
      %2322 = vmatpush.msra.mxu0 %v1810
      %2323 = vmatpush.msra.mxu0 %v1806
      %2324 = vmatpush.msra.mxu0 %v1802
      %2325 = vmatpush.msra.mxu0 %v1798
      %2326 = vmatpush.msra.mxu0 %v1794
      %2327 = vmatpush.msra.mxu0 %v1790
      %2328 = vmatpush.msra.mxu0 %v1786
      %2329 = vmatmul.f32.gmra.mxu0 %v2307
      %v2330 = vpop.f32.mrf.mxu0
      %v2331 = vadd.f32 0.0, %v2330
      %2332 = vdwg.mxu0
      %2333 = vmatpush.msra.mxu0 %v1847
      %2334 = vmatpush.msra.mxu0 %v1843
      %2335 = vmatpush.msra.mxu0 %v1839
      %2336 = vmatpush.msra.mxu0 %v1835
      %2337 = vmatpush.msra.mxu0 %v1831
      %2338 = vmatpush.msra.mxu0 %v1827
      %2339 = vmatpush.msra.mxu0 %v1823
      %2340 = vmatpush.msra.mxu0 %v1819
      %2341 = vmatpush.msra.mxu0 %v1815
      %2342 = vmatpush.msra.mxu0 %v1811
      %2343 = vmatpush.msra.mxu0 %v1807
      %2344 = vmatpush.msra.mxu0 %v1803
      %2345 = vmatpush.msra.mxu0 %v1799
      %2346 = vmatpush.msra.mxu0 %v1795
      %2347 = vmatpush.msra.mxu0 %v1791
      %2348 = vmatpush.msra.mxu0 %v1787
      %2349 = vmatmul.f32.gmra.mxu0 %v2307
      %v2350 = vpop.f32.mrf.mxu0
      %v2351 = vadd.f32 0.0, %v2350
      %2352 = vdwg.mxu0
      %2353 = vmatpush.msra.mxu0 %v1848
      %2354 = vmatpush.msra.mxu0 %v1844
      %2355 = vmatpush.msra.mxu0 %v1840
      %2356 = vmatpush.msra.mxu0 %v1836
      %2357 = vmatpush.msra.mxu0 %v1832
      %2358 = vmatpush.msra.mxu0 %v1828
      %2359 = vmatpush.msra.mxu0 %v1824
      %2360 = vmatpush.msra.mxu0 %v1820
      %2361 = vmatpush.msra.mxu0 %v1816
      %2362 = vmatpush.msra.mxu0 %v1812
      %2363 = vmatpush.msra.mxu0 %v1808
      %2364 = vmatpush.msra.mxu0 %v1804
      %2365 = vmatpush.msra.mxu0 %v1800
      %2366 = vmatpush.msra.mxu0 %v1796
      %2367 = vmatpush.msra.mxu0 %v1792
      %2368 = vmatpush.msra.mxu0 %v1788
      %2369 = vmatmul.f32.gmra.mxu0 %v2307
      %v2370 = vpop.f32.mrf.mxu0
      %v2371 = vadd.f32 0.0, %v2370
      %2372 = vdwg.mxu0
      %2373 = vmatpush.msra.mxu0 %v1849
      %2374 = vmatpush.msra.mxu0 %v1845
      %2375 = vmatpush.msra.mxu0 %v1841
      %2376 = vmatpush.msra.mxu0 %v1837
      %2377 = vmatpush.msra.mxu0 %v1833
      %2378 = vmatpush.msra.mxu0 %v1829
      %2379 = vmatpush.msra.mxu0 %v1825
      %2380 = vmatpush.msra.mxu0 %v1821
      %2381 = vmatpush.msra.mxu0 %v1817
      %2382 = vmatpush.msra.mxu0 %v1813
      %2383 = vmatpush.msra.mxu0 %v1809
      %2384 = vmatpush.msra.mxu0 %v1805
      %2385 = vmatpush.msra.mxu0 %v1801
      %2386 = vmatpush.msra.mxu0 %v1797
      %2387 = vmatpush.msra.mxu0 %v1793
      %2388 = vmatpush.msra.mxu0 %v1789
      %2389 = vmatmul.f32.gmra.mxu0 %v2307
      %v2390 = vpop.f32.mrf.mxu0
      %v2391 = vadd.f32 0.0, %v2390
      %2392 = vdwg.mxu0
      %v2393 = vadd.f32 %v2309, %v2331
      %v2394 = vadd.f32 %v2310, %v2351
      %v2395 = vadd.f32 %v2311, %v2371
      %v2396 = vadd.f32 %v2312, %v2391
      %v2397 = vxor.u32 %v2393, 2147483648
      %v2398 = vmul.f32 %v2397, 1.442695
      %v2399 = vpow.pop %v2398
      %v2400 = vadd.f32 %v2399, 1.0
      %v2401 = vrcp.pop %v2400
      %v2402 = vmul.f32 %v2400, %v2401
      %v2403 = vsub.f32 1.0, %v2402
      %v2404 = vmul.f32 %v2401, %v2403
      %v2405 = vadd.f32 %v2401, %v2404
      %vm2406 = vweird.f32 %v2400
      %vm2407 = vweird.f32 %v2401
      %vm2408 = vmor %vm2406, %vm2407
      %v2409 = vsel %vm2408, %v2401, %v2405
      %v2410 = vand.u32 2147483647, %v2400
      %vm2411 = vcmp.eq.f32.partialorder %v2410, 8.507059e+37
      %v2412 = vand.u32 %v2400, 2147483648
      %v2413 = vor.u32 1.1754944e-38, %v2412
      %v2414 = vsel %vm2411, %v2413, %v2409
      %v2415 = vmul.f32 1.0, %v2414
      %v2416 = vxor.u32 %v2394, 2147483648
      %v2417 = vmul.f32 %v2416, 1.442695
      %v2418 = vpow.pop %v2417
      %v2419 = vadd.f32 %v2418, 1.0
      %v2420 = vrcp.pop %v2419
      %v2421 = vmul.f32 %v2419, %v2420
      %v2422 = vsub.f32 1.0, %v2421
      %v2423 = vmul.f32 %v2420, %v2422
      %v2424 = vadd.f32 %v2420, %v2423
      %vm2425 = vweird.f32 %v2419
      %vm2426 = vweird.f32 %v2420
      %vm2427 = vmor %vm2425, %vm2426
      %v2428 = vsel %vm2427, %v2420, %v2424
      %v2429 = vand.u32 2147483647, %v2419
      %vm2430 = vcmp.eq.f32.partialorder %v2429, 8.507059e+37
      %v2431 = vand.u32 %v2419, 2147483648
      %v2432 = vor.u32 1.1754944e-38, %v2431
      %v2433 = vsel %vm2430, %v2432, %v2428
      %v2434 = vmul.f32 1.0, %v2433
      %v2435 = vtanh.pop %v2395
      %v2436 = vxor.u32 %v2396, 2147483648
      %v2437 = vmul.f32 %v2436, 1.442695
      %v2438 = vpow.pop %v2437
      %v2439 = vadd.f32 %v2438, 1.0
      %v2440 = vrcp.pop %v2439
      %v2441 = vmul.f32 %v2439, %v2440
      %v2442 = vsub.f32 1.0, %v2441
      %v2443 = vmul.f32 %v2440, %v2442
      %v2444 = vadd.f32 %v2440, %v2443
      %vm2445 = vweird.f32 %v2439
      %vm2446 = vweird.f32 %v2440
      %vm2447 = vmor %vm2445, %vm2446
      %v2448 = vsel %vm2447, %v2440, %v2444
      %v2449 = vand.u32 2147483647, %v2439
      %vm2450 = vcmp.eq.f32.partialorder %v2449, 8.507059e+37
      %v2451 = vand.u32 %v2439, 2147483648
      %v2452 = vor.u32 1.1754944e-38, %v2451
      %v2453 = vsel %vm2450, %v2452, %v2448
      %v2454 = vmul.f32 1.0, %v2453
      %v2455 = vmul.f32 %v2434, %v2308
      %v2456 = vmul.f32 %v2415, %v2435
      %v2457 = vadd.f32 %v2455, %v2456
      %v2458 = vtanh.pop %v2457
      %v2459 = vmul.f32 %v2454, %v2458
      %vm2460 = vcmp.gt.s32.totalorder %v65, 1
      %v2461 = vsel %vm2460, 1, 0
      %2462 = vset.pattern.permute.xlu0 0
      %2463 = vperm.xlu0 %2462, %v2461
      %v2464 = vpop.permute.xlu0 %2463
      %vm2465 = vcmp.eq.s32.totalorder %v2464, 1
      %v2466 = vsel %vm2465, %v2459, %v2307
      %2467 = vst [vmem:[#allocation4] sm:$0xff] %v2466
      %v2468 = vsel %vm2465, %v2457, %v2308
      %2469 = vst [vmem:[#allocation5] sm:$0xff] %v2468
      %v2470 = vsel %vm2465, %v2459, 1.0
      %2471 = vst [vmem:[%s8 + $0x8] sm:$0xff] %v2470
    $region81: #{generator_forward.2} parent=1 // pred_fallthru
      _
    // Predicated region
    $region82: #{generator_forward.2} parent=1 // pred_check
      %p2472 = pneg %p773
    $region83: #{generator_forward.2} parent=1 // pred_check_branch
      %2474 = sbr.rel (%p2472) target = $region85
    $region84: #{generator_forward.2} parent=1 // pred_region
      %v2475 = vld [vmem:[#allocation4] sm:$0xff]
      %v2476 = vld [vmem:[#allocation5] sm:$0xff]
      %v2477 = vld [vmem:[#allocation3 + $0x40] sm:$0xff]
      %v2478 = vld [vmem:[#allocation3 + $0x48] sm:$0xff]
      %v2479 = vld [vmem:[#allocation3 + $0x50] sm:$0xff]
      %v2480 = vld [vmem:[#allocation3 + $0x58] sm:$0xff]
      %2481 = vmatpush.msra.mxu0 %v1846
      %2482 = vmatpush.msra.mxu0 %v1842
      %2483 = vmatpush.msra.mxu0 %v1838
      %2484 = vmatpush.msra.mxu0 %v1834
      %2485 = vmatpush.msra.mxu0 %v1830
      %2486 = vmatpush.msra.mxu0 %v1826
      %2487 = vmatpush.msra.mxu0 %v1822
      %2488 = vmatpush.msra.mxu0 %v1818
      %2489 = vmatpush.msra.mxu0 %v1814
      %2490 = vmatpush.msra.mxu0 %v1810
      %2491 = vmatpush.msra.mxu0 %v1806
      %2492 = vmatpush.msra.mxu0 %v1802
      %2493 = vmatpush.msra.mxu0 %v1798
      %2494 = vmatpush.msra.mxu0 %v1794
      %2495 = vmatpush.msra.mxu0 %v1790
      %2496 = vmatpush.msra.mxu0 %v1786
      %2497 = vmatmul.f32.gmra.mxu0 %v2475
      %v2498 = vpop.f32.mrf.mxu0
      %v2499 = vadd.f32 0.0, %v2498
      %2500 = vdwg.mxu0
      %2501 = vmatpush.msra.mxu0 %v1847
      %2502 = vmatpush.msra.mxu0 %v1843
      %2503 = vmatpush.msra.mxu0 %v1839
      %2504 = vmatpush.msra.mxu0 %v1835
      %2505 = vmatpush.msra.mxu0 %v1831
      %2506 = vmatpush.msra.mxu0 %v1827
      %2507 = vmatpush.msra.mxu0 %v1823
      %2508 = vmatpush.msra.mxu0 %v1819
      %2509 = vmatpush.msra.mxu0 %v1815
      %2510 = vmatpush.msra.mxu0 %v1811
      %2511 = vmatpush.msra.mxu0 %v1807
      %2512 = vmatpush.msra.mxu0 %v1803
      %2513 = vmatpush.msra.mxu0 %v1799
      %2514 = vmatpush.msra.mxu0 %v1795
      %2515 = vmatpush.msra.mxu0 %v1791
      %2516 = vmatpush.msra.mxu0 %v1787
      %2517 = vmatmul.f32.gmra.mxu0 %v2475
      %v2518 = vpop.f32.mrf.mxu0
      %v2519 = vadd.f32 0.0, %v2518
      %2520 = vdwg.mxu0
      %2521 = vmatpush.msra.mxu0 %v1848
      %2522 = vmatpush.msra.mxu0 %v1844
      %2523 = vmatpush.msra.mxu0 %v1840
      %2524 = vmatpush.msra.mxu0 %v1836
      %2525 = vmatpush.msra.mxu0 %v1832
      %2526 = vmatpush.msra.mxu0 %v1828
      %2527 = vmatpush.msra.mxu0 %v1824
      %2528 = vmatpush.msra.mxu0 %v1820
      %2529 = vmatpush.msra.mxu0 %v1816
      %2530 = vmatpush.msra.mxu0 %v1812
      %2531 = vmatpush.msra.mxu0 %v1808
      %2532 = vmatpush.msra.mxu0 %v1804
      %2533 = vmatpush.msra.mxu0 %v1800
      %2534 = vmatpush.msra.mxu0 %v1796
      %2535 = vmatpush.msra.mxu0 %v1792
      %2536 = vmatpush.msra.mxu0 %v1788
      %2537 = vmatmul.f32.gmra.mxu0 %v2475
      %v2538 = vpop.f32.mrf.mxu0
      %v2539 = vadd.f32 0.0, %v2538
      %2540 = vdwg.mxu0
      %2541 = vmatpush.msra.mxu0 %v1849
      %2542 = vmatpush.msra.mxu0 %v1845
      %2543 = vmatpush.msra.mxu0 %v1841
      %2544 = vmatpush.msra.mxu0 %v1837
      %2545 = vmatpush.msra.mxu0 %v1833
      %2546 = vmatpush.msra.mxu0 %v1829
      %2547 = vmatpush.msra.mxu0 %v1825
      %2548 = vmatpush.msra.mxu0 %v1821
      %2549 = vmatpush.msra.mxu0 %v1817
      %2550 = vmatpush.msra.mxu0 %v1813
      %2551 = vmatpush.msra.mxu0 %v1809
      %2552 = vmatpush.msra.mxu0 %v1805
      %2553 = vmatpush.msra.mxu0 %v1801
      %2554 = vmatpush.msra.mxu0 %v1797
      %2555 = vmatpush.msra.mxu0 %v1793
      %2556 = vmatpush.msra.mxu0 %v1789
      %2557 = vmatmul.f32.gmra.mxu0 %v2475
      %v2558 = vpop.f32.mrf.mxu0
      %v2559 = vadd.f32 0.0, %v2558
      %2560 = vdwg.mxu0
      %v2561 = vadd.f32 %v2477, %v2499
      %v2562 = vadd.f32 %v2478, %v2519
      %v2563 = vadd.f32 %v2479, %v2539
      %v2564 = vadd.f32 %v2480, %v2559
      %v2565 = vxor.u32 %v2561, 2147483648
      %v2566 = vmul.f32 %v2565, 1.442695
      %v2567 = vpow.pop %v2566
      %v2568 = vadd.f32 %v2567, 1.0
      %v2569 = vrcp.pop %v2568
      %v2570 = vmul.f32 %v2568, %v2569
      %v2571 = vsub.f32 1.0, %v2570
      %v2572 = vmul.f32 %v2569, %v2571
      %v2573 = vadd.f32 %v2569, %v2572
      %vm2574 = vweird.f32 %v2568
      %vm2575 = vweird.f32 %v2569
      %vm2576 = vmor %vm2574, %vm2575
      %v2577 = vsel %vm2576, %v2569, %v2573
      %v2578 = vand.u32 2147483647, %v2568
      %vm2579 = vcmp.eq.f32.partialorder %v2578, 8.507059e+37
      %v2580 = vand.u32 %v2568, 2147483648
      %v2581 = vor.u32 1.1754944e-38, %v2580
      %v2582 = vsel %vm2579, %v2581, %v2577
      %v2583 = vmul.f32 1.0, %v2582
      %v2584 = vxor.u32 %v2562, 2147483648
      %v2585 = vmul.f32 %v2584, 1.442695
      %v2586 = vpow.pop %v2585
      %v2587 = vadd.f32 %v2586, 1.0
      %v2588 = vrcp.pop %v2587
      %v2589 = vmul.f32 %v2587, %v2588
      %v2590 = vsub.f32 1.0, %v2589
      %v2591 = vmul.f32 %v2588, %v2590
      %v2592 = vadd.f32 %v2588, %v2591
      %vm2593 = vweird.f32 %v2587
      %vm2594 = vweird.f32 %v2588
      %vm2595 = vmor %vm2593, %vm2594
      %v2596 = vsel %vm2595, %v2588, %v2592
      %v2597 = vand.u32 2147483647, %v2587
      %vm2598 = vcmp.eq.f32.partialorder %v2597, 8.507059e+37
      %v2599 = vand.u32 %v2587, 2147483648
      %v2600 = vor.u32 1.1754944e-38, %v2599
      %v2601 = vsel %vm2598, %v2600, %v2596
      %v2602 = vmul.f32 1.0, %v2601
      %v2603 = vtanh.pop %v2563
      %v2604 = vxor.u32 %v2564, 2147483648
      %v2605 = vmul.f32 %v2604, 1.442695
      %v2606 = vpow.pop %v2605
      %v2607 = vadd.f32 %v2606, 1.0
      %v2608 = vrcp.pop %v2607
      %v2609 = vmul.f32 %v2607, %v2608
      %v2610 = vsub.f32 1.0, %v2609
      %v2611 = vmul.f32 %v2608, %v2610
      %v2612 = vadd.f32 %v2608, %v2611
      %vm2613 = vweird.f32 %v2607
      %vm2614 = vweird.f32 %v2608
      %vm2615 = vmor %vm2613, %vm2614
      %v2616 = vsel %vm2615, %v2608, %v2612
      %v2617 = vand.u32 2147483647, %v2607
      %vm2618 = vcmp.eq.f32.partialorder %v2617, 8.507059e+37
      %v2619 = vand.u32 %v2607, 2147483648
      %v2620 = vor.u32 1.1754944e-38, %v2619
      %v2621 = vsel %vm2618, %v2620, %v2616
      %v2622 = vmul.f32 1.0, %v2621
      %v2623 = vmul.f32 %v2602, %v2476
      %v2624 = vmul.f32 %v2583, %v2603
      %v2625 = vadd.f32 %v2623, %v2624
      %v2626 = vtanh.pop %v2625
      %v2627 = vmul.f32 %v2622, %v2626
      %vm2628 = vcmp.gt.s32.totalorder %v65, 2
      %v2629 = vsel %vm2628, 1, 0
      %2630 = vset.pattern.permute.xlu0 0
      %2631 = vperm.xlu0 %2630, %v2629
      %v2632 = vpop.permute.xlu0 %2631
      %vm2633 = vcmp.eq.s32.totalorder %v2632, 1
      %v2634 = vsel %vm2633, %v2627, %v2475
      %2635 = vst [vmem:[#allocation4] sm:$0xff] %v2634
      %v2636 = vsel %vm2633, %v2625, %v2476
      %2637 = vst [vmem:[#allocation5] sm:$0xff] %v2636
      %v2638 = vsel %vm2633, %v2627, 1.0
      %2639 = vst [vmem:[%s8 + $0x10] sm:$0xff] %v2638
    $region85: #{generator_forward.2} parent=1 // pred_fallthru
      _
    // Predicated region
    $region86: #{generator_forward.2} parent=1 // pred_check
      %p2640 = pneg %p941
    $region87: #{generator_forward.2} parent=1 // pred_check_branch
      %2642 = sbr.rel (%p2640) target = $region89
    $region88: #{generator_forward.2} parent=1 // pred_region
      %v2643 = vld [vmem:[#allocation4] sm:$0xff]
      %v2644 = vld [vmem:[#allocation5] sm:$0xff]
      %v2645 = vld [vmem:[#allocation3 + $0x60] sm:$0xff]
      %v2646 = vld [vmem:[#allocation3 + $0x68] sm:$0xff]
      %v2647 = vld [vmem:[#allocation3 + $0x70] sm:$0xff]
      %v2648 = vld [vmem:[#allocation3 + $0x78] sm:$0xff]
      %2649 = vmatpush.msra.mxu0 %v1846
      %2650 = vmatpush.msra.mxu0 %v1842
      %2651 = vmatpush.msra.mxu0 %v1838
      %2652 = vmatpush.msra.mxu0 %v1834
      %2653 = vmatpush.msra.mxu0 %v1830
      %2654 = vmatpush.msra.mxu0 %v1826
      %2655 = vmatpush.msra.mxu0 %v1822
      %2656 = vmatpush.msra.mxu0 %v1818
      %2657 = vmatpush.msra.mxu0 %v1814
      %2658 = vmatpush.msra.mxu0 %v1810
      %2659 = vmatpush.msra.mxu0 %v1806
      %2660 = vmatpush.msra.mxu0 %v1802
      %2661 = vmatpush.msra.mxu0 %v1798
      %2662 = vmatpush.msra.mxu0 %v1794
      %2663 = vmatpush.msra.mxu0 %v1790
      %2664 = vmatpush.msra.mxu0 %v1786
      %2665 = vmatmul.f32.gmra.mxu0 %v2643
      %v2666 = vpop.f32.mrf.mxu0
      %v2667 = vadd.f32 0.0, %v2666
      %2668 = vdwg.mxu0
      %2669 = vmatpush.msra.mxu0 %v1847
      %2670 = vmatpush.msra.mxu0 %v1843
      %2671 = vmatpush.msra.mxu0 %v1839
      %2672 = vmatpush.msra.mxu0 %v1835
      %2673 = vmatpush.msra.mxu0 %v1831
      %2674 = vmatpush.msra.mxu0 %v1827
      %2675 = vmatpush.msra.mxu0 %v1823
      %2676 = vmatpush.msra.mxu0 %v1819
      %2677 = vmatpush.msra.mxu0 %v1815
      %2678 = vmatpush.msra.mxu0 %v1811
      %2679 = vmatpush.msra.mxu0 %v1807
      %2680 = vmatpush.msra.mxu0 %v1803
      %2681 = vmatpush.msra.mxu0 %v1799
      %2682 = vmatpush.msra.mxu0 %v1795
      %2683 = vmatpush.msra.mxu0 %v1791
      %2684 = vmatpush.msra.mxu0 %v1787
      %2685 = vmatmul.f32.gmra.mxu0 %v2643
      %v2686 = vpop.f32.mrf.mxu0
      %v2687 = vadd.f32 0.0, %v2686
      %2688 = vdwg.mxu0
      %2689 = vmatpush.msra.mxu0 %v1848
      %2690 = vmatpush.msra.mxu0 %v1844
      %2691 = vmatpush.msra.mxu0 %v1840
      %2692 = vmatpush.msra.mxu0 %v1836
      %2693 = vmatpush.msra.mxu0 %v1832
      %2694 = vmatpush.msra.mxu0 %v1828
      %2695 = vmatpush.msra.mxu0 %v1824
      %2696 = vmatpush.msra.mxu0 %v1820
      %2697 = vmatpush.msra.mxu0 %v1816
      %2698 = vmatpush.msra.mxu0 %v1812
      %2699 = vmatpush.msra.mxu0 %v1808
      %2700 = vmatpush.msra.mxu0 %v1804
      %2701 = vmatpush.msra.mxu0 %v1800
      %2702 = vmatpush.msra.mxu0 %v1796
      %2703 = vmatpush.msra.mxu0 %v1792
      %2704 = vmatpush.msra.mxu0 %v1788
      %2705 = vmatmul.f32.gmra.mxu0 %v2643
      %v2706 = vpop.f32.mrf.mxu0
      %v2707 = vadd.f32 0.0, %v2706
      %2708 = vdwg.mxu0
      %2709 = vmatpush.msra.mxu0 %v1849
      %2710 = vmatpush.msra.mxu0 %v1845
      %2711 = vmatpush.msra.mxu0 %v1841
      %2712 = vmatpush.msra.mxu0 %v1837
      %2713 = vmatpush.msra.mxu0 %v1833
      %2714 = vmatpush.msra.mxu0 %v1829
      %2715 = vmatpush.msra.mxu0 %v1825
      %2716 = vmatpush.msra.mxu0 %v1821
      %2717 = vmatpush.msra.mxu0 %v1817
      %2718 = vmatpush.msra.mxu0 %v1813
      %2719 = vmatpush.msra.mxu0 %v1809
      %2720 = vmatpush.msra.mxu0 %v1805
      %2721 = vmatpush.msra.mxu0 %v1801
      %2722 = vmatpush.msra.mxu0 %v1797
      %2723 = vmatpush.msra.mxu0 %v1793
      %2724 = vmatpush.msra.mxu0 %v1789
      %2725 = vmatmul.f32.gmra.mxu0 %v2643
      %v2726 = vpop.f32.mrf.mxu0
      %v2727 = vadd.f32 0.0, %v2726
      %2728 = vdwg.mxu0
      %v2729 = vadd.f32 %v2645, %v2667
      %v2730 = vadd.f32 %v2646, %v2687
      %v2731 = vadd.f32 %v2647, %v2707
      %v2732 = vadd.f32 %v2648, %v2727
      %v2733 = vxor.u32 %v2729, 2147483648
      %v2734 = vmul.f32 %v2733, 1.442695
      %v2735 = vpow.pop %v2734
      %v2736 = vadd.f32 %v2735, 1.0
      %v2737 = vrcp.pop %v2736
      %v2738 = vmul.f32 %v2736, %v2737
      %v2739 = vsub.f32 1.0, %v2738
      %v2740 = vmul.f32 %v2737, %v2739
      %v2741 = vadd.f32 %v2737, %v2740
      %vm2742 = vweird.f32 %v2736
      %vm2743 = vweird.f32 %v2737
      %vm2744 = vmor %vm2742, %vm2743
      %v2745 = vsel %vm2744, %v2737, %v2741
      %v2746 = vand.u32 2147483647, %v2736
      %vm2747 = vcmp.eq.f32.partialorder %v2746, 8.507059e+37
      %v2748 = vand.u32 %v2736, 2147483648
      %v2749 = vor.u32 1.1754944e-38, %v2748
      %v2750 = vsel %vm2747, %v2749, %v2745
      %v2751 = vmul.f32 1.0, %v2750
      %v2752 = vxor.u32 %v2730, 2147483648
      %v2753 = vmul.f32 %v2752, 1.442695
      %v2754 = vpow.pop %v2753
      %v2755 = vadd.f32 %v2754, 1.0
      %v2756 = vrcp.pop %v2755
      %v2757 = vmul.f32 %v2755, %v2756
      %v2758 = vsub.f32 1.0, %v2757
      %v2759 = vmul.f32 %v2756, %v2758
      %v2760 = vadd.f32 %v2756, %v2759
      %vm2761 = vweird.f32 %v2755
      %vm2762 = vweird.f32 %v2756
      %vm2763 = vmor %vm2761, %vm2762
      %v2764 = vsel %vm2763, %v2756, %v2760
      %v2765 = vand.u32 2147483647, %v2755
      %vm2766 = vcmp.eq.f32.partialorder %v2765, 8.507059e+37
      %v2767 = vand.u32 %v2755, 2147483648
      %v2768 = vor.u32 1.1754944e-38, %v2767
      %v2769 = vsel %vm2766, %v2768, %v2764
      %v2770 = vmul.f32 1.0, %v2769
      %v2771 = vtanh.pop %v2731
      %v2772 = vxor.u32 %v2732, 2147483648
      %v2773 = vmul.f32 %v2772, 1.442695
      %v2774 = vpow.pop %v2773
      %v2775 = vadd.f32 %v2774, 1.0
      %v2776 = vrcp.pop %v2775
      %v2777 = vmul.f32 %v2775, %v2776
      %v2778 = vsub.f32 1.0, %v2777
      %v2779 = vmul.f32 %v2776, %v2778
      %v2780 = vadd.f32 %v2776, %v2779
      %vm2781 = vweird.f32 %v2775
      %vm2782 = vweird.f32 %v2776
      %vm2783 = vmor %vm2781, %vm2782
      %v2784 = vsel %vm2783, %v2776, %v2780
      %v2785 = vand.u32 2147483647, %v2775
      %vm2786 = vcmp.eq.f32.partialorder %v2785, 8.507059e+37
      %v2787 = vand.u32 %v2775, 2147483648
      %v2788 = vor.u32 1.1754944e-38, %v2787
      %v2789 = vsel %vm2786, %v2788, %v2784
      %v2790 = vmul.f32 1.0, %v2789
      %v2791 = vmul.f32 %v2770, %v2644
      %v2792 = vmul.f32 %v2751, %v2771
      %v2793 = vadd.f32 %v2791, %v2792
      %v2794 = vtanh.pop %v2793
      %v2795 = vmul.f32 %v2790, %v2794
      %vm2796 = vcmp.gt.s32.totalorder %v65, 3
      %v2797 = vsel %vm2796, 1, 0
      %2798 = vset.pattern.permute.xlu0 0
      %2799 = vperm.xlu0 %2798, %v2797
      %v2800 = vpop.permute.xlu0 %2799
      %vm2801 = vcmp.eq.s32.totalorder %v2800, 1
      %v2802 = vsel %vm2801, %v2795, %v2643
      %2803 = vst [vmem:[#allocation4] sm:$0xff] %v2802
      %v2804 = vsel %vm2801, %v2793, %v2644
      %2805 = vst [vmem:[#allocation5] sm:$0xff] %v2804
      %v2806 = vsel %vm2801, %v2795, 1.0
      %2807 = vst [vmem:[%s8 + $0x18] sm:$0xff] %v2806
    $region89: #{generator_forward.2} parent=1 // pred_fallthru
      _
    // Predicated region
    $region90: #{generator_forward.2} parent=1 // pred_check
      %p2808 = pneg %p1109
    $region91: #{generator_forward.2} parent=1 // pred_check_branch
      %2810 = sbr.rel (%p2808) target = $region93
    $region92: #{generator_forward.2} parent=1 // pred_region
      %v2811 = vld [vmem:[#allocation4] sm:$0xff]
      %v2812 = vld [vmem:[#allocation5] sm:$0xff]
      %v2813 = vld [vmem:[#allocation3 + $0x80] sm:$0xff]
      %v2814 = vld [vmem:[#allocation3 + $0x88] sm:$0xff]
      %v2815 = vld [vmem:[#allocation3 + $0x90] sm:$0xff]
      %v2816 = vld [vmem:[#allocation3 + $0x98] sm:$0xff]
      %2817 = vmatpush.msra.mxu0 %v1846
      %2818 = vmatpush.msra.mxu0 %v1842
      %2819 = vmatpush.msra.mxu0 %v1838
      %2820 = vmatpush.msra.mxu0 %v1834
      %2821 = vmatpush.msra.mxu0 %v1830
      %2822 = vmatpush.msra.mxu0 %v1826
      %2823 = vmatpush.msra.mxu0 %v1822
      %2824 = vmatpush.msra.mxu0 %v1818
      %2825 = vmatpush.msra.mxu0 %v1814
      %2826 = vmatpush.msra.mxu0 %v1810
      %2827 = vmatpush.msra.mxu0 %v1806
      %2828 = vmatpush.msra.mxu0 %v1802
      %2829 = vmatpush.msra.mxu0 %v1798
      %2830 = vmatpush.msra.mxu0 %v1794
      %2831 = vmatpush.msra.mxu0 %v1790
      %2832 = vmatpush.msra.mxu0 %v1786
      %2833 = vmatmul.f32.gmra.mxu0 %v2811
      %v2834 = vpop.f32.mrf.mxu0
      %v2835 = vadd.f32 0.0, %v2834
      %2836 = vdwg.mxu0
      %2837 = vmatpush.msra.mxu0 %v1847
      %2838 = vmatpush.msra.mxu0 %v1843
      %2839 = vmatpush.msra.mxu0 %v1839
      %2840 = vmatpush.msra.mxu0 %v1835
      %2841 = vmatpush.msra.mxu0 %v1831
      %2842 = vmatpush.msra.mxu0 %v1827
      %2843 = vmatpush.msra.mxu0 %v1823
      %2844 = vmatpush.msra.mxu0 %v1819
      %2845 = vmatpush.msra.mxu0 %v1815
      %2846 = vmatpush.msra.mxu0 %v1811
      %2847 = vmatpush.msra.mxu0 %v1807
      %2848 = vmatpush.msra.mxu0 %v1803
      %2849 = vmatpush.msra.mxu0 %v1799
      %2850 = vmatpush.msra.mxu0 %v1795
      %2851 = vmatpush.msra.mxu0 %v1791
      %2852 = vmatpush.msra.mxu0 %v1787
      %2853 = vmatmul.f32.gmra.mxu0 %v2811
      %v2854 = vpop.f32.mrf.mxu0
      %v2855 = vadd.f32 0.0, %v2854
      %2856 = vdwg.mxu0
      %2857 = vmatpush.msra.mxu0 %v1848
      %2858 = vmatpush.msra.mxu0 %v1844
      %2859 = vmatpush.msra.mxu0 %v1840
      %2860 = vmatpush.msra.mxu0 %v1836
      %2861 = vmatpush.msra.mxu0 %v1832
      %2862 = vmatpush.msra.mxu0 %v1828
      %2863 = vmatpush.msra.mxu0 %v1824
      %2864 = vmatpush.msra.mxu0 %v1820
      %2865 = vmatpush.msra.mxu0 %v1816
      %2866 = vmatpush.msra.mxu0 %v1812
      %2867 = vmatpush.msra.mxu0 %v1808
      %2868 = vmatpush.msra.mxu0 %v1804
      %2869 = vmatpush.msra.mxu0 %v1800
      %2870 = vmatpush.msra.mxu0 %v1796
      %2871 = vmatpush.msra.mxu0 %v1792
      %2872 = vmatpush.msra.mxu0 %v1788
      %2873 = vmatmul.f32.gmra.mxu0 %v2811
      %v2874 = vpop.f32.mrf.mxu0
      %v2875 = vadd.f32 0.0, %v2874
      %2876 = vdwg.mxu0
      %2877 = vmatpush.msra.mxu0 %v1849
      %2878 = vmatpush.msra.mxu0 %v1845
      %2879 = vmatpush.msra.mxu0 %v1841
      %2880 = vmatpush.msra.mxu0 %v1837
      %2881 = vmatpush.msra.mxu0 %v1833
      %2882 = vmatpush.msra.mxu0 %v1829
      %2883 = vmatpush.msra.mxu0 %v1825
      %2884 = vmatpush.msra.mxu0 %v1821
      %2885 = vmatpush.msra.mxu0 %v1817
      %2886 = vmatpush.msra.mxu0 %v1813
      %2887 = vmatpush.msra.mxu0 %v1809
      %2888 = vmatpush.msra.mxu0 %v1805
      %2889 = vmatpush.msra.mxu0 %v1801
      %2890 = vmatpush.msra.mxu0 %v1797
      %2891 = vmatpush.msra.mxu0 %v1793
      %2892 = vmatpush.msra.mxu0 %v1789
      %2893 = vmatmul.f32.gmra.mxu0 %v2811
      %v2894 = vpop.f32.mrf.mxu0
      %v2895 = vadd.f32 0.0, %v2894
      %2896 = vdwg.mxu0
      %v2897 = vadd.f32 %v2813, %v2835
      %v2898 = vadd.f32 %v2814, %v2855
      %v2899 = vadd.f32 %v2815, %v2875
      %v2900 = vadd.f32 %v2816, %v2895
      %v2901 = vxor.u32 %v2897, 2147483648
      %v2902 = vmul.f32 %v2901, 1.442695
      %v2903 = vpow.pop %v2902
      %v2904 = vadd.f32 %v2903, 1.0
      %v2905 = vrcp.pop %v2904
      %v2906 = vmul.f32 %v2904, %v2905
      %v2907 = vsub.f32 1.0, %v2906
      %v2908 = vmul.f32 %v2905, %v2907
      %v2909 = vadd.f32 %v2905, %v2908
      %vm2910 = vweird.f32 %v2904
      %vm2911 = vweird.f32 %v2905
      %vm2912 = vmor %vm2910, %vm2911
      %v2913 = vsel %vm2912, %v2905, %v2909
      %v2914 = vand.u32 2147483647, %v2904
      %vm2915 = vcmp.eq.f32.partialorder %v2914, 8.507059e+37
      %v2916 = vand.u32 %v2904, 2147483648
      %v2917 = vor.u32 1.1754944e-38, %v2916
      %v2918 = vsel %vm2915, %v2917, %v2913
      %v2919 = vmul.f32 1.0, %v2918
      %v2920 = vxor.u32 %v2898, 2147483648
      %v2921 = vmul.f32 %v2920, 1.442695
      %v2922 = vpow.pop %v2921
      %v2923 = vadd.f32 %v2922, 1.0
      %v2924 = vrcp.pop %v2923
      %v2925 = vmul.f32 %v2923, %v2924
      %v2926 = vsub.f32 1.0, %v2925
      %v2927 = vmul.f32 %v2924, %v2926
      %v2928 = vadd.f32 %v2924, %v2927
      %vm2929 = vweird.f32 %v2923
      %vm2930 = vweird.f32 %v2924
      %vm2931 = vmor %vm2929, %vm2930
      %v2932 = vsel %vm2931, %v2924, %v2928
      %v2933 = vand.u32 2147483647, %v2923
      %vm2934 = vcmp.eq.f32.partialorder %v2933, 8.507059e+37
      %v2935 = vand.u32 %v2923, 2147483648
      %v2936 = vor.u32 1.1754944e-38, %v2935
      %v2937 = vsel %vm2934, %v2936, %v2932
      %v2938 = vmul.f32 1.0, %v2937
      %v2939 = vtanh.pop %v2899
      %v2940 = vxor.u32 %v2900, 2147483648
      %v2941 = vmul.f32 %v2940, 1.442695
      %v2942 = vpow.pop %v2941
      %v2943 = vadd.f32 %v2942, 1.0
      %v2944 = vrcp.pop %v2943
      %v2945 = vmul.f32 %v2943, %v2944
      %v2946 = vsub.f32 1.0, %v2945
      %v2947 = vmul.f32 %v2944, %v2946
      %v2948 = vadd.f32 %v2944, %v2947
      %vm2949 = vweird.f32 %v2943
      %vm2950 = vweird.f32 %v2944
      %vm2951 = vmor %vm2949, %vm2950
      %v2952 = vsel %vm2951, %v2944, %v2948
      %v2953 = vand.u32 2147483647, %v2943
      %vm2954 = vcmp.eq.f32.partialorder %v2953, 8.507059e+37
      %v2955 = vand.u32 %v2943, 2147483648
      %v2956 = vor.u32 1.1754944e-38, %v2955
      %v2957 = vsel %vm2954, %v2956, %v2952
      %v2958 = vmul.f32 1.0, %v2957
      %v2959 = vmul.f32 %v2938, %v2812
      %v2960 = vmul.f32 %v2919, %v2939
      %v2961 = vadd.f32 %v2959, %v2960
      %v2962 = vtanh.pop %v2961
      %v2963 = vmul.f32 %v2958, %v2962
      %vm2964 = vcmp.gt.s32.totalorder %v65, 4
      %v2965 = vsel %vm2964, 1, 0
      %2966 = vset.pattern.permute.xlu0 0
      %2967 = vperm.xlu0 %2966, %v2965
      %v2968 = vpop.permute.xlu0 %2967
      %vm2969 = vcmp.eq.s32.totalorder %v2968, 1
      %v2970 = vsel %vm2969, %v2963, %v2811
      %2971 = vst [vmem:[#allocation4] sm:$0xff] %v2970
      %v2972 = vsel %vm2969, %v2961, %v2812
      %2973 = vst [vmem:[#allocation5] sm:$0xff] %v2972
      %v2974 = vsel %vm2969, %v2963, 1.0
      %2975 = vst [vmem:[%s8 + $0x20] sm:$0xff] %v2974
    $region93: #{generator_forward.2} parent=1 // pred_fallthru
      _
    // Predicated region
    $region94: #{generator_forward.2} parent=1 // pred_check
      %p2976 = pneg %p1277
    $region95: #{generator_forward.2} parent=1 // pred_check_branch
      %2978 = sbr.rel (%p2976) target = $region97
    $region96: #{generator_forward.2} parent=1 // pred_region
      %v2979 = vld [vmem:[#allocation4] sm:$0xff]
      %v2980 = vld [vmem:[#allocation5] sm:$0xff]
      %v2981 = vld [vmem:[#allocation3 + $0xa0] sm:$0xff]
      %v2982 = vld [vmem:[#allocation3 + $0xa8] sm:$0xff]
      %v2983 = vld [vmem:[#allocation3 + $0xb0] sm:$0xff]
      %v2984 = vld [vmem:[#allocation3 + $0xb8] sm:$0xff]
      %2985 = vmatpush.msra.mxu0 %v1846
      %2986 = vmatpush.msra.mxu0 %v1842
      %2987 = vmatpush.msra.mxu0 %v1838
      %2988 = vmatpush.msra.mxu0 %v1834
      %2989 = vmatpush.msra.mxu0 %v1830
      %2990 = vmatpush.msra.mxu0 %v1826
      %2991 = vmatpush.msra.mxu0 %v1822
      %2992 = vmatpush.msra.mxu0 %v1818
      %2993 = vmatpush.msra.mxu0 %v1814
      %2994 = vmatpush.msra.mxu0 %v1810
      %2995 = vmatpush.msra.mxu0 %v1806
      %2996 = vmatpush.msra.mxu0 %v1802
      %2997 = vmatpush.msra.mxu0 %v1798
      %2998 = vmatpush.msra.mxu0 %v1794
      %2999 = vmatpush.msra.mxu0 %v1790
      %3000 = vmatpush.msra.mxu0 %v1786
      %3001 = vmatmul.f32.gmra.mxu0 %v2979
      %v3002 = vpop.f32.mrf.mxu0
      %v3003 = vadd.f32 0.0, %v3002
      %3004 = vdwg.mxu0
      %3005 = vmatpush.msra.mxu0 %v1847
      %3006 = vmatpush.msra.mxu0 %v1843
      %3007 = vmatpush.msra.mxu0 %v1839
      %3008 = vmatpush.msra.mxu0 %v1835
      %3009 = vmatpush.msra.mxu0 %v1831
      %3010 = vmatpush.msra.mxu0 %v1827
      %3011 = vmatpush.msra.mxu0 %v1823
      %3012 = vmatpush.msra.mxu0 %v1819
      %3013 = vmatpush.msra.mxu0 %v1815
      %3014 = vmatpush.msra.mxu0 %v1811
      %3015 = vmatpush.msra.mxu0 %v1807
      %3016 = vmatpush.msra.mxu0 %v1803
      %3017 = vmatpush.msra.mxu0 %v1799
      %3018 = vmatpush.msra.mxu0 %v1795
      %3019 = vmatpush.msra.mxu0 %v1791
      %3020 = vmatpush.msra.mxu0 %v1787
      %3021 = vmatmul.f32.gmra.mxu0 %v2979
      %v3022 = vpop.f32.mrf.mxu0
      %v3023 = vadd.f32 0.0, %v3022
      %3024 = vdwg.mxu0
      %3025 = vmatpush.msra.mxu0 %v1848
      %3026 = vmatpush.msra.mxu0 %v1844
      %3027 = vmatpush.msra.mxu0 %v1840
      %3028 = vmatpush.msra.mxu0 %v1836
      %3029 = vmatpush.msra.mxu0 %v1832
      %3030 = vmatpush.msra.mxu0 %v1828
      %3031 = vmatpush.msra.mxu0 %v1824
      %3032 = vmatpush.msra.mxu0 %v1820
      %3033 = vmatpush.msra.mxu0 %v1816
      %3034 = vmatpush.msra.mxu0 %v1812
      %3035 = vmatpush.msra.mxu0 %v1808
      %3036 = vmatpush.msra.mxu0 %v1804
      %3037 = vmatpush.msra.mxu0 %v1800
      %3038 = vmatpush.msra.mxu0 %v1796
      %3039 = vmatpush.msra.mxu0 %v1792
      %3040 = vmatpush.msra.mxu0 %v1788
      %3041 = vmatmul.f32.gmra.mxu0 %v2979
      %v3042 = vpop.f32.mrf.mxu0
      %v3043 = vadd.f32 0.0, %v3042
      %3044 = vdwg.mxu0
      %3045 = vmatpush.msra.mxu0 %v1849
      %3046 = vmatpush.msra.mxu0 %v1845
      %3047 = vmatpush.msra.mxu0 %v1841
      %3048 = vmatpush.msra.mxu0 %v1837
      %3049 = vmatpush.msra.mxu0 %v1833
      %3050 = vmatpush.msra.mxu0 %v1829
      %3051 = vmatpush.msra.mxu0 %v1825
      %3052 = vmatpush.msra.mxu0 %v1821
      %3053 = vmatpush.msra.mxu0 %v1817
      %3054 = vmatpush.msra.mxu0 %v1813
      %3055 = vmatpush.msra.mxu0 %v1809
      %3056 = vmatpush.msra.mxu0 %v1805
      %3057 = vmatpush.msra.mxu0 %v1801
      %3058 = vmatpush.msra.mxu0 %v1797
      %3059 = vmatpush.msra.mxu0 %v1793
      %3060 = vmatpush.msra.mxu0 %v1789
      %3061 = vmatmul.f32.gmra.mxu0 %v2979
      %v3062 = vpop.f32.mrf.mxu0
      %v3063 = vadd.f32 0.0, %v3062
      %3064 = vdwg.mxu0
      %v3065 = vadd.f32 %v2981, %v3003
      %v3066 = vadd.f32 %v2982, %v3023
      %v3067 = vadd.f32 %v2983, %v3043
      %v3068 = vadd.f32 %v2984, %v3063
      %v3069 = vxor.u32 %v3065, 2147483648
      %v3070 = vmul.f32 %v3069, 1.442695
      %v3071 = vpow.pop %v3070
      %v3072 = vadd.f32 %v3071, 1.0
      %v3073 = vrcp.pop %v3072
      %v3074 = vmul.f32 %v3072, %v3073
      %v3075 = vsub.f32 1.0, %v3074
      %v3076 = vmul.f32 %v3073, %v3075
      %v3077 = vadd.f32 %v3073, %v3076
      %vm3078 = vweird.f32 %v3072
      %vm3079 = vweird.f32 %v3073
      %vm3080 = vmor %vm3078, %vm3079
      %v3081 = vsel %vm3080, %v3073, %v3077
      %v3082 = vand.u32 2147483647, %v3072
      %vm3083 = vcmp.eq.f32.partialorder %v3082, 8.507059e+37
      %v3084 = vand.u32 %v3072, 2147483648
      %v3085 = vor.u32 1.1754944e-38, %v3084
      %v3086 = vsel %vm3083, %v3085, %v3081
      %v3087 = vmul.f32 1.0, %v3086
      %v3088 = vxor.u32 %v3066, 2147483648
      %v3089 = vmul.f32 %v3088, 1.442695
      %v3090 = vpow.pop %v3089
      %v3091 = vadd.f32 %v3090, 1.0
      %v3092 = vrcp.pop %v3091
      %v3093 = vmul.f32 %v3091, %v3092
      %v3094 = vsub.f32 1.0, %v3093
      %v3095 = vmul.f32 %v3092, %v3094
      %v3096 = vadd.f32 %v3092, %v3095
      %vm3097 = vweird.f32 %v3091
      %vm3098 = vweird.f32 %v3092
      %vm3099 = vmor %vm3097, %vm3098
      %v3100 = vsel %vm3099, %v3092, %v3096
      %v3101 = vand.u32 2147483647, %v3091
      %vm3102 = vcmp.eq.f32.partialorder %v3101, 8.507059e+37
      %v3103 = vand.u32 %v3091, 2147483648
      %v3104 = vor.u32 1.1754944e-38, %v3103
      %v3105 = vsel %vm3102, %v3104, %v3100
      %v3106 = vmul.f32 1.0, %v3105
      %v3107 = vtanh.pop %v3067
      %v3108 = vxor.u32 %v3068, 2147483648
      %v3109 = vmul.f32 %v3108, 1.442695
      %v3110 = vpow.pop %v3109
      %v3111 = vadd.f32 %v3110, 1.0
      %v3112 = vrcp.pop %v3111
      %v3113 = vmul.f32 %v3111, %v3112
      %v3114 = vsub.f32 1.0, %v3113
      %v3115 = vmul.f32 %v3112, %v3114
      %v3116 = vadd.f32 %v3112, %v3115
      %vm3117 = vweird.f32 %v3111
      %vm3118 = vweird.f32 %v3112
      %vm3119 = vmor %vm3117, %vm3118
      %v3120 = vsel %vm3119, %v3112, %v3116
      %v3121 = vand.u32 2147483647, %v3111
      %vm3122 = vcmp.eq.f32.partialorder %v3121, 8.507059e+37
      %v3123 = vand.u32 %v3111, 2147483648
      %v3124 = vor.u32 1.1754944e-38, %v3123
      %v3125 = vsel %vm3122, %v3124, %v3120
      %v3126 = vmul.f32 1.0, %v3125
      %v3127 = vmul.f32 %v3106, %v2980
      %v3128 = vmul.f32 %v3087, %v3107
      %v3129 = vadd.f32 %v3127, %v3128
      %v3130 = vtanh.pop %v3129
      %v3131 = vmul.f32 %v3126, %v3130
      %vm3132 = vcmp.gt.s32.totalorder %v65, 5
      %v3133 = vsel %vm3132, 1, 0
      %3134 = vset.pattern.permute.xlu0 0
      %3135 = vperm.xlu0 %3134, %v3133
      %v3136 = vpop.permute.xlu0 %3135
      %vm3137 = vcmp.eq.s32.totalorder %v3136, 1
      %v3138 = vsel %vm3137, %v3131, %v2979
      %3139 = vst [vmem:[#allocation4] sm:$0xff] %v3138
      %v3140 = vsel %vm3137, %v3129, %v2980
      %3141 = vst [vmem:[#allocation5] sm:$0xff] %v3140
      %v3142 = vsel %vm3137, %v3131, 1.0
      %3143 = vst [vmem:[%s8 + $0x28] sm:$0xff] %v3142
    $region97: #{generator_forward.2} parent=1 // pred_fallthru
      _
    // Predicated region
    $region98: #{generator_forward.2} parent=1 // pred_check
      %p3144 = pneg %p1445
    $region99: #{generator_forward.2} parent=1 // pred_check_branch
      %3146 = sbr.rel (%p3144) target = $region101
    $region100: #{generator_forward.2} parent=1 // pred_region
      %v3147 = vld [vmem:[#allocation4] sm:$0xff]
      %v3148 = vld [vmem:[#allocation5] sm:$0xff]
      %v3149 = vld [vmem:[#allocation3 + $0xc0] sm:$0xff]
      %v3150 = vld [vmem:[#allocation3 + $0xc8] sm:$0xff]
      %v3151 = vld [vmem:[#allocation3 + $0xd0] sm:$0xff]
      %v3152 = vld [vmem:[#allocation3 + $0xd8] sm:$0xff]
      %3153 = vmatpush.msra.mxu0 %v1846
      %3154 = vmatpush.msra.mxu0 %v1842
      %3155 = vmatpush.msra.mxu0 %v1838
      %3156 = vmatpush.msra.mxu0 %v1834
      %3157 = vmatpush.msra.mxu0 %v1830
      %3158 = vmatpush.msra.mxu0 %v1826
      %3159 = vmatpush.msra.mxu0 %v1822
      %3160 = vmatpush.msra.mxu0 %v1818
      %3161 = vmatpush.msra.mxu0 %v1814
      %3162 = vmatpush.msra.mxu0 %v1810
      %3163 = vmatpush.msra.mxu0 %v1806
      %3164 = vmatpush.msra.mxu0 %v1802
      %3165 = vmatpush.msra.mxu0 %v1798
      %3166 = vmatpush.msra.mxu0 %v1794
      %3167 = vmatpush.msra.mxu0 %v1790
      %3168 = vmatpush.msra.mxu0 %v1786
      %3169 = vmatmul.f32.gmra.mxu0 %v3147
      %v3170 = vpop.f32.mrf.mxu0
      %v3171 = vadd.f32 0.0, %v3170
      %3172 = vdwg.mxu0
      %3173 = vmatpush.msra.mxu0 %v1847
      %3174 = vmatpush.msra.mxu0 %v1843
      %3175 = vmatpush.msra.mxu0 %v1839
      %3176 = vmatpush.msra.mxu0 %v1835
      %3177 = vmatpush.msra.mxu0 %v1831
      %3178 = vmatpush.msra.mxu0 %v1827
      %3179 = vmatpush.msra.mxu0 %v1823
      %3180 = vmatpush.msra.mxu0 %v1819
      %3181 = vmatpush.msra.mxu0 %v1815
      %3182 = vmatpush.msra.mxu0 %v1811
      %3183 = vmatpush.msra.mxu0 %v1807
      %3184 = vmatpush.msra.mxu0 %v1803
      %3185 = vmatpush.msra.mxu0 %v1799
      %3186 = vmatpush.msra.mxu0 %v1795
      %3187 = vmatpush.msra.mxu0 %v1791
      %3188 = vmatpush.msra.mxu0 %v1787
      %3189 = vmatmul.f32.gmra.mxu0 %v3147
      %v3190 = vpop.f32.mrf.mxu0
      %v3191 = vadd.f32 0.0, %v3190
      %3192 = vdwg.mxu0
      %3193 = vmatpush.msra.mxu0 %v1848
      %3194 = vmatpush.msra.mxu0 %v1844
      %3195 = vmatpush.msra.mxu0 %v1840
      %3196 = vmatpush.msra.mxu0 %v1836
      %3197 = vmatpush.msra.mxu0 %v1832
      %3198 = vmatpush.msra.mxu0 %v1828
      %3199 = vmatpush.msra.mxu0 %v1824
      %3200 = vmatpush.msra.mxu0 %v1820
      %3201 = vmatpush.msra.mxu0 %v1816
      %3202 = vmatpush.msra.mxu0 %v1812
      %3203 = vmatpush.msra.mxu0 %v1808
      %3204 = vmatpush.msra.mxu0 %v1804
      %3205 = vmatpush.msra.mxu0 %v1800
      %3206 = vmatpush.msra.mxu0 %v1796
      %3207 = vmatpush.msra.mxu0 %v1792
      %3208 = vmatpush.msra.mxu0 %v1788
      %3209 = vmatmul.f32.gmra.mxu0 %v3147
      %v3210 = vpop.f32.mrf.mxu0
      %v3211 = vadd.f32 0.0, %v3210
      %3212 = vdwg.mxu0
      %3213 = vmatpush.msra.mxu0 %v1849
      %3214 = vmatpush.msra.mxu0 %v1845
      %3215 = vmatpush.msra.mxu0 %v1841
      %3216 = vmatpush.msra.mxu0 %v1837
      %3217 = vmatpush.msra.mxu0 %v1833
      %3218 = vmatpush.msra.mxu0 %v1829
      %3219 = vmatpush.msra.mxu0 %v1825
      %3220 = vmatpush.msra.mxu0 %v1821
      %3221 = vmatpush.msra.mxu0 %v1817
      %3222 = vmatpush.msra.mxu0 %v1813
      %3223 = vmatpush.msra.mxu0 %v1809
      %3224 = vmatpush.msra.mxu0 %v1805
      %3225 = vmatpush.msra.mxu0 %v1801
      %3226 = vmatpush.msra.mxu0 %v1797
      %3227 = vmatpush.msra.mxu0 %v1793
      %3228 = vmatpush.msra.mxu0 %v1789
      %3229 = vmatmul.f32.gmra.mxu0 %v3147
      %v3230 = vpop.f32.mrf.mxu0
      %v3231 = vadd.f32 0.0, %v3230
      %3232 = vdwg.mxu0
      %v3233 = vadd.f32 %v3149, %v3171
      %v3234 = vadd.f32 %v3150, %v3191
      %v3235 = vadd.f32 %v3151, %v3211
      %v3236 = vadd.f32 %v3152, %v3231
      %v3237 = vxor.u32 %v3233, 2147483648
      %v3238 = vmul.f32 %v3237, 1.442695
      %v3239 = vpow.pop %v3238
      %v3240 = vadd.f32 %v3239, 1.0
      %v3241 = vrcp.pop %v3240
      %v3242 = vmul.f32 %v3240, %v3241
      %v3243 = vsub.f32 1.0, %v3242
      %v3244 = vmul.f32 %v3241, %v3243
      %v3245 = vadd.f32 %v3241, %v3244
      %vm3246 = vweird.f32 %v3240
      %vm3247 = vweird.f32 %v3241
      %vm3248 = vmor %vm3246, %vm3247
      %v3249 = vsel %vm3248, %v3241, %v3245
      %v3250 = vand.u32 2147483647, %v3240
      %vm3251 = vcmp.eq.f32.partialorder %v3250, 8.507059e+37
      %v3252 = vand.u32 %v3240, 2147483648
      %v3253 = vor.u32 1.1754944e-38, %v3252
      %v3254 = vsel %vm3251, %v3253, %v3249
      %v3255 = vmul.f32 1.0, %v3254
      %v3256 = vxor.u32 %v3234, 2147483648
      %v3257 = vmul.f32 %v3256, 1.442695
      %v3258 = vpow.pop %v3257
      %v3259 = vadd.f32 %v3258, 1.0
      %v3260 = vrcp.pop %v3259
      %v3261 = vmul.f32 %v3259, %v3260
      %v3262 = vsub.f32 1.0, %v3261
      %v3263 = vmul.f32 %v3260, %v3262
      %v3264 = vadd.f32 %v3260, %v3263
      %vm3265 = vweird.f32 %v3259
      %vm3266 = vweird.f32 %v3260
      %vm3267 = vmor %vm3265, %vm3266
      %v3268 = vsel %vm3267, %v3260, %v3264
      %v3269 = vand.u32 2147483647, %v3259
      %vm3270 = vcmp.eq.f32.partialorder %v3269, 8.507059e+37
      %v3271 = vand.u32 %v3259, 2147483648
      %v3272 = vor.u32 1.1754944e-38, %v3271
      %v3273 = vsel %vm3270, %v3272, %v3268
      %v3274 = vmul.f32 1.0, %v3273
      %v3275 = vtanh.pop %v3235
      %v3276 = vxor.u32 %v3236, 2147483648
      %v3277 = vmul.f32 %v3276, 1.442695
      %v3278 = vpow.pop %v3277
      %v3279 = vadd.f32 %v3278, 1.0
      %v3280 = vrcp.pop %v3279
      %v3281 = vmul.f32 %v3279, %v3280
      %v3282 = vsub.f32 1.0, %v3281
      %v3283 = vmul.f32 %v3280, %v3282
      %v3284 = vadd.f32 %v3280, %v3283
      %vm3285 = vweird.f32 %v3279
      %vm3286 = vweird.f32 %v3280
      %vm3287 = vmor %vm3285, %vm3286
      %v3288 = vsel %vm3287, %v3280, %v3284
      %v3289 = vand.u32 2147483647, %v3279
      %vm3290 = vcmp.eq.f32.partialorder %v3289, 8.507059e+37
      %v3291 = vand.u32 %v3279, 2147483648
      %v3292 = vor.u32 1.1754944e-38, %v3291
      %v3293 = vsel %vm3290, %v3292, %v3288
      %v3294 = vmul.f32 1.0, %v3293
      %v3295 = vmul.f32 %v3274, %v3148
      %v3296 = vmul.f32 %v3255, %v3275
      %v3297 = vadd.f32 %v3295, %v3296
      %v3298 = vtanh.pop %v3297
      %v3299 = vmul.f32 %v3294, %v3298
      %vm3300 = vcmp.gt.s32.totalorder %v65, 6
      %v3301 = vsel %vm3300, 1, 0
      %3302 = vset.pattern.permute.xlu0 0
      %3303 = vperm.xlu0 %3302, %v3301
      %v3304 = vpop.permute.xlu0 %3303
      %vm3305 = vcmp.eq.s32.totalorder %v3304, 1
      %v3306 = vsel %vm3305, %v3299, %v3147
      %3307 = vst [vmem:[#allocation4] sm:$0xff] %v3306
      %v3308 = vsel %vm3305, %v3297, %v3148
      %3309 = vst [vmem:[#allocation5] sm:$0xff] %v3308
      %v3310 = vsel %vm3305, %v3299, 1.0
      %3311 = vst [vmem:[%s8 + $0x30] sm:$0xff] %v3310
    $region101: #{generator_forward.2} parent=1 // pred_fallthru
      _
    // Predicated region
    $region102: #{generator_forward.2} parent=1 // pred_check
      %p3312 = pneg %p1613
    $region103: #{generator_forward.2} parent=1 // pred_check_branch
      %3314 = sbr.rel (%p3312) target = $region105
    $region104: #{generator_forward.2} parent=1 // pred_region
      %v3315 = vld [vmem:[#allocation4] sm:$0xff]
      %v3316 = vld [vmem:[#allocation5] sm:$0xff]
      %v3317 = vld [vmem:[#allocation3 + $0xe0] sm:$0xff]
      %v3318 = vld [vmem:[#allocation3 + $0xe8] sm:$0xff]
      %v3319 = vld [vmem:[#allocation3 + $0xf0] sm:$0xff]
      %v3320 = vld [vmem:[#allocation3 + $0xf8] sm:$0xff]
      %3321 = vmatpush.msra.mxu0 %v1846
      %3322 = vmatpush.msra.mxu0 %v1842
      %3323 = vmatpush.msra.mxu0 %v1838
      %3324 = vmatpush.msra.mxu0 %v1834
      %3325 = vmatpush.msra.mxu0 %v1830
      %3326 = vmatpush.msra.mxu0 %v1826
      %3327 = vmatpush.msra.mxu0 %v1822
      %3328 = vmatpush.msra.mxu0 %v1818
      %3329 = vmatpush.msra.mxu0 %v1814
      %3330 = vmatpush.msra.mxu0 %v1810
      %3331 = vmatpush.msra.mxu0 %v1806
      %3332 = vmatpush.msra.mxu0 %v1802
      %3333 = vmatpush.msra.mxu0 %v1798
      %3334 = vmatpush.msra.mxu0 %v1794
      %3335 = vmatpush.msra.mxu0 %v1790
      %3336 = vmatpush.msra.mxu0 %v1786
      %3337 = vmatmul.f32.gmra.mxu0 %v3315
      %v3338 = vpop.f32.mrf.mxu0
      %v3339 = vadd.f32 0.0, %v3338
      %3340 = vdwg.mxu0
      %3341 = vmatpush.msra.mxu0 %v1847
      %3342 = vmatpush.msra.mxu0 %v1843
      %3343 = vmatpush.msra.mxu0 %v1839
      %3344 = vmatpush.msra.mxu0 %v1835
      %3345 = vmatpush.msra.mxu0 %v1831
      %3346 = vmatpush.msra.mxu0 %v1827
      %3347 = vmatpush.msra.mxu0 %v1823
      %3348 = vmatpush.msra.mxu0 %v1819
      %3349 = vmatpush.msra.mxu0 %v1815
      %3350 = vmatpush.msra.mxu0 %v1811
      %3351 = vmatpush.msra.mxu0 %v1807
      %3352 = vmatpush.msra.mxu0 %v1803
      %3353 = vmatpush.msra.mxu0 %v1799
      %3354 = vmatpush.msra.mxu0 %v1795
      %3355 = vmatpush.msra.mxu0 %v1791
      %3356 = vmatpush.msra.mxu0 %v1787
      %3357 = vmatmul.f32.gmra.mxu0 %v3315
      %v3358 = vpop.f32.mrf.mxu0
      %v3359 = vadd.f32 0.0, %v3358
      %3360 = vdwg.mxu0
      %3361 = vmatpush.msra.mxu0 %v1848
      %3362 = vmatpush.msra.mxu0 %v1844
      %3363 = vmatpush.msra.mxu0 %v1840
      %3364 = vmatpush.msra.mxu0 %v1836
      %3365 = vmatpush.msra.mxu0 %v1832
      %3366 = vmatpush.msra.mxu0 %v1828
      %3367 = vmatpush.msra.mxu0 %v1824
      %3368 = vmatpush.msra.mxu0 %v1820
      %3369 = vmatpush.msra.mxu0 %v1816
      %3370 = vmatpush.msra.mxu0 %v1812
      %3371 = vmatpush.msra.mxu0 %v1808
      %3372 = vmatpush.msra.mxu0 %v1804
      %3373 = vmatpush.msra.mxu0 %v1800
      %3374 = vmatpush.msra.mxu0 %v1796
      %3375 = vmatpush.msra.mxu0 %v1792
      %3376 = vmatpush.msra.mxu0 %v1788
      %3377 = vmatmul.f32.gmra.mxu0 %v3315
      %v3378 = vpop.f32.mrf.mxu0
      %v3379 = vadd.f32 0.0, %v3378
      %3380 = vdwg.mxu0
      %3381 = vmatpush.msra.mxu0 %v1849
      %3382 = vmatpush.msra.mxu0 %v1845
      %3383 = vmatpush.msra.mxu0 %v1841
      %3384 = vmatpush.msra.mxu0 %v1837
      %3385 = vmatpush.msra.mxu0 %v1833
      %3386 = vmatpush.msra.mxu0 %v1829
      %3387 = vmatpush.msra.mxu0 %v1825
      %3388 = vmatpush.msra.mxu0 %v1821
      %3389 = vmatpush.msra.mxu0 %v1817
      %3390 = vmatpush.msra.mxu0 %v1813
      %3391 = vmatpush.msra.mxu0 %v1809
      %3392 = vmatpush.msra.mxu0 %v1805
      %3393 = vmatpush.msra.mxu0 %v1801
      %3394 = vmatpush.msra.mxu0 %v1797
      %3395 = vmatpush.msra.mxu0 %v1793
      %3396 = vmatpush.msra.mxu0 %v1789
      %3397 = vmatmul.f32.gmra.mxu0 %v3315
      %v3398 = vpop.f32.mrf.mxu0
      %v3399 = vadd.f32 0.0, %v3398
      %3400 = vdwg.mxu0
      %v3401 = vadd.f32 %v3317, %v3339
      %v3402 = vadd.f32 %v3318, %v3359
      %v3403 = vadd.f32 %v3319, %v3379
      %v3404 = vadd.f32 %v3320, %v3399
      %v3405 = vxor.u32 %v3401, 2147483648
      %v3406 = vmul.f32 %v3405, 1.442695
      %v3407 = vpow.pop %v3406
      %v3408 = vadd.f32 %v3407, 1.0
      %v3409 = vrcp.pop %v3408
      %v3410 = vmul.f32 %v3408, %v3409
      %v3411 = vsub.f32 1.0, %v3410
      %v3412 = vmul.f32 %v3409, %v3411
      %v3413 = vadd.f32 %v3409, %v3412
      %vm3414 = vweird.f32 %v3408
      %vm3415 = vweird.f32 %v3409
      %vm3416 = vmor %vm3414, %vm3415
      %v3417 = vsel %vm3416, %v3409, %v3413
      %v3418 = vand.u32 2147483647, %v3408
      %vm3419 = vcmp.eq.f32.partialorder %v3418, 8.507059e+37
      %v3420 = vand.u32 %v3408, 2147483648
      %v3421 = vor.u32 1.1754944e-38, %v3420
      %v3422 = vsel %vm3419, %v3421, %v3417
      %v3423 = vmul.f32 1.0, %v3422
      %v3424 = vxor.u32 %v3402, 2147483648
      %v3425 = vmul.f32 %v3424, 1.442695
      %v3426 = vpow.pop %v3425
      %v3427 = vadd.f32 %v3426, 1.0
      %v3428 = vrcp.pop %v3427
      %v3429 = vmul.f32 %v3427, %v3428
      %v3430 = vsub.f32 1.0, %v3429
      %v3431 = vmul.f32 %v3428, %v3430
      %v3432 = vadd.f32 %v3428, %v3431
      %vm3433 = vweird.f32 %v3427
      %vm3434 = vweird.f32 %v3428
      %vm3435 = vmor %vm3433, %vm3434
      %v3436 = vsel %vm3435, %v3428, %v3432
      %v3437 = vand.u32 2147483647, %v3427
      %vm3438 = vcmp.eq.f32.partialorder %v3437, 8.507059e+37
      %v3439 = vand.u32 %v3427, 2147483648
      %v3440 = vor.u32 1.1754944e-38, %v3439
      %v3441 = vsel %vm3438, %v3440, %v3436
      %v3442 = vmul.f32 1.0, %v3441
      %v3443 = vtanh.pop %v3403
      %v3444 = vxor.u32 %v3404, 2147483648
      %v3445 = vmul.f32 %v3444, 1.442695
      %v3446 = vpow.pop %v3445
      %v3447 = vadd.f32 %v3446, 1.0
      %v3448 = vrcp.pop %v3447
      %v3449 = vmul.f32 %v3447, %v3448
      %v3450 = vsub.f32 1.0, %v3449
      %v3451 = vmul.f32 %v3448, %v3450
      %v3452 = vadd.f32 %v3448, %v3451
      %vm3453 = vweird.f32 %v3447
      %vm3454 = vweird.f32 %v3448
      %vm3455 = vmor %vm3453, %vm3454
      %v3456 = vsel %vm3455, %v3448, %v3452
      %v3457 = vand.u32 2147483647, %v3447
      %vm3458 = vcmp.eq.f32.partialorder %v3457, 8.507059e+37
      %v3459 = vand.u32 %v3447, 2147483648
      %v3460 = vor.u32 1.1754944e-38, %v3459
      %v3461 = vsel %vm3458, %v3460, %v3456
      %v3462 = vmul.f32 1.0, %v3461
      %v3463 = vmul.f32 %v3442, %v3316
      %v3464 = vmul.f32 %v3423, %v3443
      %v3465 = vadd.f32 %v3463, %v3464
      %v3466 = vtanh.pop %v3465
      %v3467 = vmul.f32 %v3462, %v3466
      %vm3468 = vcmp.gt.s32.totalorder %v65, 7
      %v3469 = vsel %vm3468, 1, 0
      %3470 = vset.pattern.permute.xlu0 0
      %3471 = vperm.xlu0 %3470, %v3469
      %v3472 = vpop.permute.xlu0 %3471
      %vm3473 = vcmp.eq.s32.totalorder %v3472, 1
      %v3474 = vsel %vm3473, %v3467, %v3315
      %3475 = vst [vmem:[#allocation4] sm:$0xff] %v3474
      %v3476 = vsel %vm3473, %v3465, %v3316
      %3477 = vst [vmem:[#allocation5] sm:$0xff] %v3476
      %v3478 = vsel %vm3473, %v3467, 1.0
      %3479 = vst [vmem:[%s8 + $0x38] sm:$0xff] %v3478
    $region105: #{generator_forward.2} parent=1 // pred_fallthru
      _
    %v3480 = vld [vmem:[#allocation4] sm:$0xff]
    %s3481 = scalar_lea.vmem %s9, 8
    %3482 = vst [vmem:[%s3481] sm:$0xff] %v3480
    %v3483 = vld [vmem:[#allocation5] sm:$0xff]
    %s3484 = scalar_lea.vmem %s10, 8
    %3485 = vst [vmem:[%s3484] sm:$0xff] %v3483
    // Predicated region
    $region106: #{generator_forward.2} parent=1 // pred_check
      _
    $region107: #{generator_forward.2} parent=1 // pred_check_branch
      %3487 = sbr.rel (0) target = $region109
    $region108: #{generator_forward.2} parent=1 // pred_region
      _
    $region109: #{generator_forward.2} parent=1 // pred_fallthru
      _
    // Predicated region
    $region110: #{generator_forward.2} parent=1 // pred_check
      _
    $region111: #{generator_forward.2} parent=1 // pred_check_branch
      %3489 = sbr.rel (0) target = $region113
    $region112: #{generator_forward.2} parent=1 // pred_region
      _
    $region113: #{generator_forward.2} parent=1 // pred_fallthru
      _
    // Predicated region
    $region114: #{generator_forward.2} parent=1 // pred_check
      _
    $region115: #{generator_forward.2} parent=1 // pred_check_branch
      %3491 = sbr.rel (0) target = $region117
    $region116: #{generator_forward.2} parent=1 // pred_region
      _
    $region117: #{generator_forward.2} parent=1 // pred_fallthru
      _
    // Predicated region
    $region118: #{generator_forward.2} parent=1 // pred_check
      _
    $region119: #{generator_forward.2} parent=1 // pred_check_branch
      %3493 = sbr.rel (0) target = $region121
    $region120: #{generator_forward.2} parent=1 // pred_region
      _
    $region121: #{generator_forward.2} parent=1 // pred_fallthru
      _
    // Predicated region
    $region122: #{generator_forward.2} parent=1 // pred_check
      _
    $region123: #{generator_forward.2} parent=1 // pred_check_branch
      %3495 = sbr.rel (0) target = $region125
    $region124: #{generator_forward.2} parent=1 // pred_region
      _
    $region125: #{generator_forward.2} parent=1 // pred_fallthru
      _
    // Predicated region
    $region126: #{generator_forward.2} parent=1 // pred_check
      _
    $region127: #{generator_forward.2} parent=1 // pred_check_branch
      %3497 = sbr.rel (0) target = $region129
    $region128: #{generator_forward.2} parent=1 // pred_region
      _
    $region129: #{generator_forward.2} parent=1 // pred_fallthru
      _
    %3498 = vsyncpa [#allocation8], 1
    %3499 = vsyncpa [#allocation10], 1

</llo_original>
